<compile_context>
chip_gen: v7x
topology: tpu7x:2x2x1
jax: 0.10.0
libtpu: 0.0.40
codegen_flags: <defaults>
</compile_context>

<pallas_src>
import functools

import numpy as np
import jax
import jax.numpy as jnp
from jax import lax
from jax.experimental import pallas as pl
from jax.experimental.pallas import tpu as pltpu

NEG_SLOPE = 0.01        # nn.LeakyReLU default
EPS = 1e-5              # nn.InstanceNorm2d default
ROLL_MIN_LANES = 256    # use the roll-based conv path once HW fills >= 2 vregs


def _round_up(n, m=8):
    return ((n + m - 1) // m) * m


# ----------------------- host-side constant builders ------------------------

def _deconv_scatter(h, w):
    """S[q] for ConvTranspose2d(k=3, s=2, p=1, output_padding=1), small maps."""
    oh, ow = 2 * h, 2 * w
    s = np.zeros((9, h * w, oh * ow), np.float32)
    for ky in range(3):
        for kx in range(3):
            q = ky * 3 + kx
            for iy in range(h):
                oy = 2 * iy + ky - 1
                if not 0 <= oy < oh:
                    continue
                for ix in range(w):
                    ox = 2 * ix + kx - 1
                    if not 0 <= ox < ow:
                        continue
                    s[q, iy * w + ix, oy * ow + ox] = 1.0
    return s


def _conv_scatter(h, w):
    """S[q] for Conv2d(k=3, s=1, p=1), small maps."""
    s = np.zeros((9, h * w, h * w), np.float32)
    for ky in range(3):
        for kx in range(3):
            q = ky * 3 + kx
            for oy in range(h):
                iy = oy + ky - 1
                if not 0 <= iy < h:
                    continue
                for ox in range(w):
                    ix = ox + kx - 1
                    if not 0 <= ix < w:
                        continue
                    s[q, iy * w + ix, oy * w + ox] = 1.0
    return s


def _dilate_matrix(h, w):
    """0/1 matrix placing an (h, w) map at even positions of a (2h, 2w) map."""
    oh, ow = 2 * h, 2 * w
    d = np.zeros((h * w, oh * ow), np.float32)
    for iy in range(h):
        for ix in range(w):
            d[iy * w + ix, (2 * iy) * ow + 2 * ix] = 1.0
    return d


def _edge_masks(h, w):
    """mask[q, oy*w+ox] = 1 iff input pixel (oy+ky-1, ox+kx-1) is in range."""
    m = np.zeros((9, h * w), np.float32)
    for ky in range(3):
        for kx in range(3):
            q = ky * 3 + kx
            dy, dx = ky - 1, kx - 1
            for oy in range(h):
                for ox in range(w):
                    if 0 <= oy + dy < h and 0 <= ox + dx < w:
                        m[q, oy * w + ox] = 1.0
    return m


# ------------------------------ fused kernel --------------------------------

def _decoder_kernel(*refs, meta):
    """One grid step = one batch sample.  Activations are (C_pad, H*W)."""
    z_ref, wlin_ref, blin_ref = refs[0], refs[1], refs[2]
    o_ref = refs[-1]

    b = pl.program_id(0)
    n_batch = z_ref.shape[1]

    # One-hot column selector: keeps the per-sample latent extraction a tiny
    # matmul (no dynamic lane slicing / (1,L)->(L,1) relayout needed).
    sel = (lax.broadcasted_iota(jnp.int32, (n_batch, 1), 0) == b)
    sel = sel.astype(jnp.float32)                                    # (B, 1)
    z_col = jnp.dot(z_ref[...], sel,
                    preferred_element_type=jnp.float32)              # (L, 1)
    x = jnp.dot(wlin_ref[...], z_col,
                preferred_element_type=jnp.float32) + blin_ref[...]  # (C0p, 1)

    pos = 3
    for ly in meta:
        cp = ly["cout_p"]

        if ly["mode"] == "scatter":
            # Small layers: one stacked channel-mix matmul, 9 tiny scatters.
            w_ref, s_ref = refs[pos], refs[pos + 1]
            pos += 2
            t = jnp.dot(w_ref[...], x,
                        preferred_element_type=jnp.float32)          # (9*cp, HWin)
            hw_in = s_ref.shape[1]
            y = None
            for q in range(9):
                tq = t[q * cp:(q + 1) * cp, :]                       # 8-aligned slice
                if hw_in == 1:
                    c = tq * s_ref[q]                                # outer product
                else:
                    c = jnp.dot(tq, s_ref[q],
                                preferred_element_type=jnp.float32)
                y = c if y is None else y + c
        else:
            # Large layers: (optional dilation) + 3x3 conv via lane rolls.
            if ly["dilate"]:
                d_ref = refs[pos]
                pos += 1
                x = jnp.dot(x, d_ref[...],
                            preferred_element_type=jnp.float32)      # (Cin_p, HWout)
            w_ref, m_ref = refs[pos], refs[pos + 1]
            pos += 2
            shifts = ly["shifts"]
            pieces = []
            for q in range(9):
                s = shifts[q]
                v = x if s == 0 else pltpu.roll(x, s, axis=1)        # XLU lane roll
                pieces.append(v)
            xs = jnp.concatenate(pieces, axis=0) * m_ref[...]        # (9*Cin_p, HW)
            y = jnp.dot(w_ref[...], xs,
                        preferred_element_type=jnp.float32)          # (cp, HW)

        if ly["norm"]:
            # Single-pass InstanceNorm: var = E[y^2] - E[y]^2 (biased, eps=1e-5)
            g_ref, bt_ref = refs[pos], refs[pos + 1]
            pos += 2
            inv_hw = 1.0 / y.shape[1]
            mean = jnp.sum(y, axis=1, keepdims=True) * inv_hw
            ex2 = jnp.sum(y * y, axis=1, keepdims=True) * inv_hw
            var = jnp.maximum(ex2 - mean * mean, 0.0)
            y = (y - mean) * lax.rsqrt(var + EPS) * g_ref[...] + bt_ref[...]

        if ly["act"] == "leaky":
            y = jnp.where(y > 0, y, NEG_SLOPE * y)
        else:  # "tanh"
            y = jnp.tanh(y)
        x = y

    o_ref[0] = x                                                     # (8, HW) full-sublane store


def _const_index_map(rank):
    def index_map(b):
        return (0,) * rank
    return index_map


def decoder_forward(kparams, latent_z):
    """latent_z: (B, latent_dim) -> (B, 3, H, W), matching the PyTorch module."""
    B = latent_z.shape[0]
    z_t = jnp.transpose(latent_z).astype(jnp.float32)                # (L, B)

    inputs = [z_t] + list(kparams["inputs"])
    in_specs = [pl.BlockSpec(tuple(x.shape), _const_index_map(x.ndim))
                for x in inputs]

    h_out, w_out = kparams["out_hw"]
    hw_out = h_out * w_out
    cp_out = kparams["out_cp"]
    c_out = kparams["out_c"]

    out = pl.pallas_call(
        functools.partial(_decoder_kernel, meta=kparams["meta"]),
        out_shape=jax.ShapeDtypeStruct((B, cp_out, hw_out), jnp.float32),
        grid_spec=pltpu.PrefetchScalarGridSpec(
            num_scalar_prefetch=0,
            grid=(B,),
            in_specs=in_specs,
            out_specs=pl.BlockSpec((1, cp_out, hw_out), lambda b: (b, 0, 0)),
        ),
        compiler_params=pltpu.CompilerParams(
            dimension_semantics=("parallel",),
        ),
    )(*inputs)

    # Drop the zero pad rows and reshape the lane-dense (C, H*W) slab to NCHW.
    return out[:, :c_out, :].reshape(B, c_out, h_out, w_out)


# ----------------------------- parameter setup ------------------------------

def init_decoder_params(key, latent_dim, hidden_dims):
    """Random parameters kept in PyTorch layouts (also used by the reference)."""
    rev = list(hidden_dims)[::-1]
    keys = iter(jax.random.split(key, 4 * len(rev) + 8))

    params = {
        "lin_w": 0.1 * jax.random.normal(next(keys), (rev[0], latent_dim), jnp.float32),
        "lin_b": 0.1 * jax.random.normal(next(keys), (rev[0],), jnp.float32),
    }

    layers = []

    def deconv_layer(cin, cout, norm):
        w = 0.1 * jax.random.normal(next(keys), (cin, cout, 3, 3), jnp.float32)
        if norm:
            g = 1.0 + 0.05 * jax.random.normal(next(keys), (cout,), jnp.float32)
            bt = 0.05 * jax.random.normal(next(keys), (cout,), jnp.float32)
        else:
            g = jnp.ones((cout,), jnp.float32)
            bt = jnp.zeros((cout,), jnp.float32)
        return dict(kind="deconv", w=w, gamma=g, beta=bt, norm=norm, act="leaky")

    layers.append(deconv_layer(rev[0], rev[1], norm=False))          # input_deconv
    for i in range(len(rev) - 2):                                    # decoder stack
        layers.append(deconv_layer(rev[i + 1], rev[i + 2], norm=True))
    layers.append(deconv_layer(rev[-1], 3, norm=True))               # output deconv
    # final Conv2d(3, 3, k=3, s=1, p=1) + InstanceNorm + Tanh
    wc = 0.1 * jax.random.normal(next(keys), (3, 3, 3, 3), jnp.float32)
    g = 1.0 + 0.05 * jax.random.normal(next(keys), (3,), jnp.float32)
    bt = 0.05 * jax.random.normal(next(keys), (3,), jnp.float32)
    layers.append(dict(kind="conv", w=wc, gamma=g, beta=bt, norm=True, act="tanh"))

    params["layers"] = layers
    return params


def prepare_kernel_params(params):
    """Convert PyTorch-layout params into kernel-ready stacked/padded constants."""
    lin_w = np.asarray(params["lin_w"], np.float32)
    lin_b = np.asarray(params["lin_b"], np.float32)
    c0 = lin_w.shape[0]
    c0p = _round_up(c0)
    wlin = np.zeros((c0p, lin_w.shape[1]), np.float32)
    wlin[:c0] = lin_w
    blin = np.zeros((c0p, 1), np.float32)
    blin[:c0, 0] = lin_b

    inputs = [jnp.asarray(wlin), jnp.asarray(blin)]
    meta = []
    h = w = 1
    cin_p = c0p
    out_c = c0

    for ly in params["layers"]:
        wt = np.asarray(ly["w"], np.float32)
        is_deconv = ly["kind"] == "deconv"
        if is_deconv:
            lcin, lcout = wt.shape[0], wt.shape[1]
            h_out, w_out = 2 * h, 2 * w
        else:
            lcout, lcin = wt.shape[0], wt.shape[1]
            h_out, w_out = h, w
        cout_p = _round_up(lcout)
        hw_out = h_out * w_out
        mode = "roll" if hw_out >= ROLL_MIN_LANES else "scatter"
        entry = {"mode": mode, "norm": bool(ly["norm"]), "act": ly["act"],
                 "cout_p": cout_p, "dilate": False, "shifts": None}

        if mode == "scatter":
            # (9*Cout_p, Cin_p): single stacked channel-mix matmul per layer.
            wstack = np.zeros((9 * cout_p, cin_p), np.float32)
            for ky in range(3):
                for kx in range(3):
                    q = ky * 3 + kx
                    wq = wt[:, :, ky, kx].T if is_deconv else wt[:, :, ky, kx]
                    wstack[q * cout_p:q * cout_p + lcout, :lcin] = wq
            scat = _deconv_scatter(h, w) if is_deconv else _conv_scatter(h, w)
            inputs += [jnp.asarray(wstack), jnp.asarray(scat)]
        else:
            if is_deconv:
                # deconv(k3,s2,p1,op1) == dilate-by-2 then conv3x3 (flipped kernel)
                entry["dilate"] = True
                inputs.append(jnp.asarray(_dilate_matrix(h, w)))
            wroll = np.zeros((cout_p, 9 * cin_p), np.float32)
            for ky in range(3):
                for kx in range(3):
                    q = ky * 3 + kx
                    if is_deconv:
                        wq = wt[:, :, 2 - ky, 2 - kx].T      # flipped, (Cout, Cin)
                    else:
                        wq = wt[:, :, ky, kx]                # (Cout, Cin)
                    wroll[:lcout, q * cin_p:q * cin_p + lcin] = wq
            masks = _edge_masks(h_out, w_out)                # (9, HWout)
            mbig = np.repeat(masks, cin_p, axis=0)           # (9*Cin_p, HWout)
            entry["shifts"] = tuple(
                int((-((ky - 1) * w_out + (kx - 1))) % hw_out)
                for ky in range(3) for kx in range(3))
            inputs += [jnp.asarray(wroll), jnp.asarray(mbig)]

        if ly["norm"]:
            g = np.ones((cout_p, 1), np.float32)
            g[:lcout, 0] = np.asarray(ly["gamma"], np.float32)
            bt = np.zeros((cout_p, 1), np.float32)
            bt[:lcout, 0] = np.asarray(ly["beta"], np.float32)
            inputs += [jnp.asarray(g), jnp.asarray(bt)]

        meta.append(entry)
        h, w = h_out, w_out
        cin_p = cout_p
        out_c = lcout

    return {"inputs": inputs, "meta": tuple(meta),
            "out_hw": (h, w), "out_c": out_c, "out_cp": cin_p}


# ----------------------------- pure-JAX reference ---------------------------

def _ref_instance_norm(x, gamma, beta):
    mean = jnp.mean(x, axis=(2, 3), keepdims=True)
    var = jnp.mean(jnp.square(x - mean), axis=(2, 3), keepdims=True)
    xn = (x - mean) * lax.rsqrt(var + EPS)
    return xn * gamma.reshape(1, -1, 1, 1) + beta.reshape(1, -1, 1, 1)


def decoder_forward_reference(params, latent_z):
    x = latent_z @ params["lin_w"].T + params["lin_b"]               # (B, C0)
    x = x.reshape(x.shape[0], x.shape[1], 1, 1)                      # (B, C0, 1, 1)
    for ly in params["layers"]:
        if ly["kind"] == "deconv":
            wt = jnp.transpose(ly["w"], (1, 0, 2, 3))[:, :, ::-1, ::-1]
            x = lax.conv_general_dilated(
                x, wt, window_strides=(1, 1), padding=((1, 2), (1, 2)),
                lhs_dilation=(2, 2),
                dimension_numbers=("NCHW", "OIHW", "NCHW"),
                precision=lax.Precision.HIGHEST)
        else:
            x = lax.conv_general_dilated(
                x, ly["w"], window_strides=(1, 1), padding=((1, 1), (1, 1)),
                dimension_numbers=("NCHW", "OIHW", "NCHW"),
                precision=lax.Precision.HIGHEST)
        if ly["norm"]:
            x = _ref_instance_norm(x, ly["gamma"], ly["beta"])
        if ly["act"] == "leaky":
            x = jnp.where(x > 0, x, NEG_SLOPE * x)
        else:
            x = jnp.tanh(x)
    return x


# ---------------------------------- main -------------------------------------

if __name__ == "__main__":
    # Small, module-consistent config: latent_dim=16, hidden_dims=[8,16,32,64]
    # -> channels 64 -> 32 -> 16 -> 8 -> 3 -> 3, spatial 1 -> 2 -> 4 -> 8 -> 16 -> 16
    latent_dim = 16
    hidden_dims = [8, 16, 32, 64]
    batch = 2

    key = jax.random.PRNGKey(0)
    pkey, zkey = jax.random.split(key)
    params = init_decoder_params(pkey, latent_dim, hidden_dims)
    kparams = prepare_kernel_params(params)
    latent_z = jax.random.normal(zkey, (batch, latent_dim), jnp.float32)

    out = decoder_forward(kparams, latent_z)
    out = jax.block_until_ready(out)

    assert out.shape == (batch, 3, 16, 16), out.shape
    assert bool(jnp.all(jnp.isfinite(out)))
    assert bool(jnp.all(jnp.abs(out) <= 1.0))     # final Tanh

    # Correctness vs a pure-JAX / XLA reference of the PyTorch module.
    ref = decoder_forward_reference(params, latent_z)
    err = float(jnp.max(jnp.abs(out - ref)))
    assert err < 2e-2, f"max abs error vs reference: {err}"

    print("KERNEL_OK")
</pallas_src>

<mosaic_0001>
module attributes {stable_mosaic.version = 11 : i64} {
  func.func @_decoder_kernel(%arg0: i32, %arg1: memref<16x2xf32, #tpu.memory_space<vmem>>, %arg2: memref<64x16xf32, #tpu.memory_space<vmem>>, %arg3: memref<64x1xf32, #tpu.memory_space<vmem>>, %arg4: memref<288x64xf32, #tpu.memory_space<vmem>>, %arg5: memref<9x1x4xf32, #tpu.memory_space<vmem>>, %arg6: memref<144x32xf32, #tpu.memory_space<vmem>>, %arg7: memref<9x4x16xf32, #tpu.memory_space<vmem>>, %arg8: memref<16x1xf32, #tpu.memory_space<vmem>>, %arg9: memref<16x1xf32, #tpu.memory_space<vmem>>, %arg10: memref<72x16xf32, #tpu.memory_space<vmem>>, %arg11: memref<9x16x64xf32, #tpu.memory_space<vmem>>, %arg12: memref<8x1xf32, #tpu.memory_space<vmem>>, %arg13: memref<8x1xf32, #tpu.memory_space<vmem>>, %arg14: memref<64x256xf32, #tpu.memory_space<vmem>>, %arg15: memref<8x72xf32, #tpu.memory_space<vmem>>, %arg16: memref<72x256xf32, #tpu.memory_space<vmem>>, %arg17: memref<8x1xf32, #tpu.memory_space<vmem>>, %arg18: memref<8x1xf32, #tpu.memory_space<vmem>>, %arg19: memref<8x72xf32, #tpu.memory_space<vmem>>, %arg20: memref<72x256xf32, #tpu.memory_space<vmem>>, %arg21: memref<8x1xf32, #tpu.memory_space<vmem>>, %arg22: memref<8x1xf32, #tpu.memory_space<vmem>>, %arg23: memref<1x8x256xf32, #tpu.memory_space<vmem>>) attributes {dimension_semantics = [#tpu.dimension_semantics<parallel>], iteration_bounds = array<i64: 2>, scalar_prefetch = 0 : i64, scratch_operands = 0 : i64, tpu.core_type = #tpu.core_type<tc>, window_params = [{pipeline_mode = #tpu.pipeline_mode<synchronous>, transform_indices = @transform_0, window_bounds = array<i64: 16, 2>}, {pipeline_mode = #tpu.pipeline_mode<synchronous>, transform_indices = @transform_1, window_bounds = array<i64: 64, 16>}, {pipeline_mode = #tpu.pipeline_mode<synchronous>, transform_indices = @transform_2, window_bounds = array<i64: 64, 1>}, {pipeline_mode = #tpu.pipeline_mode<synchronous>, transform_indices = @transform_3, window_bounds = array<i64: 288, 64>}, {pipeline_mode = #tpu.pipeline_mode<synchronous>, transform_indices = @transform_4, window_bounds = array<i64: 9, 1, 4>}, {pipeline_mode = #tpu.pipeline_mode<synchronous>, transform_indices = @transform_5, window_bounds = array<i64: 144, 32>}, {pipeline_mode = #tpu.pipeline_mode<synchronous>, transform_indices = @transform_6, window_bounds = array<i64: 9, 4, 16>}, {pipeline_mode = #tpu.pipeline_mode<synchronous>, transform_indices = @transform_7, window_bounds = array<i64: 16, 1>}, {pipeline_mode = #tpu.pipeline_mode<synchronous>, transform_indices = @transform_8, window_bounds = array<i64: 16, 1>}, {pipeline_mode = #tpu.pipeline_mode<synchronous>, transform_indices = @transform_9, window_bounds = array<i64: 72, 16>}, {pipeline_mode = #tpu.pipeline_mode<synchronous>, transform_indices = @transform_10, window_bounds = array<i64: 9, 16, 64>}, {pipeline_mode = #tpu.pipeline_mode<synchronous>, transform_indices = @transform_11, window_bounds = array<i64: 8, 1>}, {pipeline_mode = #tpu.pipeline_mode<synchronous>, transform_indices = @transform_12, window_bounds = array<i64: 8, 1>}, {pipeline_mode = #tpu.pipeline_mode<synchronous>, transform_indices = @transform_13, window_bounds = array<i64: 64, 256>}, {pipeline_mode = #tpu.pipeline_mode<synchronous>, transform_indices = @transform_14, window_bounds = array<i64: 8, 72>}, {pipeline_mode = #tpu.pipeline_mode<synchronous>, transform_indices = @transform_15, window_bounds = array<i64: 72, 256>}, {pipeline_mode = #tpu.pipeline_mode<synchronous>, transform_indices = @transform_16, window_bounds = array<i64: 8, 1>}, {pipeline_mode = #tpu.pipeline_mode<synchronous>, transform_indices = @transform_17, window_bounds = array<i64: 8, 1>}, {pipeline_mode = #tpu.pipeline_mode<synchronous>, transform_indices = @transform_18, window_bounds = array<i64: 8, 72>}, {pipeline_mode = #tpu.pipeline_mode<synchronous>, transform_indices = @transform_19, window_bounds = array<i64: 72, 256>}, {pipeline_mode = #tpu.pipeline_mode<synchronous>, transform_indices = @transform_20, window_bounds = array<i64: 8, 1>}, {pipeline_mode = #tpu.pipeline_mode<synchronous>, transform_indices = @transform_21, window_bounds = array<i64: 8, 1>}, {transform_indices = @transform_22, window_bounds = array<i64: 1, 8, 256>}]} {
    %0 = tpu.iota {dimensions = array<i32: 0>} : vector<2x1xi32>
    %1 = vector.broadcast %arg0 : i32 to vector<2x1xi32>
    %2 = arith.cmpi eq, %0, %1 : vector<2x1xi32>
    %3 = arith.extui %2 : vector<2x1xi1> to vector<2x1xi32>
    %4 = arith.sitofp %3 : vector<2x1xi32> to vector<2x1xf32>
    %c0 = arith.constant 0 : index
    %c0_0 = arith.constant 0 : index
    %5 = vector.load %arg1[%c0, %c0_0] : memref<16x2xf32, #tpu.memory_space<vmem>>, vector<16x2xf32>
    %cst = arith.constant dense<0.000000e+00> : vector<16x1xf32>
    %6 = tpu.matmul %5, %4, %cst {dimension_numbers = #tpu.dot_dimension_numbers<[1], [0], [0], [1], [0, 0, 1, 1], [], []>} : vector<16x2xf32>, vector<2x1xf32>, vector<16x1xf32> -> vector<16x1xf32>
    %c0_1 = arith.constant 0 : index
    %c0_2 = arith.constant 0 : index
    %7 = vector.load %arg2[%c0_1, %c0_2] : memref<64x16xf32, #tpu.memory_space<vmem>>, vector<64x16xf32>
    %cst_3 = arith.constant dense<0.000000e+00> : vector<64x1xf32>
    %8 = tpu.matmul %7, %6, %cst_3 {dimension_numbers = #tpu.dot_dimension_numbers<[1], [0], [0], [1], [0, 0, 1, 1], [], []>} : vector<64x16xf32>, vector<16x1xf32>, vector<64x1xf32> -> vector<64x1xf32>
    %c0_4 = arith.constant 0 : index
    %c0_5 = arith.constant 0 : index
    %9 = vector.load %arg3[%c0_4, %c0_5] : memref<64x1xf32, #tpu.memory_space<vmem>>, vector<64x1xf32>
    %10 = arith.addf %8, %9 : vector<64x1xf32>
    %c0_6 = arith.constant 0 : index
    %c0_7 = arith.constant 0 : index
    %11 = vector.load %arg4[%c0_6, %c0_7] : memref<288x64xf32, #tpu.memory_space<vmem>>, vector<288x64xf32>
    %cst_8 = arith.constant dense<0.000000e+00> : vector<288x1xf32>
    %12 = tpu.matmul %11, %10, %cst_8 {dimension_numbers = #tpu.dot_dimension_numbers<[1], [0], [0], [1], [0, 0, 1, 1], [], []>} : vector<288x64xf32>, vector<64x1xf32>, vector<288x1xf32> -> vector<288x1xf32>
    %13 = vector.extract_strided_slice %12 {offsets = [0, 0], sizes = [32, 1], strides = [1, 1]} : vector<288x1xf32> to vector<32x1xf32>
    %c0_9 = arith.constant 0 : index
    %c0_10 = arith.constant 0 : index
    %c0_11 = arith.constant 0 : index
    %14 = vector.load %arg5[%c0_9, %c0_10, %c0_11] : memref<9x1x4xf32, #tpu.memory_space<vmem>>, vector<1x1x4xf32>
    %15 = vector.shape_cast %14 : vector<1x1x4xf32> to vector<1x4xf32>
    %16 = vector.broadcast %13 : vector<32x1xf32> to vector<32x4xf32>
    %17 = vector.broadcast %15 : vector<1x4xf32> to vector<32x4xf32>
    %18 = arith.mulf %16, %17 : vector<32x4xf32>
    %19 = vector.extract_strided_slice %12 {offsets = [32, 0], sizes = [32, 1], strides = [1, 1]} : vector<288x1xf32> to vector<32x1xf32>
    %c1 = arith.constant 1 : index
    %c0_12 = arith.constant 0 : index
    %c0_13 = arith.constant 0 : index
    %20 = vector.load %arg5[%c1, %c0_12, %c0_13] : memref<9x1x4xf32, #tpu.memory_space<vmem>>, vector<1x1x4xf32>
    %21 = vector.shape_cast %20 : vector<1x1x4xf32> to vector<1x4xf32>
    %22 = vector.broadcast %19 : vector<32x1xf32> to vector<32x4xf32>
    %23 = vector.broadcast %21 : vector<1x4xf32> to vector<32x4xf32>
    %24 = arith.mulf %22, %23 : vector<32x4xf32>
    %25 = arith.addf %18, %24 : vector<32x4xf32>
    %26 = vector.extract_strided_slice %12 {offsets = [64, 0], sizes = [32, 1], strides = [1, 1]} : vector<288x1xf32> to vector<32x1xf32>
    %c2 = arith.constant 2 : index
    %c0_14 = arith.constant 0 : index
    %c0_15 = arith.constant 0 : index
    %27 = vector.load %arg5[%c2, %c0_14, %c0_15] : memref<9x1x4xf32, #tpu.memory_space<vmem>>, vector<1x1x4xf32>
    %28 = vector.shape_cast %27 : vector<1x1x4xf32> to vector<1x4xf32>
    %29 = vector.broadcast %26 : vector<32x1xf32> to vector<32x4xf32>
    %30 = vector.broadcast %28 : vector<1x4xf32> to vector<32x4xf32>
    %31 = arith.mulf %29, %30 : vector<32x4xf32>
    %32 = arith.addf %25, %31 : vector<32x4xf32>
    %33 = vector.extract_strided_slice %12 {offsets = [96, 0], sizes = [32, 1], strides = [1, 1]} : vector<288x1xf32> to vector<32x1xf32>
    %c3 = arith.constant 3 : index
    %c0_16 = arith.constant 0 : index
    %c0_17 = arith.constant 0 : index
    %34 = vector.load %arg5[%c3, %c0_16, %c0_17] : memref<9x1x4xf32, #tpu.memory_space<vmem>>, vector<1x1x4xf32>
    %35 = vector.shape_cast %34 : vector<1x1x4xf32> to vector<1x4xf32>
    %36 = vector.broadcast %33 : vector<32x1xf32> to vector<32x4xf32>
    %37 = vector.broadcast %35 : vector<1x4xf32> to vector<32x4xf32>
    %38 = arith.mulf %36, %37 : vector<32x4xf32>
    %39 = arith.addf %32, %38 : vector<32x4xf32>
    %40 = vector.extract_strided_slice %12 {offsets = [128, 0], sizes = [32, 1], strides = [1, 1]} : vector<288x1xf32> to vector<32x1xf32>
    %c4 = arith.constant 4 : index
    %c0_18 = arith.constant 0 : index
    %c0_19 = arith.constant 0 : index
    %41 = vector.load %arg5[%c4, %c0_18, %c0_19] : memref<9x1x4xf32, #tpu.memory_space<vmem>>, vector<1x1x4xf32>
    %42 = vector.shape_cast %41 : vector<1x1x4xf32> to vector<1x4xf32>
    %43 = vector.broadcast %40 : vector<32x1xf32> to vector<32x4xf32>
    %44 = vector.broadcast %42 : vector<1x4xf32> to vector<32x4xf32>
    %45 = arith.mulf %43, %44 : vector<32x4xf32>
    %46 = arith.addf %39, %45 : vector<32x4xf32>
    %47 = vector.extract_strided_slice %12 {offsets = [160, 0], sizes = [32, 1], strides = [1, 1]} : vector<288x1xf32> to vector<32x1xf32>
    %c5 = arith.constant 5 : index
    %c0_20 = arith.constant 0 : index
    %c0_21 = arith.constant 0 : index
    %48 = vector.load %arg5[%c5, %c0_20, %c0_21] : memref<9x1x4xf32, #tpu.memory_space<vmem>>, vector<1x1x4xf32>
    %49 = vector.shape_cast %48 : vector<1x1x4xf32> to vector<1x4xf32>
    %50 = vector.broadcast %47 : vector<32x1xf32> to vector<32x4xf32>
    %51 = vector.broadcast %49 : vector<1x4xf32> to vector<32x4xf32>
    %52 = arith.mulf %50, %51 : vector<32x4xf32>
    %53 = arith.addf %46, %52 : vector<32x4xf32>
    %54 = vector.extract_strided_slice %12 {offsets = [192, 0], sizes = [32, 1], strides = [1, 1]} : vector<288x1xf32> to vector<32x1xf32>
    %c6 = arith.constant 6 : index
    %c0_22 = arith.constant 0 : index
    %c0_23 = arith.constant 0 : index
    %55 = vector.load %arg5[%c6, %c0_22, %c0_23] : memref<9x1x4xf32, #tpu.memory_space<vmem>>, vector<1x1x4xf32>
    %56 = vector.shape_cast %55 : vector<1x1x4xf32> to vector<1x4xf32>
    %57 = vector.broadcast %54 : vector<32x1xf32> to vector<32x4xf32>
    %58 = vector.broadcast %56 : vector<1x4xf32> to vector<32x4xf32>
    %59 = arith.mulf %57, %58 : vector<32x4xf32>
    %60 = arith.addf %53, %59 : vector<32x4xf32>
    %61 = vector.extract_strided_slice %12 {offsets = [224, 0], sizes = [32, 1], strides = [1, 1]} : vector<288x1xf32> to vector<32x1xf32>
    %c7 = arith.constant 7 : index
    %c0_24 = arith.constant 0 : index
    %c0_25 = arith.constant 0 : index
    %62 = vector.load %arg5[%c7, %c0_24, %c0_25] : memref<9x1x4xf32, #tpu.memory_space<vmem>>, vector<1x1x4xf32>
    %63 = vector.shape_cast %62 : vector<1x1x4xf32> to vector<1x4xf32>
    %64 = vector.broadcast %61 : vector<32x1xf32> to vector<32x4xf32>
    %65 = vector.broadcast %63 : vector<1x4xf32> to vector<32x4xf32>
    %66 = arith.mulf %64, %65 : vector<32x4xf32>
    %67 = arith.addf %60, %66 : vector<32x4xf32>
    %68 = vector.extract_strided_slice %12 {offsets = [256, 0], sizes = [32, 1], strides = [1, 1]} : vector<288x1xf32> to vector<32x1xf32>
    %c8 = arith.constant 8 : index
    %c0_26 = arith.constant 0 : index
    %c0_27 = arith.constant 0 : index
    %69 = vector.load %arg5[%c8, %c0_26, %c0_27] : memref<9x1x4xf32, #tpu.memory_space<vmem>>, vector<1x1x4xf32>
    %70 = vector.shape_cast %69 : vector<1x1x4xf32> to vector<1x4xf32>
    %71 = vector.broadcast %68 : vector<32x1xf32> to vector<32x4xf32>
    %72 = vector.broadcast %70 : vector<1x4xf32> to vector<32x4xf32>
    %73 = arith.mulf %71, %72 : vector<32x4xf32>
    %74 = arith.addf %67, %73 : vector<32x4xf32>
    %cst_28 = arith.constant 0.000000e+00 : f32
    %75 = vector.broadcast %cst_28 : f32 to vector<32x4xf32>
    %76 = arith.cmpf ogt, %74, %75 : vector<32x4xf32>
    %cst_29 = arith.constant 0.00999999977 : f32
    %77 = vector.broadcast %cst_29 : f32 to vector<32x4xf32>
    %78 = arith.mulf %77, %74 : vector<32x4xf32>
    %79 = arith.select %76, %74, %78 : vector<32x4xi1>, vector<32x4xf32>
    %c0_30 = arith.constant 0 : index
    %c0_31 = arith.constant 0 : index
    %80 = vector.load %arg6[%c0_30, %c0_31] : memref<144x32xf32, #tpu.memory_space<vmem>>, vector<144x32xf32>
    %cst_32 = arith.constant dense<0.000000e+00> : vector<144x4xf32>
    %81 = tpu.matmul %80, %79, %cst_32 {dimension_numbers = #tpu.dot_dimension_numbers<[1], [0], [0], [1], [0, 0, 1, 1], [], []>} : vector<144x32xf32>, vector<32x4xf32>, vector<144x4xf32> -> vector<144x4xf32>
    %82 = vector.extract_strided_slice %81 {offsets = [0, 0], sizes = [16, 4], strides = [1, 1]} : vector<144x4xf32> to vector<16x4xf32>
    %c0_33 = arith.constant 0 : index
    %c0_34 = arith.constant 0 : index
    %c0_35 = arith.constant 0 : index
    %83 = vector.load %arg7[%c0_33, %c0_34, %c0_35] : memref<9x4x16xf32, #tpu.memory_space<vmem>>, vector<1x4x16xf32>
    %84 = vector.shape_cast %83 : vector<1x4x16xf32> to vector<4x16xf32>
    %cst_36 = arith.constant dense<0.000000e+00> : vector<16x16xf32>
    %85 = tpu.matmul %82, %84, %cst_36 {dimension_numbers = #tpu.dot_dimension_numbers<[1], [0], [0], [1], [0, 0, 1, 1], [], []>} : vector<16x4xf32>, vector<4x16xf32>, vector<16x16xf32> -> vector<16x16xf32>
    %86 = vector.extract_strided_slice %81 {offsets = [16, 0], sizes = [16, 4], strides = [1, 1]} : vector<144x4xf32> to vector<16x4xf32>
    %c1_37 = arith.constant 1 : index
    %c0_38 = arith.constant 0 : index
    %c0_39 = arith.constant 0 : index
    %87 = vector.load %arg7[%c1_37, %c0_38, %c0_39] : memref<9x4x16xf32, #tpu.memory_space<vmem>>, vector<1x4x16xf32>
    %88 = vector.shape_cast %87 : vector<1x4x16xf32> to vector<4x16xf32>
    %cst_40 = arith.constant dense<0.000000e+00> : vector<16x16xf32>
    %89 = tpu.matmul %86, %88, %cst_40 {dimension_numbers = #tpu.dot_dimension_numbers<[1], [0], [0], [1], [0, 0, 1, 1], [], []>} : vector<16x4xf32>, vector<4x16xf32>, vector<16x16xf32> -> vector<16x16xf32>
    %90 = arith.addf %85, %89 : vector<16x16xf32>
    %91 = vector.extract_strided_slice %81 {offsets = [32, 0], sizes = [16, 4], strides = [1, 1]} : vector<144x4xf32> to vector<16x4xf32>
    %c2_41 = arith.constant 2 : index
    %c0_42 = arith.constant 0 : index
    %c0_43 = arith.constant 0 : index
    %92 = vector.load %arg7[%c2_41, %c0_42, %c0_43] : memref<9x4x16xf32, #tpu.memory_space<vmem>>, vector<1x4x16xf32>
    %93 = vector.shape_cast %92 : vector<1x4x16xf32> to vector<4x16xf32>
    %cst_44 = arith.constant dense<0.000000e+00> : vector<16x16xf32>
    %94 = tpu.matmul %91, %93, %cst_44 {dimension_numbers = #tpu.dot_dimension_numbers<[1], [0], [0], [1], [0, 0, 1, 1], [], []>} : vector<16x4xf32>, vector<4x16xf32>, vector<16x16xf32> -> vector<16x16xf32>
    %95 = arith.addf %90, %94 : vector<16x16xf32>
    %96 = vector.extract_strided_slice %81 {offsets = [48, 0], sizes = [16, 4], strides = [1, 1]} : vector<144x4xf32> to vector<16x4xf32>
    %c3_45 = arith.constant 3 : index
    %c0_46 = arith.constant 0 : index
    %c0_47 = arith.constant 0 : index
    %97 = vector.load %arg7[%c3_45, %c0_46, %c0_47] : memref<9x4x16xf32, #tpu.memory_space<vmem>>, vector<1x4x16xf32>
    %98 = vector.shape_cast %97 : vector<1x4x16xf32> to vector<4x16xf32>
    %cst_48 = arith.constant dense<0.000000e+00> : vector<16x16xf32>
    %99 = tpu.matmul %96, %98, %cst_48 {dimension_numbers = #tpu.dot_dimension_numbers<[1], [0], [0], [1], [0, 0, 1, 1], [], []>} : vector<16x4xf32>, vector<4x16xf32>, vector<16x16xf32> -> vector<16x16xf32>
    %100 = arith.addf %95, %99 : vector<16x16xf32>
    %101 = vector.extract_strided_slice %81 {offsets = [64, 0], sizes = [16, 4], strides = [1, 1]} : vector<144x4xf32> to vector<16x4xf32>
    %c4_49 = arith.constant 4 : index
    %c0_50 = arith.constant 0 : index
    %c0_51 = arith.constant 0 : index
    %102 = vector.load %arg7[%c4_49, %c0_50, %c0_51] : memref<9x4x16xf32, #tpu.memory_space<vmem>>, vector<1x4x16xf32>
    %103 = vector.shape_cast %102 : vector<1x4x16xf32> to vector<4x16xf32>
    %cst_52 = arith.constant dense<0.000000e+00> : vector<16x16xf32>
    %104 = tpu.matmul %101, %103, %cst_52 {dimension_numbers = #tpu.dot_dimension_numbers<[1], [0], [0], [1], [0, 0, 1, 1], [], []>} : vector<16x4xf32>, vector<4x16xf32>, vector<16x16xf32> -> vector<16x16xf32>
    %105 = arith.addf %100, %104 : vector<16x16xf32>
    %106 = vector.extract_strided_slice %81 {offsets = [80, 0], sizes = [16, 4], strides = [1, 1]} : vector<144x4xf32> to vector<16x4xf32>
    %c5_53 = arith.constant 5 : index
    %c0_54 = arith.constant 0 : index
    %c0_55 = arith.constant 0 : index
    %107 = vector.load %arg7[%c5_53, %c0_54, %c0_55] : memref<9x4x16xf32, #tpu.memory_space<vmem>>, vector<1x4x16xf32>
    %108 = vector.shape_cast %107 : vector<1x4x16xf32> to vector<4x16xf32>
    %cst_56 = arith.constant dense<0.000000e+00> : vector<16x16xf32>
    %109 = tpu.matmul %106, %108, %cst_56 {dimension_numbers = #tpu.dot_dimension_numbers<[1], [0], [0], [1], [0, 0, 1, 1], [], []>} : vector<16x4xf32>, vector<4x16xf32>, vector<16x16xf32> -> vector<16x16xf32>
    %110 = arith.addf %105, %109 : vector<16x16xf32>
    %111 = vector.extract_strided_slice %81 {offsets = [96, 0], sizes = [16, 4], strides = [1, 1]} : vector<144x4xf32> to vector<16x4xf32>
    %c6_57 = arith.constant 6 : index
    %c0_58 = arith.constant 0 : index
    %c0_59 = arith.constant 0 : index
    %112 = vector.load %arg7[%c6_57, %c0_58, %c0_59] : memref<9x4x16xf32, #tpu.memory_space<vmem>>, vector<1x4x16xf32>
    %113 = vector.shape_cast %112 : vector<1x4x16xf32> to vector<4x16xf32>
    %cst_60 = arith.constant dense<0.000000e+00> : vector<16x16xf32>
    %114 = tpu.matmul %111, %113, %cst_60 {dimension_numbers = #tpu.dot_dimension_numbers<[1], [0], [0], [1], [0, 0, 1, 1], [], []>} : vector<16x4xf32>, vector<4x16xf32>, vector<16x16xf32> -> vector<16x16xf32>
    %115 = arith.addf %110, %114 : vector<16x16xf32>
    %116 = vector.extract_strided_slice %81 {offsets = [112, 0], sizes = [16, 4], strides = [1, 1]} : vector<144x4xf32> to vector<16x4xf32>
    %c7_61 = arith.constant 7 : index
    %c0_62 = arith.constant 0 : index
    %c0_63 = arith.constant 0 : index
    %117 = vector.load %arg7[%c7_61, %c0_62, %c0_63] : memref<9x4x16xf32, #tpu.memory_space<vmem>>, vector<1x4x16xf32>
    %118 = vector.shape_cast %117 : vector<1x4x16xf32> to vector<4x16xf32>
    %cst_64 = arith.constant dense<0.000000e+00> : vector<16x16xf32>
    %119 = tpu.matmul %116, %118, %cst_64 {dimension_numbers = #tpu.dot_dimension_numbers<[1], [0], [0], [1], [0, 0, 1, 1], [], []>} : vector<16x4xf32>, vector<4x16xf32>, vector<16x16xf32> -> vector<16x16xf32>
    %120 = arith.addf %115, %119 : vector<16x16xf32>
    %121 = vector.extract_strided_slice %81 {offsets = [128, 0], sizes = [16, 4], strides = [1, 1]} : vector<144x4xf32> to vector<16x4xf32>
    %c8_65 = arith.constant 8 : index
    %c0_66 = arith.constant 0 : index
    %c0_67 = arith.constant 0 : index
    %122 = vector.load %arg7[%c8_65, %c0_66, %c0_67] : memref<9x4x16xf32, #tpu.memory_space<vmem>>, vector<1x4x16xf32>
    %123 = vector.shape_cast %122 : vector<1x4x16xf32> to vector<4x16xf32>
    %cst_68 = arith.constant dense<0.000000e+00> : vector<16x16xf32>
    %124 = tpu.matmul %121, %123, %cst_68 {dimension_numbers = #tpu.dot_dimension_numbers<[1], [0], [0], [1], [0, 0, 1, 1], [], []>} : vector<16x4xf32>, vector<4x16xf32>, vector<16x16xf32> -> vector<16x16xf32>
    %125 = arith.addf %120, %124 : vector<16x16xf32>
    %cst_69 = arith.constant dense<0.000000e+00> : vector<16xf32>
    %126 = vector.multi_reduction <add>, %125, %cst_69 [1] : vector<16x16xf32> to vector<16xf32>
    %127 = vector.shape_cast %126 : vector<16xf32> to vector<16x1xf32>
    %cst_70 = arith.constant 6.250000e-02 : f32
    %128 = vector.broadcast %cst_70 : f32 to vector<16x1xf32>
    %129 = arith.mulf %127, %128 : vector<16x1xf32>
    %130 = arith.mulf %125, %125 : vector<16x16xf32>
    %cst_71 = arith.constant dense<0.000000e+00> : vector<16xf32>
    %131 = vector.multi_reduction <add>, %130, %cst_71 [1] : vector<16x16xf32> to vector<16xf32>
    %132 = vector.shape_cast %131 : vector<16xf32> to vector<16x1xf32>
    %cst_72 = arith.constant 6.250000e-02 : f32
    %133 = vector.broadcast %cst_72 : f32 to vector<16x1xf32>
    %134 = arith.mulf %132, %133 : vector<16x1xf32>
    %135 = arith.mulf %129, %129 : vector<16x1xf32>
    %136 = arith.subf %134, %135 : vector<16x1xf32>
    %cst_73 = arith.constant 0.000000e+00 : f32
    %137 = vector.broadcast %cst_73 : f32 to vector<16x1xf32>
    %138 = arith.maximumf %136, %137 : vector<16x1xf32>
    %139 = vector.broadcast %129 : vector<16x1xf32> to vector<16x16xf32>
    %140 = arith.subf %125, %139 : vector<16x16xf32>
    %cst_74 = arith.constant 9.99999974E-6 : f32
    %141 = vector.broadcast %cst_74 : f32 to vector<16x1xf32>
    %142 = arith.addf %138, %141 : vector<16x1xf32>
    %143 = math.rsqrt %142 : vector<16x1xf32>
    %144 = vector.broadcast %143 : vector<16x1xf32> to vector<16x16xf32>
    %145 = arith.mulf %140, %144 : vector<16x16xf32>
    %c0_75 = arith.constant 0 : index
    %c0_76 = arith.constant 0 : index
    %146 = vector.load %arg8[%c0_75, %c0_76] : memref<16x1xf32, #tpu.memory_space<vmem>>, vector<16x1xf32>
    %147 = vector.broadcast %146 : vector<16x1xf32> to vector<16x16xf32>
    %148 = arith.mulf %145, %147 : vector<16x16xf32>
    %c0_77 = arith.constant 0 : index
    %c0_78 = arith.constant 0 : index
    %149 = vector.load %arg9[%c0_77, %c0_78] : memref<16x1xf32, #tpu.memory_space<vmem>>, vector<16x1xf32>
    %150 = vector.broadcast %149 : vector<16x1xf32> to vector<16x16xf32>
    %151 = arith.addf %148, %150 : vector<16x16xf32>
    %cst_79 = arith.constant 0.000000e+00 : f32
    %152 = vector.broadcast %cst_79 : f32 to vector<16x16xf32>
    %153 = arith.cmpf ogt, %151, %152 : vector<16x16xf32>
    %cst_80 = arith.constant 0.00999999977 : f32
    %154 = vector.broadcast %cst_80 : f32 to vector<16x16xf32>
    %155 = arith.mulf %154, %151 : vector<16x16xf32>
    %156 = arith.select %153, %151, %155 : vector<16x16xi1>, vector<16x16xf32>
    %c0_81 = arith.constant 0 : index
    %c0_82 = arith.constant 0 : index
    %157 = vector.load %arg10[%c0_81, %c0_82] : memref<72x16xf32, #tpu.memory_space<vmem>>, vector<72x16xf32>
    %cst_83 = arith.constant dense<0.000000e+00> : vector<72x16xf32>
    %158 = tpu.matmul %157, %156, %cst_83 {dimension_numbers = #tpu.dot_dimension_numbers<[1], [0], [0], [1], [0, 0, 1, 1], [], []>} : vector<72x16xf32>, vector<16x16xf32>, vector<72x16xf32> -> vector<72x16xf32>
    %159 = vector.extract_strided_slice %158 {offsets = [0, 0], sizes = [8, 16], strides = [1, 1]} : vector<72x16xf32> to vector<8x16xf32>
    %c0_84 = arith.constant 0 : index
    %c0_85 = arith.constant 0 : index
    %c0_86 = arith.constant 0 : index
    %160 = vector.load %arg11[%c0_84, %c0_85, %c0_86] : memref<9x16x64xf32, #tpu.memory_space<vmem>>, vector<1x16x64xf32>
    %161 = vector.shape_cast %160 : vector<1x16x64xf32> to vector<16x64xf32>
    %cst_87 = arith.constant dense<0.000000e+00> : vector<8x64xf32>
    %162 = tpu.matmul %159, %161, %cst_87 {dimension_numbers = #tpu.dot_dimension_numbers<[1], [0], [0], [1], [0, 0, 1, 1], [], []>} : vector<8x16xf32>, vector<16x64xf32>, vector<8x64xf32> -> vector<8x64xf32>
    %163 = vector.extract_strided_slice %158 {offsets = [8, 0], sizes = [8, 16], strides = [1, 1]} : vector<72x16xf32> to vector<8x16xf32>
    %c1_88 = arith.constant 1 : index
    %c0_89 = arith.constant 0 : index
    %c0_90 = arith.constant 0 : index
    %164 = vector.load %arg11[%c1_88, %c0_89, %c0_90] : memref<9x16x64xf32, #tpu.memory_space<vmem>>, vector<1x16x64xf32>
    %165 = vector.shape_cast %164 : vector<1x16x64xf32> to vector<16x64xf32>
    %cst_91 = arith.constant dense<0.000000e+00> : vector<8x64xf32>
    %166 = tpu.matmul %163, %165, %cst_91 {dimension_numbers = #tpu.dot_dimension_numbers<[1], [0], [0], [1], [0, 0, 1, 1], [], []>} : vector<8x16xf32>, vector<16x64xf32>, vector<8x64xf32> -> vector<8x64xf32>
    %167 = arith.addf %162, %166 : vector<8x64xf32>
    %168 = vector.extract_strided_slice %158 {offsets = [16, 0], sizes = [8, 16], strides = [1, 1]} : vector<72x16xf32> to vector<8x16xf32>
    %c2_92 = arith.constant 2 : index
    %c0_93 = arith.constant 0 : index
    %c0_94 = arith.constant 0 : index
    %169 = vector.load %arg11[%c2_92, %c0_93, %c0_94] : memref<9x16x64xf32, #tpu.memory_space<vmem>>, vector<1x16x64xf32>
    %170 = vector.shape_cast %169 : vector<1x16x64xf32> to vector<16x64xf32>
    %cst_95 = arith.constant dense<0.000000e+00> : vector<8x64xf32>
    %171 = tpu.matmul %168, %170, %cst_95 {dimension_numbers = #tpu.dot_dimension_numbers<[1], [0], [0], [1], [0, 0, 1, 1], [], []>} : vector<8x16xf32>, vector<16x64xf32>, vector<8x64xf32> -> vector<8x64xf32>
    %172 = arith.addf %167, %171 : vector<8x64xf32>
    %173 = vector.extract_strided_slice %158 {offsets = [24, 0], sizes = [8, 16], strides = [1, 1]} : vector<72x16xf32> to vector<8x16xf32>
    %c3_96 = arith.constant 3 : index
    %c0_97 = arith.constant 0 : index
    %c0_98 = arith.constant 0 : index
    %174 = vector.load %arg11[%c3_96, %c0_97, %c0_98] : memref<9x16x64xf32, #tpu.memory_space<vmem>>, vector<1x16x64xf32>
    %175 = vector.shape_cast %174 : vector<1x16x64xf32> to vector<16x64xf32>
    %cst_99 = arith.constant dense<0.000000e+00> : vector<8x64xf32>
    %176 = tpu.matmul %173, %175, %cst_99 {dimension_numbers = #tpu.dot_dimension_numbers<[1], [0], [0], [1], [0, 0, 1, 1], [], []>} : vector<8x16xf32>, vector<16x64xf32>, vector<8x64xf32> -> vector<8x64xf32>
    %177 = arith.addf %172, %176 : vector<8x64xf32>
    %178 = vector.extract_strided_slice %158 {offsets = [32, 0], sizes = [8, 16], strides = [1, 1]} : vector<72x16xf32> to vector<8x16xf32>
    %c4_100 = arith.constant 4 : index
    %c0_101 = arith.constant 0 : index
    %c0_102 = arith.constant 0 : index
    %179 = vector.load %arg11[%c4_100, %c0_101, %c0_102] : memref<9x16x64xf32, #tpu.memory_space<vmem>>, vector<1x16x64xf32>
    %180 = vector.shape_cast %179 : vector<1x16x64xf32> to vector<16x64xf32>
    %cst_103 = arith.constant dense<0.000000e+00> : vector<8x64xf32>
    %181 = tpu.matmul %178, %180, %cst_103 {dimension_numbers = #tpu.dot_dimension_numbers<[1], [0], [0], [1], [0, 0, 1, 1], [], []>} : vector<8x16xf32>, vector<16x64xf32>, vector<8x64xf32> -> vector<8x64xf32>
    %182 = arith.addf %177, %181 : vector<8x64xf32>
    %183 = vector.extract_strided_slice %158 {offsets = [40, 0], sizes = [8, 16], strides = [1, 1]} : vector<72x16xf32> to vector<8x16xf32>
    %c5_104 = arith.constant 5 : index
    %c0_105 = arith.constant 0 : index
    %c0_106 = arith.constant 0 : index
    %184 = vector.load %arg11[%c5_104, %c0_105, %c0_106] : memref<9x16x64xf32, #tpu.memory_space<vmem>>, vector<1x16x64xf32>
    %185 = vector.shape_cast %184 : vector<1x16x64xf32> to vector<16x64xf32>
    %cst_107 = arith.constant dense<0.000000e+00> : vector<8x64xf32>
    %186 = tpu.matmul %183, %185, %cst_107 {dimension_numbers = #tpu.dot_dimension_numbers<[1], [0], [0], [1], [0, 0, 1, 1], [], []>} : vector<8x16xf32>, vector<16x64xf32>, vector<8x64xf32> -> vector<8x64xf32>
    %187 = arith.addf %182, %186 : vector<8x64xf32>
    %188 = vector.extract_strided_slice %158 {offsets = [48, 0], sizes = [8, 16], strides = [1, 1]} : vector<72x16xf32> to vector<8x16xf32>
    %c6_108 = arith.constant 6 : index
    %c0_109 = arith.constant 0 : index
    %c0_110 = arith.constant 0 : index
    %189 = vector.load %arg11[%c6_108, %c0_109, %c0_110] : memref<9x16x64xf32, #tpu.memory_space<vmem>>, vector<1x16x64xf32>
    %190 = vector.shape_cast %189 : vector<1x16x64xf32> to vector<16x64xf32>
    %cst_111 = arith.constant dense<0.000000e+00> : vector<8x64xf32>
    %191 = tpu.matmul %188, %190, %cst_111 {dimension_numbers = #tpu.dot_dimension_numbers<[1], [0], [0], [1], [0, 0, 1, 1], [], []>} : vector<8x16xf32>, vector<16x64xf32>, vector<8x64xf32> -> vector<8x64xf32>
    %192 = arith.addf %187, %191 : vector<8x64xf32>
    %193 = vector.extract_strided_slice %158 {offsets = [56, 0], sizes = [8, 16], strides = [1, 1]} : vector<72x16xf32> to vector<8x16xf32>
    %c7_112 = arith.constant 7 : index
    %c0_113 = arith.constant 0 : index
    %c0_114 = arith.constant 0 : index
    %194 = vector.load %arg11[%c7_112, %c0_113, %c0_114] : memref<9x16x64xf32, #tpu.memory_space<vmem>>, vector<1x16x64xf32>
    %195 = vector.shape_cast %194 : vector<1x16x64xf32> to vector<16x64xf32>
    %cst_115 = arith.constant dense<0.000000e+00> : vector<8x64xf32>
    %196 = tpu.matmul %193, %195, %cst_115 {dimension_numbers = #tpu.dot_dimension_numbers<[1], [0], [0], [1], [0, 0, 1, 1], [], []>} : vector<8x16xf32>, vector<16x64xf32>, vector<8x64xf32> -> vector<8x64xf32>
    %197 = arith.addf %192, %196 : vector<8x64xf32>
    %198 = vector.extract_strided_slice %158 {offsets = [64, 0], sizes = [8, 16], strides = [1, 1]} : vector<72x16xf32> to vector<8x16xf32>
    %c8_116 = arith.constant 8 : index
    %c0_117 = arith.constant 0 : index
    %c0_118 = arith.constant 0 : index
    %199 = vector.load %arg11[%c8_116, %c0_117, %c0_118] : memref<9x16x64xf32, #tpu.memory_space<vmem>>, vector<1x16x64xf32>
    %200 = vector.shape_cast %199 : vector<1x16x64xf32> to vector<16x64xf32>
    %cst_119 = arith.constant dense<0.000000e+00> : vector<8x64xf32>
    %201 = tpu.matmul %198, %200, %cst_119 {dimension_numbers = #tpu.dot_dimension_numbers<[1], [0], [0], [1], [0, 0, 1, 1], [], []>} : vector<8x16xf32>, vector<16x64xf32>, vector<8x64xf32> -> vector<8x64xf32>
    %202 = arith.addf %197, %201 : vector<8x64xf32>
    %cst_120 = arith.constant dense<0.000000e+00> : vector<8xf32>
    %203 = vector.multi_reduction <add>, %202, %cst_120 [1] : vector<8x64xf32> to vector<8xf32>
    %204 = vector.shape_cast %203 : vector<8xf32> to vector<8x1xf32>
    %cst_121 = arith.constant 1.562500e-02 : f32
    %205 = vector.broadcast %cst_121 : f32 to vector<8x1xf32>
    %206 = arith.mulf %204, %205 : vector<8x1xf32>
    %207 = arith.mulf %202, %202 : vector<8x64xf32>
    %cst_122 = arith.constant dense<0.000000e+00> : vector<8xf32>
    %208 = vector.multi_reduction <add>, %207, %cst_122 [1] : vector<8x64xf32> to vector<8xf32>
    %209 = vector.shape_cast %208 : vector<8xf32> to vector<8x1xf32>
    %cst_123 = arith.constant 1.562500e-02 : f32
    %210 = vector.broadcast %cst_123 : f32 to vector<8x1xf32>
    %211 = arith.mulf %209, %210 : vector<8x1xf32>
    %212 = arith.mulf %206, %206 : vector<8x1xf32>
    %213 = arith.subf %211, %212 : vector<8x1xf32>
    %cst_124 = arith.constant 0.000000e+00 : f32
    %214 = vector.broadcast %cst_124 : f32 to vector<8x1xf32>
    %215 = arith.maximumf %213, %214 : vector<8x1xf32>
    %216 = vector.broadcast %206 : vector<8x1xf32> to vector<8x64xf32>
    %217 = arith.subf %202, %216 : vector<8x64xf32>
    %cst_125 = arith.constant 9.99999974E-6 : f32
    %218 = vector.broadcast %cst_125 : f32 to vector<8x1xf32>
    %219 = arith.addf %215, %218 : vector<8x1xf32>
    %220 = math.rsqrt %219 : vector<8x1xf32>
    %221 = vector.broadcast %220 : vector<8x1xf32> to vector<8x64xf32>
    %222 = arith.mulf %217, %221 : vector<8x64xf32>
    %c0_126 = arith.constant 0 : index
    %c0_127 = arith.constant 0 : index
    %223 = vector.load %arg12[%c0_126, %c0_127] : memref<8x1xf32, #tpu.memory_space<vmem>>, vector<8x1xf32>
    %224 = vector.broadcast %223 : vector<8x1xf32> to vector<8x64xf32>
    %225 = arith.mulf %222, %224 : vector<8x64xf32>
    %c0_128 = arith.constant 0 : index
    %c0_129 = arith.constant 0 : index
    %226 = vector.load %arg13[%c0_128, %c0_129] : memref<8x1xf32, #tpu.memory_space<vmem>>, vector<8x1xf32>
    %227 = vector.broadcast %226 : vector<8x1xf32> to vector<8x64xf32>
    %228 = arith.addf %225, %227 : vector<8x64xf32>
    %cst_130 = arith.constant 0.000000e+00 : f32
    %229 = vector.broadcast %cst_130 : f32 to vector<8x64xf32>
    %230 = arith.cmpf ogt, %228, %229 : vector<8x64xf32>
    %cst_131 = arith.constant 0.00999999977 : f32
    %231 = vector.broadcast %cst_131 : f32 to vector<8x64xf32>
    %232 = arith.mulf %231, %228 : vector<8x64xf32>
    %233 = arith.select %230, %228, %232 : vector<8x64xi1>, vector<8x64xf32>
    %c0_132 = arith.constant 0 : index
    %c0_133 = arith.constant 0 : index
    %234 = vector.load %arg14[%c0_132, %c0_133] : memref<64x256xf32, #tpu.memory_space<vmem>>, vector<64x256xf32>
    %cst_134 = arith.constant dense<0.000000e+00> : vector<8x256xf32>
    %235 = tpu.matmul %233, %234, %cst_134 {dimension_numbers = #tpu.dot_dimension_numbers<[1], [0], [0], [1], [0, 0, 1, 1], [], []>} : vector<8x64xf32>, vector<64x256xf32>, vector<8x256xf32> -> vector<8x256xf32>
    %c17_i32 = arith.constant 17 : i32
    %236 = tpu.dynamic_rotate %235 by %c17_i32 dim 1 : vector<8x256xf32>, i32 -> vector<8x256xf32>
    %c16_i32 = arith.constant 16 : i32
    %237 = tpu.dynamic_rotate %235 by %c16_i32 dim 1 : vector<8x256xf32>, i32 -> vector<8x256xf32>
    %c15_i32 = arith.constant 15 : i32
    %238 = tpu.dynamic_rotate %235 by %c15_i32 dim 1 : vector<8x256xf32>, i32 -> vector<8x256xf32>
    %c1_i32 = arith.constant 1 : i32
    %239 = tpu.dynamic_rotate %235 by %c1_i32 dim 1 : vector<8x256xf32>, i32 -> vector<8x256xf32>
    %c255_i32 = arith.constant 255 : i32
    %240 = tpu.dynamic_rotate %235 by %c255_i32 dim 1 : vector<8x256xf32>, i32 -> vector<8x256xf32>
    %c241_i32 = arith.constant 241 : i32
    %241 = tpu.dynamic_rotate %235 by %c241_i32 dim 1 : vector<8x256xf32>, i32 -> vector<8x256xf32>
    %c240_i32 = arith.constant 240 : i32
    %242 = tpu.dynamic_rotate %235 by %c240_i32 dim 1 : vector<8x256xf32>, i32 -> vector<8x256xf32>
    %c239_i32 = arith.constant 239 : i32
    %243 = tpu.dynamic_rotate %235 by %c239_i32 dim 1 : vector<8x256xf32>, i32 -> vector<8x256xf32>
    %244 = tpu.concatenate %236, %237, %238, %239, %235, %240, %241, %242, %243 in 0 : vector<8x256xf32>, vector<8x256xf32>, vector<8x256xf32>, vector<8x256xf32>, vector<8x256xf32>, vector<8x256xf32>, vector<8x256xf32>, vector<8x256xf32>, vector<8x256xf32> -> vector<72x256xf32>
    %c0_135 = arith.constant 0 : index
    %c0_136 = arith.constant 0 : index
    %245 = vector.load %arg16[%c0_135, %c0_136] : memref<72x256xf32, #tpu.memory_space<vmem>>, vector<72x256xf32>
    %246 = arith.mulf %244, %245 : vector<72x256xf32>
    %c0_137 = arith.constant 0 : index
    %c0_138 = arith.constant 0 : index
    %247 = vector.load %arg15[%c0_137, %c0_138] : memref<8x72xf32, #tpu.memory_space<vmem>>, vector<8x72xf32>
    %cst_139 = arith.constant dense<0.000000e+00> : vector<8x256xf32>
    %248 = tpu.matmul %247, %246, %cst_139 {dimension_numbers = #tpu.dot_dimension_numbers<[1], [0], [0], [1], [0, 0, 1, 1], [], []>} : vector<8x72xf32>, vector<72x256xf32>, vector<8x256xf32> -> vector<8x256xf32>
    %cst_140 = arith.constant dense<0.000000e+00> : vector<8xf32>
    %249 = vector.multi_reduction <add>, %248, %cst_140 [1] : vector<8x256xf32> to vector<8xf32>
    %250 = vector.shape_cast %249 : vector<8xf32> to vector<8x1xf32>
    %cst_141 = arith.constant 3.906250e-03 : f32
    %251 = vector.broadcast %cst_141 : f32 to vector<8x1xf32>
    %252 = arith.mulf %250, %251 : vector<8x1xf32>
    %253 = arith.mulf %248, %248 : vector<8x256xf32>
    %cst_142 = arith.constant dense<0.000000e+00> : vector<8xf32>
    %254 = vector.multi_reduction <add>, %253, %cst_142 [1] : vector<8x256xf32> to vector<8xf32>
    %255 = vector.shape_cast %254 : vector<8xf32> to vector<8x1xf32>
    %cst_143 = arith.constant 3.906250e-03 : f32
    %256 = vector.broadcast %cst_143 : f32 to vector<8x1xf32>
    %257 = arith.mulf %255, %256 : vector<8x1xf32>
    %258 = arith.mulf %252, %252 : vector<8x1xf32>
    %259 = arith.subf %257, %258 : vector<8x1xf32>
    %cst_144 = arith.constant 0.000000e+00 : f32
    %260 = vector.broadcast %cst_144 : f32 to vector<8x1xf32>
    %261 = arith.maximumf %259, %260 : vector<8x1xf32>
    %262 = vector.broadcast %252 : vector<8x1xf32> to vector<8x256xf32>
    %263 = arith.subf %248, %262 : vector<8x256xf32>
    %cst_145 = arith.constant 9.99999974E-6 : f32
    %264 = vector.broadcast %cst_145 : f32 to vector<8x1xf32>
    %265 = arith.addf %261, %264 : vector<8x1xf32>
    %266 = math.rsqrt %265 : vector<8x1xf32>
    %267 = vector.broadcast %266 : vector<8x1xf32> to vector<8x256xf32>
    %268 = arith.mulf %263, %267 : vector<8x256xf32>
    %c0_146 = arith.constant 0 : index
    %c0_147 = arith.constant 0 : index
    %269 = vector.load %arg17[%c0_146, %c0_147] : memref<8x1xf32, #tpu.memory_space<vmem>>, vector<8x1xf32>
    %270 = vector.broadcast %269 : vector<8x1xf32> to vector<8x256xf32>
    %271 = arith.mulf %268, %270 : vector<8x256xf32>
    %c0_148 = arith.constant 0 : index
    %c0_149 = arith.constant 0 : index
    %272 = vector.load %arg18[%c0_148, %c0_149] : memref<8x1xf32, #tpu.memory_space<vmem>>, vector<8x1xf32>
    %273 = vector.broadcast %272 : vector<8x1xf32> to vector<8x256xf32>
    %274 = arith.addf %271, %273 : vector<8x256xf32>
    %cst_150 = arith.constant 0.000000e+00 : f32
    %275 = vector.broadcast %cst_150 : f32 to vector<8x256xf32>
    %276 = arith.cmpf ogt, %274, %275 : vector<8x256xf32>
    %cst_151 = arith.constant 0.00999999977 : f32
    %277 = vector.broadcast %cst_151 : f32 to vector<8x256xf32>
    %278 = arith.mulf %277, %274 : vector<8x256xf32>
    %279 = arith.select %276, %274, %278 : vector<8x256xi1>, vector<8x256xf32>
    %c17_i32_152 = arith.constant 17 : i32
    %280 = tpu.dynamic_rotate %279 by %c17_i32_152 dim 1 : vector<8x256xf32>, i32 -> vector<8x256xf32>
    %c16_i32_153 = arith.constant 16 : i32
    %281 = tpu.dynamic_rotate %279 by %c16_i32_153 dim 1 : vector<8x256xf32>, i32 -> vector<8x256xf32>
    %c15_i32_154 = arith.constant 15 : i32
    %282 = tpu.dynamic_rotate %279 by %c15_i32_154 dim 1 : vector<8x256xf32>, i32 -> vector<8x256xf32>
    %c1_i32_155 = arith.constant 1 : i32
    %283 = tpu.dynamic_rotate %279 by %c1_i32_155 dim 1 : vector<8x256xf32>, i32 -> vector<8x256xf32>
    %c255_i32_156 = arith.constant 255 : i32
    %284 = tpu.dynamic_rotate %279 by %c255_i32_156 dim 1 : vector<8x256xf32>, i32 -> vector<8x256xf32>
    %c241_i32_157 = arith.constant 241 : i32
    %285 = tpu.dynamic_rotate %279 by %c241_i32_157 dim 1 : vector<8x256xf32>, i32 -> vector<8x256xf32>
    %c240_i32_158 = arith.constant 240 : i32
    %286 = tpu.dynamic_rotate %279 by %c240_i32_158 dim 1 : vector<8x256xf32>, i32 -> vector<8x256xf32>
    %c239_i32_159 = arith.constant 239 : i32
    %287 = tpu.dynamic_rotate %279 by %c239_i32_159 dim 1 : vector<8x256xf32>, i32 -> vector<8x256xf32>
    %288 = tpu.concatenate %280, %281, %282, %283, %279, %284, %285, %286, %287 in 0 : vector<8x256xf32>, vector<8x256xf32>, vector<8x256xf32>, vector<8x256xf32>, vector<8x256xf32>, vector<8x256xf32>, vector<8x256xf32>, vector<8x256xf32>, vector<8x256xf32> -> vector<72x256xf32>
    %c0_160 = arith.constant 0 : index
    %c0_161 = arith.constant 0 : index
    %289 = vector.load %arg20[%c0_160, %c0_161] : memref<72x256xf32, #tpu.memory_space<vmem>>, vector<72x256xf32>
    %290 = arith.mulf %288, %289 : vector<72x256xf32>
    %c0_162 = arith.constant 0 : index
    %c0_163 = arith.constant 0 : index
    %291 = vector.load %arg19[%c0_162, %c0_163] : memref<8x72xf32, #tpu.memory_space<vmem>>, vector<8x72xf32>
    %cst_164 = arith.constant dense<0.000000e+00> : vector<8x256xf32>
    %292 = tpu.matmul %291, %290, %cst_164 {dimension_numbers = #tpu.dot_dimension_numbers<[1], [0], [0], [1], [0, 0, 1, 1], [], []>} : vector<8x72xf32>, vector<72x256xf32>, vector<8x256xf32> -> vector<8x256xf32>
    %cst_165 = arith.constant dense<0.000000e+00> : vector<8xf32>
    %293 = vector.multi_reduction <add>, %292, %cst_165 [1] : vector<8x256xf32> to vector<8xf32>
    %294 = vector.shape_cast %293 : vector<8xf32> to vector<8x1xf32>
    %cst_166 = arith.constant 3.906250e-03 : f32
    %295 = vector.broadcast %cst_166 : f32 to vector<8x1xf32>
    %296 = arith.mulf %294, %295 : vector<8x1xf32>
    %297 = arith.mulf %292, %292 : vector<8x256xf32>
    %cst_167 = arith.constant dense<0.000000e+00> : vector<8xf32>
    %298 = vector.multi_reduction <add>, %297, %cst_167 [1] : vector<8x256xf32> to vector<8xf32>
    %299 = vector.shape_cast %298 : vector<8xf32> to vector<8x1xf32>
    %cst_168 = arith.constant 3.906250e-03 : f32
    %300 = vector.broadcast %cst_168 : f32 to vector<8x1xf32>
    %301 = arith.mulf %299, %300 : vector<8x1xf32>
    %302 = arith.mulf %296, %296 : vector<8x1xf32>
    %303 = arith.subf %301, %302 : vector<8x1xf32>
    %cst_169 = arith.constant 0.000000e+00 : f32
    %304 = vector.broadcast %cst_169 : f32 to vector<8x1xf32>
    %305 = arith.maximumf %303, %304 : vector<8x1xf32>
    %306 = vector.broadcast %296 : vector<8x1xf32> to vector<8x256xf32>
    %307 = arith.subf %292, %306 : vector<8x256xf32>
    %cst_170 = arith.constant 9.99999974E-6 : f32
    %308 = vector.broadcast %cst_170 : f32 to vector<8x1xf32>
    %309 = arith.addf %305, %308 : vector<8x1xf32>
    %310 = math.rsqrt %309 : vector<8x1xf32>
    %311 = vector.broadcast %310 : vector<8x1xf32> to vector<8x256xf32>
    %312 = arith.mulf %307, %311 : vector<8x256xf32>
    %c0_171 = arith.constant 0 : index
    %c0_172 = arith.constant 0 : index
    %313 = vector.load %arg21[%c0_171, %c0_172] : memref<8x1xf32, #tpu.memory_space<vmem>>, vector<8x1xf32>
    %314 = vector.broadcast %313 : vector<8x1xf32> to vector<8x256xf32>
    %315 = arith.mulf %312, %314 : vector<8x256xf32>
    %c0_173 = arith.constant 0 : index
    %c0_174 = arith.constant 0 : index
    %316 = vector.load %arg22[%c0_173, %c0_174] : memref<8x1xf32, #tpu.memory_space<vmem>>, vector<8x1xf32>
    %317 = vector.broadcast %316 : vector<8x1xf32> to vector<8x256xf32>
    %318 = arith.addf %315, %317 : vector<8x256xf32>
    %319 = math.tanh %318 : vector<8x256xf32>
    %c0_175 = arith.constant 0 : index
    %c0_176 = arith.constant 0 : index
    %c0_177 = arith.constant 0 : index
    %320 = vector.load %arg23[%c0_175, %c0_176, %c0_177] : memref<1x8x256xf32, #tpu.memory_space<vmem>>, vector<1x8x256xf32>
    %321 = vector.shape_cast %320 : vector<1x8x256xf32> to vector<8x256xf32>
    %322 = vector.shape_cast %319 : vector<8x256xf32> to vector<1x8x256xf32>
    tpu.vector_store %arg23[%c0_175, %c0_176, %c0_177], %322 {strides = array<i32>} : memref<1x8x256xf32, #tpu.memory_space<vmem>>, vector<1x8x256xf32>,
    return
  }
  func.func @transform_0(%arg0: i32) -> (i32, i32) {
    %c0_i32 = arith.constant 0 : i32
    %c0_i32_0 = arith.constant 0 : i32
    %c0_i32_1 = arith.constant 0 : i32
    return %c0_i32, %c0_i32_0 : i32, i32
  }
  func.func @transform_1(%arg0: i32) -> (i32, i32) {
    %c0_i32 = arith.constant 0 : i32
    %c0_i32_0 = arith.constant 0 : i32
    %c0_i32_1 = arith.constant 0 : i32
    return %c0_i32, %c0_i32_0 : i32, i32
  }
  func.func @transform_2(%arg0: i32) -> (i32, i32) {
    %c0_i32 = arith.constant 0 : i32
    %c0_i32_0 = arith.constant 0 : i32
    %c0_i32_1 = arith.constant 0 : i32
    return %c0_i32, %c0_i32_0 : i32, i32
  }
  func.func @transform_3(%arg0: i32) -> (i32, i32) {
    %c0_i32 = arith.constant 0 : i32
    %c0_i32_0 = arith.constant 0 : i32
    %c0_i32_1 = arith.constant 0 : i32
    return %c0_i32, %c0_i32_0 : i32, i32
  }
  func.func @transform_4(%arg0: i32) -> (i32, i32, i32) {
    %c0_i32 = arith.constant 0 : i32
    %c0_i32_0 = arith.constant 0 : i32
    %c0_i32_1 = arith.constant 0 : i32
    %c0_i32_2 = arith.constant 0 : i32
    return %c0_i32, %c0_i32_0, %c0_i32_1 : i32, i32, i32
  }
  func.func @transform_5(%arg0: i32) -> (i32, i32) {
    %c0_i32 = arith.constant 0 : i32
    %c0_i32_0 = arith.constant 0 : i32
    %c0_i32_1 = arith.constant 0 : i32
    return %c0_i32, %c0_i32_0 : i32, i32
  }
  func.func @transform_6(%arg0: i32) -> (i32, i32, i32) {
    %c0_i32 = arith.constant 0 : i32
    %c0_i32_0 = arith.constant 0 : i32
    %c0_i32_1 = arith.constant 0 : i32
    %c0_i32_2 = arith.constant 0 : i32
    return %c0_i32, %c0_i32_0, %c0_i32_1 : i32, i32, i32
  }
  func.func @transform_7(%arg0: i32) -> (i32, i32) {
    %c0_i32 = arith.constant 0 : i32
    %c0_i32_0 = arith.constant 0 : i32
    %c0_i32_1 = arith.constant 0 : i32
    return %c0_i32, %c0_i32_0 : i32, i32
  }
  func.func @transform_8(%arg0: i32) -> (i32, i32) {
    %c0_i32 = arith.constant 0 : i32
    %c0_i32_0 = arith.constant 0 : i32
    %c0_i32_1 = arith.constant 0 : i32
    return %c0_i32, %c0_i32_0 : i32, i32
  }
  func.func @transform_9(%arg0: i32) -> (i32, i32) {
    %c0_i32 = arith.constant 0 : i32
    %c0_i32_0 = arith.constant 0 : i32
    %c0_i32_1 = arith.constant 0 : i32
    return %c0_i32, %c0_i32_0 : i32, i32
  }
  func.func @transform_10(%arg0: i32) -> (i32, i32, i32) {
    %c0_i32 = arith.constant 0 : i32
    %c0_i32_0 = arith.constant 0 : i32
    %c0_i32_1 = arith.constant 0 : i32
    %c0_i32_2 = arith.constant 0 : i32
    return %c0_i32, %c0_i32_0, %c0_i32_1 : i32, i32, i32
  }
  func.func @transform_11(%arg0: i32) -> (i32, i32) {
    %c0_i32 = arith.constant 0 : i32
    %c0_i32_0 = arith.constant 0 : i32
    %c0_i32_1 = arith.constant 0 : i32
    return %c0_i32, %c0_i32_0 : i32, i32
  }
  func.func @transform_12(%arg0: i32) -> (i32, i32) {
    %c0_i32 = arith.constant 0 : i32
    %c0_i32_0 = arith.constant 0 : i32
    %c0_i32_1 = arith.constant 0 : i32
    return %c0_i32, %c0_i32_0 : i32, i32
  }
  func.func @transform_13(%arg0: i32) -> (i32, i32) {
    %c0_i32 = arith.constant 0 : i32
    %c0_i32_0 = arith.constant 0 : i32
    %c0_i32_1 = arith.constant 0 : i32
    return %c0_i32, %c0_i32_0 : i32, i32
  }
  func.func @transform_14(%arg0: i32) -> (i32, i32) {
    %c0_i32 = arith.constant 0 : i32
    %c0_i32_0 = arith.constant 0 : i32
    %c0_i32_1 = arith.constant 0 : i32
    return %c0_i32, %c0_i32_0 : i32, i32
  }
  func.func @transform_15(%arg0: i32) -> (i32, i32) {
    %c0_i32 = arith.constant 0 : i32
    %c0_i32_0 = arith.constant 0 : i32
    %c0_i32_1 = arith.constant 0 : i32
    return %c0_i32, %c0_i32_0 : i32, i32
  }
  func.func @transform_16(%arg0: i32) -> (i32, i32) {
    %c0_i32 = arith.constant 0 : i32
    %c0_i32_0 = arith.constant 0 : i32
    %c0_i32_1 = arith.constant 0 : i32
    return %c0_i32, %c0_i32_0 : i32, i32
  }
  func.func @transform_17(%arg0: i32) -> (i32, i32) {
    %c0_i32 = arith.constant 0 : i32
    %c0_i32_0 = arith.constant 0 : i32
    %c0_i32_1 = arith.constant 0 : i32
    return %c0_i32, %c0_i32_0 : i32, i32
  }
  func.func @transform_18(%arg0: i32) -> (i32, i32) {
    %c0_i32 = arith.constant 0 : i32
    %c0_i32_0 = arith.constant 0 : i32
    %c0_i32_1 = arith.constant 0 : i32
    return %c0_i32, %c0_i32_0 : i32, i32
  }
  func.func @transform_19(%arg0: i32) -> (i32, i32) {
    %c0_i32 = arith.constant 0 : i32
    %c0_i32_0 = arith.constant 0 : i32
    %c0_i32_1 = arith.constant 0 : i32
    return %c0_i32, %c0_i32_0 : i32, i32
  }
  func.func @transform_20(%arg0: i32) -> (i32, i32) {
    %c0_i32 = arith.constant 0 : i32
    %c0_i32_0 = arith.constant 0 : i32
    %c0_i32_1 = arith.constant 0 : i32
    return %c0_i32, %c0_i32_0 : i32, i32
  }
  func.func @transform_21(%arg0: i32) -> (i32, i32) {
    %c0_i32 = arith.constant 0 : i32
    %c0_i32_0 = arith.constant 0 : i32
    %c0_i32_1 = arith.constant 0 : i32
    return %c0_i32, %c0_i32_0 : i32, i32
  }
  func.func @transform_22(%arg0: i32) -> (i32, i32, i32) {
    %c0_i32 = arith.constant 0 : i32
    %c0_i32_0 = arith.constant 0 : i32
    %c0_i32_1 = arith.constant 0 : i32
    return %arg0, %c0_i32, %c0_i32_0 : i32, i32, i32
  }
}

</mosaic_0001>

<llo_original>
// kernel: tpu_custom_call.1
$region0: #{tpu_custom_call.1}
  #allocation0 [shape = 'u32[]', space=smem, size = 0x4, offset = 0x4, fixed_abs, tag = 'smem constant byte address 0x4 - core index']
  #allocation1 [shape = 'u32[144,128]{1,0:T(1,128)}', space=vmem, size = 0x12000, scoped, tag = 'internal scratch']
  %s0 = inlined_call_operand.vmem [shape: f32[16,2], index: 0, kind: input, shape index: {}]
  %s1 = inlined_call_operand.vmem [shape: f32[64,16], index: 1, kind: input, shape index: {}]
  %s2 = inlined_call_operand.vmem [shape: f32[64,1], index: 2, kind: input, shape index: {}]
  %s3 = inlined_call_operand.vmem [shape: f32[288,64], index: 3, kind: input, shape index: {}]
  %s4 = inlined_call_operand.vmem [shape: f32[9,1,4], index: 4, kind: input, shape index: {}]
  %s5 = inlined_call_operand.vmem [shape: f32[144,32], index: 5, kind: input, shape index: {}]
  %s6 = inlined_call_operand.vmem [shape: f32[9,4,16], index: 6, kind: input, shape index: {}]
  %s7 = inlined_call_operand.vmem [shape: f32[16,1], index: 7, kind: input, shape index: {}]
  %s8 = inlined_call_operand.vmem [shape: f32[16,1], index: 8, kind: input, shape index: {}]
  %s9 = inlined_call_operand.vmem [shape: f32[72,16], index: 9, kind: input, shape index: {}]
  %s10 = inlined_call_operand.vmem [shape: f32[9,16,64], index: 10, kind: input, shape index: {}]
  %s11 = inlined_call_operand.vmem [shape: f32[8,1], index: 11, kind: input, shape index: {}]
  %s12 = inlined_call_operand.vmem [shape: f32[8,1], index: 12, kind: input, shape index: {}]
  %s13 = inlined_call_operand.vmem [shape: f32[64,256], index: 13, kind: input, shape index: {}]
  %s14 = inlined_call_operand.vmem [shape: f32[8,72], index: 14, kind: input, shape index: {}]
  %s15 = inlined_call_operand.vmem [shape: f32[72,256], index: 15, kind: input, shape index: {}]
  %s16 = inlined_call_operand.vmem [shape: f32[8,1], index: 16, kind: input, shape index: {}]
  %s17 = inlined_call_operand.vmem [shape: f32[8,1], index: 17, kind: input, shape index: {}]
  %s18 = inlined_call_operand.vmem [shape: f32[8,72], index: 18, kind: input, shape index: {}]
  %s19 = inlined_call_operand.vmem [shape: f32[72,256], index: 19, kind: input, shape index: {}]
  %s20 = inlined_call_operand.vmem [shape: f32[8,1], index: 20, kind: input, shape index: {}]
  %s21 = inlined_call_operand.vmem [shape: f32[8,1], index: 21, kind: input, shape index: {}]
  %s22 = inlined_call_operand.hbm [shape: f32[2,8,256], index: 22, kind: output, shape index: {}]
  %s23 = sld [smem:[#allocation0]]
  $region121: #{tpu_custom_call.1} parent=0
    _
  %s25 = ssub.s32 1, %s23
  %s26 = scalar_select 0, %s25, %s23
  $region1: #{tpu_custom_call.1} parent=0
    #allocation2 [shape = 'u8[16384]{0}', space=vmem, size = 0x4000, scoped, tag = 'output window, operand 0']
    #allocation3 [shape = 's32[2]{0}', space=sflag, size = 0x8, scoped, tag = 'scoped memory for tpu_custom_call.1']
    %27 = vsyncpa [#allocation3], 0
    %s28 = scalar_lea.sflag [#allocation3], 1
    %29 = vsyncpa %s28, 0
    loop: start=0, step=1, limit=4
    $region2: #{tpu_custom_call.1} parent=1 // loop_pre_header
      _
    $region3: #{tpu_custom_call.1} parent=1 // loop_header
      %s31 = sphi 0, %s35
      %p32 = scmp.ge.s32.totalorder %s31, 4
      %s39 = sphi 0, %s39
      %s41 = sphi 0, %s39
      %s42 = sphi 0, %s41
      %s56 = sphi 0, %s42
      %s60 = sphi 0, %s60
      %s62 = sphi 0, %s60
      %s63 = sphi 0, %s62
      %s77 = sphi 0, %s63
      %s81 = sphi 0, %s81
      %s83 = sphi 0, %s81
      %s84 = sphi 0, %s83
      %s98 = sphi 0, %s84
      %s102 = sphi 0, %s102
      %s104 = sphi 0, %s102
      %s105 = sphi 0, %s104
      %s119 = sphi 0, %s105
      %s123 = sphi 0, %s123
      %s125 = sphi 0, %s123
      %s126 = sphi 0, %s125
      %s140 = sphi 0, %s126
      %s144 = sphi 0, %s144
      %s146 = sphi 0, %s144
      %s147 = sphi 0, %s146
      %s161 = sphi 0, %s147
      %s165 = sphi 0, %s165
      %s167 = sphi 0, %s165
      %s168 = sphi 0, %s167
      %s182 = sphi 0, %s168
      %s186 = sphi 0, %s186
      %s188 = sphi 0, %s186
      %s189 = sphi 0, %s188
      %s203 = sphi 0, %s189
      %s207 = sphi 0, %s207
      %s209 = sphi 0, %s207
      %s210 = sphi 0, %s209
      %s224 = sphi 0, %s210
      %s228 = sphi 0, %s228
      %s230 = sphi 0, %s228
      %s231 = sphi 0, %s230
      %s245 = sphi 0, %s231
      %s249 = sphi 0, %s249
      %s251 = sphi 0, %s249
      %s252 = sphi 0, %s251
      %s266 = sphi 0, %s252
      %s270 = sphi 0, %s270
      %s272 = sphi 0, %s270
      %s273 = sphi 0, %s272
      %s287 = sphi 0, %s273
      %s291 = sphi 0, %s291
      %s293 = sphi 0, %s291
      %s294 = sphi 0, %s293
      %s308 = sphi 0, %s294
      %s312 = sphi 0, %s312
      %s314 = sphi 0, %s312
      %s315 = sphi 0, %s314
      %s329 = sphi 0, %s315
      %s333 = sphi 0, %s333
      %s335 = sphi 0, %s333
      %s336 = sphi 0, %s335
      %s350 = sphi 0, %s336
      %s354 = sphi 0, %s354
      %s356 = sphi 0, %s354
      %s357 = sphi 0, %s356
      %s371 = sphi 0, %s357
      %s375 = sphi 0, %s375
      %s377 = sphi 0, %s375
      %s378 = sphi 0, %s377
      %s392 = sphi 0, %s378
      %s396 = sphi 0, %s396
      %s398 = sphi 0, %s396
      %s399 = sphi 0, %s398
      %s413 = sphi 0, %s399
      %s417 = sphi 0, %s417
      %s419 = sphi 0, %s417
      %s420 = sphi 0, %s419
      %s434 = sphi 0, %s420
      %s438 = sphi 0, %s438
      %s440 = sphi 0, %s438
      %s441 = sphi 0, %s440
      %s455 = sphi 0, %s441
      %s459 = sphi 0, %s459
      %s461 = sphi 0, %s459
      %s462 = sphi 0, %s461
      %s476 = sphi 0, %s462
      %s480 = sphi 0, %s480
      %s482 = sphi 0, %s480
      %s483 = sphi 0, %s482
      %s497 = sphi 0, %s483
      %s503 = sphi 0, %s505
      %s506 = sphi 0, %s503
      %s507 = sphi 0, %s506
      %s523 = sphi 0, %s507
    $region4: #{tpu_custom_call.1} parent=1 // loop_header_branch
      %34 = sbr.rel (%p32) target = $region8
    $region5: #{tpu_custom_call.1} parent=1 // loop_body
      %s36 = ssub.s32 %s31, 1
      %s37 = ssub.s32 %s31, 2
      %s38 = sadd.s32 %s31, 1
      %s40 = sadd.s32 %s39, 1
      %p43 = scmp.eq.s32.totalorder %s31, 1
      %p44 = scmp.ne.s32.totalorder %s39, %s41
      %p45 = scmp.eq.s32.totalorder %s31, 0
      %p46 = por %p44, %p45
      %p47 = scmp.ne.s32.totalorder %s39, %s41
      %p48 = scmp.eq.s32.totalorder %s36, 1
      %p49 = por %p47, %p48
      %p50 = scmp.ne.s32.totalorder %s41, %s42
      %p51 = scmp.eq.s32.totalorder %s36, 0
      %p52 = por %p50, %p51
      %p53 = scmp.ne.s32.totalorder %s41, %s42
      %p54 = scmp.eq.s32.totalorder %s37, 1
      %p55 = por %p53, %p54
      %p57 = scmp.ne.s32.totalorder %s42, %s56
      %p58 = scmp.eq.s32.totalorder %s37, 0
      %p59 = por %p57, %p58
      %s61 = sadd.s32 %s60, 1
      %p64 = scmp.eq.s32.totalorder %s31, 1
      %p65 = scmp.ne.s32.totalorder %s60, %s62
      %p66 = scmp.eq.s32.totalorder %s31, 0
      %p67 = por %p65, %p66
      %p68 = scmp.ne.s32.totalorder %s60, %s62
      %p69 = scmp.eq.s32.totalorder %s36, 1
      %p70 = por %p68, %p69
      %p71 = scmp.ne.s32.totalorder %s62, %s63
      %p72 = scmp.eq.s32.totalorder %s36, 0
      %p73 = por %p71, %p72
      %p74 = scmp.ne.s32.totalorder %s62, %s63
      %p75 = scmp.eq.s32.totalorder %s37, 1
      %p76 = por %p74, %p75
      %p78 = scmp.ne.s32.totalorder %s63, %s77
      %p79 = scmp.eq.s32.totalorder %s37, 0
      %p80 = por %p78, %p79
      %s82 = sadd.s32 %s81, 1
      %p85 = scmp.eq.s32.totalorder %s31, 1
      %p86 = scmp.ne.s32.totalorder %s81, %s83
      %p87 = scmp.eq.s32.totalorder %s31, 0
      %p88 = por %p86, %p87
      %p89 = scmp.ne.s32.totalorder %s81, %s83
      %p90 = scmp.eq.s32.totalorder %s36, 1
      %p91 = por %p89, %p90
      %p92 = scmp.ne.s32.totalorder %s83, %s84
      %p93 = scmp.eq.s32.totalorder %s36, 0
      %p94 = por %p92, %p93
      %p95 = scmp.ne.s32.totalorder %s83, %s84
      %p96 = scmp.eq.s32.totalorder %s37, 1
      %p97 = por %p95, %p96
      %p99 = scmp.ne.s32.totalorder %s84, %s98
      %p100 = scmp.eq.s32.totalorder %s37, 0
      %p101 = por %p99, %p100
      %s103 = sadd.s32 %s102, 1
      %p106 = scmp.eq.s32.totalorder %s31, 1
      %p107 = scmp.ne.s32.totalorder %s102, %s104
      %p108 = scmp.eq.s32.totalorder %s31, 0
      %p109 = por %p107, %p108
      %p110 = scmp.ne.s32.totalorder %s102, %s104
      %p111 = scmp.eq.s32.totalorder %s36, 1
      %p112 = por %p110, %p111
      %p113 = scmp.ne.s32.totalorder %s104, %s105
      %p114 = scmp.eq.s32.totalorder %s36, 0
      %p115 = por %p113, %p114
      %p116 = scmp.ne.s32.totalorder %s104, %s105
      %p117 = scmp.eq.s32.totalorder %s37, 1
      %p118 = por %p116, %p117
      %p120 = scmp.ne.s32.totalorder %s105, %s119
      %p121 = scmp.eq.s32.totalorder %s37, 0
      %p122 = por %p120, %p121
      %s124 = sadd.s32 %s123, 1
      %p127 = scmp.eq.s32.totalorder %s31, 1
      %p128 = scmp.ne.s32.totalorder %s123, %s125
      %p129 = scmp.eq.s32.totalorder %s31, 0
      %p130 = por %p128, %p129
      %p131 = scmp.ne.s32.totalorder %s123, %s125
      %p132 = scmp.eq.s32.totalorder %s36, 1
      %p133 = por %p131, %p132
      %p134 = scmp.ne.s32.totalorder %s125, %s126
      %p135 = scmp.eq.s32.totalorder %s36, 0
      %p136 = por %p134, %p135
      %p137 = scmp.ne.s32.totalorder %s125, %s126
      %p138 = scmp.eq.s32.totalorder %s37, 1
      %p139 = por %p137, %p138
      %p141 = scmp.ne.s32.totalorder %s126, %s140
      %p142 = scmp.eq.s32.totalorder %s37, 0
      %p143 = por %p141, %p142
      %s145 = sadd.s32 %s144, 1
      %p148 = scmp.eq.s32.totalorder %s31, 1
      %p149 = scmp.ne.s32.totalorder %s144, %s146
      %p150 = scmp.eq.s32.totalorder %s31, 0
      %p151 = por %p149, %p150
      %p152 = scmp.ne.s32.totalorder %s144, %s146
      %p153 = scmp.eq.s32.totalorder %s36, 1
      %p154 = por %p152, %p153
      %p155 = scmp.ne.s32.totalorder %s146, %s147
      %p156 = scmp.eq.s32.totalorder %s36, 0
      %p157 = por %p155, %p156
      %p158 = scmp.ne.s32.totalorder %s146, %s147
      %p159 = scmp.eq.s32.totalorder %s37, 1
      %p160 = por %p158, %p159
      %p162 = scmp.ne.s32.totalorder %s147, %s161
      %p163 = scmp.eq.s32.totalorder %s37, 0
      %p164 = por %p162, %p163
      %s166 = sadd.s32 %s165, 1
      %p169 = scmp.eq.s32.totalorder %s31, 1
      %p170 = scmp.ne.s32.totalorder %s165, %s167
      %p171 = scmp.eq.s32.totalorder %s31, 0
      %p172 = por %p170, %p171
      %p173 = scmp.ne.s32.totalorder %s165, %s167
      %p174 = scmp.eq.s32.totalorder %s36, 1
      %p175 = por %p173, %p174
      %p176 = scmp.ne.s32.totalorder %s167, %s168
      %p177 = scmp.eq.s32.totalorder %s36, 0
      %p178 = por %p176, %p177
      %p179 = scmp.ne.s32.totalorder %s167, %s168
      %p180 = scmp.eq.s32.totalorder %s37, 1
      %p181 = por %p179, %p180
      %p183 = scmp.ne.s32.totalorder %s168, %s182
      %p184 = scmp.eq.s32.totalorder %s37, 0
      %p185 = por %p183, %p184
      %s187 = sadd.s32 %s186, 1
      %p190 = scmp.eq.s32.totalorder %s31, 1
      %p191 = scmp.ne.s32.totalorder %s186, %s188
      %p192 = scmp.eq.s32.totalorder %s31, 0
      %p193 = por %p191, %p192
      %p194 = scmp.ne.s32.totalorder %s186, %s188
      %p195 = scmp.eq.s32.totalorder %s36, 1
      %p196 = por %p194, %p195
      %p197 = scmp.ne.s32.totalorder %s188, %s189
      %p198 = scmp.eq.s32.totalorder %s36, 0
      %p199 = por %p197, %p198
      %p200 = scmp.ne.s32.totalorder %s188, %s189
      %p201 = scmp.eq.s32.totalorder %s37, 1
      %p202 = por %p200, %p201
      %p204 = scmp.ne.s32.totalorder %s189, %s203
      %p205 = scmp.eq.s32.totalorder %s37, 0
      %p206 = por %p204, %p205
      %s208 = sadd.s32 %s207, 1
      %p211 = scmp.eq.s32.totalorder %s31, 1
      %p212 = scmp.ne.s32.totalorder %s207, %s209
      %p213 = scmp.eq.s32.totalorder %s31, 0
      %p214 = por %p212, %p213
      %p215 = scmp.ne.s32.totalorder %s207, %s209
      %p216 = scmp.eq.s32.totalorder %s36, 1
      %p217 = por %p215, %p216
      %p218 = scmp.ne.s32.totalorder %s209, %s210
      %p219 = scmp.eq.s32.totalorder %s36, 0
      %p220 = por %p218, %p219
      %p221 = scmp.ne.s32.totalorder %s209, %s210
      %p222 = scmp.eq.s32.totalorder %s37, 1
      %p223 = por %p221, %p222
      %p225 = scmp.ne.s32.totalorder %s210, %s224
      %p226 = scmp.eq.s32.totalorder %s37, 0
      %p227 = por %p225, %p226
      %s229 = sadd.s32 %s228, 1
      %p232 = scmp.eq.s32.totalorder %s31, 1
      %p233 = scmp.ne.s32.totalorder %s228, %s230
      %p234 = scmp.eq.s32.totalorder %s31, 0
      %p235 = por %p233, %p234
      %p236 = scmp.ne.s32.totalorder %s228, %s230
      %p237 = scmp.eq.s32.totalorder %s36, 1
      %p238 = por %p236, %p237
      %p239 = scmp.ne.s32.totalorder %s230, %s231
      %p240 = scmp.eq.s32.totalorder %s36, 0
      %p241 = por %p239, %p240
      %p242 = scmp.ne.s32.totalorder %s230, %s231
      %p243 = scmp.eq.s32.totalorder %s37, 1
      %p244 = por %p242, %p243
      %p246 = scmp.ne.s32.totalorder %s231, %s245
      %p247 = scmp.eq.s32.totalorder %s37, 0
      %p248 = por %p246, %p247
      %s250 = sadd.s32 %s249, 1
      %p253 = scmp.eq.s32.totalorder %s31, 1
      %p254 = scmp.ne.s32.totalorder %s249, %s251
      %p255 = scmp.eq.s32.totalorder %s31, 0
      %p256 = por %p254, %p255
      %p257 = scmp.ne.s32.totalorder %s249, %s251
      %p258 = scmp.eq.s32.totalorder %s36, 1
      %p259 = por %p257, %p258
      %p260 = scmp.ne.s32.totalorder %s251, %s252
      %p261 = scmp.eq.s32.totalorder %s36, 0
      %p262 = por %p260, %p261
      %p263 = scmp.ne.s32.totalorder %s251, %s252
      %p264 = scmp.eq.s32.totalorder %s37, 1
      %p265 = por %p263, %p264
      %p267 = scmp.ne.s32.totalorder %s252, %s266
      %p268 = scmp.eq.s32.totalorder %s37, 0
      %p269 = por %p267, %p268
      %s271 = sadd.s32 %s270, 1
      %p274 = scmp.eq.s32.totalorder %s31, 1
      %p275 = scmp.ne.s32.totalorder %s270, %s272
      %p276 = scmp.eq.s32.totalorder %s31, 0
      %p277 = por %p275, %p276
      %p278 = scmp.ne.s32.totalorder %s270, %s272
      %p279 = scmp.eq.s32.totalorder %s36, 1
      %p280 = por %p278, %p279
      %p281 = scmp.ne.s32.totalorder %s272, %s273
      %p282 = scmp.eq.s32.totalorder %s36, 0
      %p283 = por %p281, %p282
      %p284 = scmp.ne.s32.totalorder %s272, %s273
      %p285 = scmp.eq.s32.totalorder %s37, 1
      %p286 = por %p284, %p285
      %p288 = scmp.ne.s32.totalorder %s273, %s287
      %p289 = scmp.eq.s32.totalorder %s37, 0
      %p290 = por %p288, %p289
      %s292 = sadd.s32 %s291, 1
      %p295 = scmp.eq.s32.totalorder %s31, 1
      %p296 = scmp.ne.s32.totalorder %s291, %s293
      %p297 = scmp.eq.s32.totalorder %s31, 0
      %p298 = por %p296, %p297
      %p299 = scmp.ne.s32.totalorder %s291, %s293
      %p300 = scmp.eq.s32.totalorder %s36, 1
      %p301 = por %p299, %p300
      %p302 = scmp.ne.s32.totalorder %s293, %s294
      %p303 = scmp.eq.s32.totalorder %s36, 0
      %p304 = por %p302, %p303
      %p305 = scmp.ne.s32.totalorder %s293, %s294
      %p306 = scmp.eq.s32.totalorder %s37, 1
      %p307 = por %p305, %p306
      %p309 = scmp.ne.s32.totalorder %s294, %s308
      %p310 = scmp.eq.s32.totalorder %s37, 0
      %p311 = por %p309, %p310
      %s313 = sadd.s32 %s312, 1
      %p316 = scmp.eq.s32.totalorder %s31, 1
      %p317 = scmp.ne.s32.totalorder %s312, %s314
      %p318 = scmp.eq.s32.totalorder %s31, 0
      %p319 = por %p317, %p318
      %p320 = scmp.ne.s32.totalorder %s312, %s314
      %p321 = scmp.eq.s32.totalorder %s36, 1
      %p322 = por %p320, %p321
      %p323 = scmp.ne.s32.totalorder %s314, %s315
      %p324 = scmp.eq.s32.totalorder %s36, 0
      %p325 = por %p323, %p324
      %p326 = scmp.ne.s32.totalorder %s314, %s315
      %p327 = scmp.eq.s32.totalorder %s37, 1
      %p328 = por %p326, %p327
      %p330 = scmp.ne.s32.totalorder %s315, %s329
      %p331 = scmp.eq.s32.totalorder %s37, 0
      %p332 = por %p330, %p331
      %s334 = sadd.s32 %s333, 1
      %p337 = scmp.eq.s32.totalorder %s31, 1
      %p338 = scmp.ne.s32.totalorder %s333, %s335
      %p339 = scmp.eq.s32.totalorder %s31, 0
      %p340 = por %p338, %p339
      %p341 = scmp.ne.s32.totalorder %s333, %s335
      %p342 = scmp.eq.s32.totalorder %s36, 1
      %p343 = por %p341, %p342
      %p344 = scmp.ne.s32.totalorder %s335, %s336
      %p345 = scmp.eq.s32.totalorder %s36, 0
      %p346 = por %p344, %p345
      %p347 = scmp.ne.s32.totalorder %s335, %s336
      %p348 = scmp.eq.s32.totalorder %s37, 1
      %p349 = por %p347, %p348
      %p351 = scmp.ne.s32.totalorder %s336, %s350
      %p352 = scmp.eq.s32.totalorder %s37, 0
      %p353 = por %p351, %p352
      %s355 = sadd.s32 %s354, 1
      %p358 = scmp.eq.s32.totalorder %s31, 1
      %p359 = scmp.ne.s32.totalorder %s354, %s356
      %p360 = scmp.eq.s32.totalorder %s31, 0
      %p361 = por %p359, %p360
      %p362 = scmp.ne.s32.totalorder %s354, %s356
      %p363 = scmp.eq.s32.totalorder %s36, 1
      %p364 = por %p362, %p363
      %p365 = scmp.ne.s32.totalorder %s356, %s357
      %p366 = scmp.eq.s32.totalorder %s36, 0
      %p367 = por %p365, %p366
      %p368 = scmp.ne.s32.totalorder %s356, %s357
      %p369 = scmp.eq.s32.totalorder %s37, 1
      %p370 = por %p368, %p369
      %p372 = scmp.ne.s32.totalorder %s357, %s371
      %p373 = scmp.eq.s32.totalorder %s37, 0
      %p374 = por %p372, %p373
      %s376 = sadd.s32 %s375, 1
      %p379 = scmp.eq.s32.totalorder %s31, 1
      %p380 = scmp.ne.s32.totalorder %s375, %s377
      %p381 = scmp.eq.s32.totalorder %s31, 0
      %p382 = por %p380, %p381
      %p383 = scmp.ne.s32.totalorder %s375, %s377
      %p384 = scmp.eq.s32.totalorder %s36, 1
      %p385 = por %p383, %p384
      %p386 = scmp.ne.s32.totalorder %s377, %s378
      %p387 = scmp.eq.s32.totalorder %s36, 0
      %p388 = por %p386, %p387
      %p389 = scmp.ne.s32.totalorder %s377, %s378
      %p390 = scmp.eq.s32.totalorder %s37, 1
      %p391 = por %p389, %p390
      %p393 = scmp.ne.s32.totalorder %s378, %s392
      %p394 = scmp.eq.s32.totalorder %s37, 0
      %p395 = por %p393, %p394
      %s397 = sadd.s32 %s396, 1
      %p400 = scmp.eq.s32.totalorder %s31, 1
      %p401 = scmp.ne.s32.totalorder %s396, %s398
      %p402 = scmp.eq.s32.totalorder %s31, 0
      %p403 = por %p401, %p402
      %p404 = scmp.ne.s32.totalorder %s396, %s398
      %p405 = scmp.eq.s32.totalorder %s36, 1
      %p406 = por %p404, %p405
      %p407 = scmp.ne.s32.totalorder %s398, %s399
      %p408 = scmp.eq.s32.totalorder %s36, 0
      %p409 = por %p407, %p408
      %p410 = scmp.ne.s32.totalorder %s398, %s399
      %p411 = scmp.eq.s32.totalorder %s37, 1
      %p412 = por %p410, %p411
      %p414 = scmp.ne.s32.totalorder %s399, %s413
      %p415 = scmp.eq.s32.totalorder %s37, 0
      %p416 = por %p414, %p415
      %s418 = sadd.s32 %s417, 1
      %p421 = scmp.eq.s32.totalorder %s31, 1
      %p422 = scmp.ne.s32.totalorder %s417, %s419
      %p423 = scmp.eq.s32.totalorder %s31, 0
      %p424 = por %p422, %p423
      %p425 = scmp.ne.s32.totalorder %s417, %s419
      %p426 = scmp.eq.s32.totalorder %s36, 1
      %p427 = por %p425, %p426
      %p428 = scmp.ne.s32.totalorder %s419, %s420
      %p429 = scmp.eq.s32.totalorder %s36, 0
      %p430 = por %p428, %p429
      %p431 = scmp.ne.s32.totalorder %s419, %s420
      %p432 = scmp.eq.s32.totalorder %s37, 1
      %p433 = por %p431, %p432
      %p435 = scmp.ne.s32.totalorder %s420, %s434
      %p436 = scmp.eq.s32.totalorder %s37, 0
      %p437 = por %p435, %p436
      %s439 = sadd.s32 %s438, 1
      %p442 = scmp.eq.s32.totalorder %s31, 1
      %p443 = scmp.ne.s32.totalorder %s438, %s440
      %p444 = scmp.eq.s32.totalorder %s31, 0
      %p445 = por %p443, %p444
      %p446 = scmp.ne.s32.totalorder %s438, %s440
      %p447 = scmp.eq.s32.totalorder %s36, 1
      %p448 = por %p446, %p447
      %p449 = scmp.ne.s32.totalorder %s440, %s441
      %p450 = scmp.eq.s32.totalorder %s36, 0
      %p451 = por %p449, %p450
      %p452 = scmp.ne.s32.totalorder %s440, %s441
      %p453 = scmp.eq.s32.totalorder %s37, 1
      %p454 = por %p452, %p453
      %p456 = scmp.ne.s32.totalorder %s441, %s455
      %p457 = scmp.eq.s32.totalorder %s37, 0
      %p458 = por %p456, %p457
      %s460 = sadd.s32 %s459, 1
      %p463 = scmp.eq.s32.totalorder %s31, 1
      %p464 = scmp.ne.s32.totalorder %s459, %s461
      %p465 = scmp.eq.s32.totalorder %s31, 0
      %p466 = por %p464, %p465
      %p467 = scmp.ne.s32.totalorder %s459, %s461
      %p468 = scmp.eq.s32.totalorder %s36, 1
      %p469 = por %p467, %p468
      %p470 = scmp.ne.s32.totalorder %s461, %s462
      %p471 = scmp.eq.s32.totalorder %s36, 0
      %p472 = por %p470, %p471
      %p473 = scmp.ne.s32.totalorder %s461, %s462
      %p474 = scmp.eq.s32.totalorder %s37, 1
      %p475 = por %p473, %p474
      %p477 = scmp.ne.s32.totalorder %s462, %s476
      %p478 = scmp.eq.s32.totalorder %s37, 0
      %p479 = por %p477, %p478
      %s481 = sadd.s32 %s480, 1
      %p484 = scmp.eq.s32.totalorder %s31, 1
      %p485 = scmp.ne.s32.totalorder %s480, %s482
      %p486 = scmp.eq.s32.totalorder %s31, 0
      %p487 = por %p485, %p486
      %p488 = scmp.ne.s32.totalorder %s480, %s482
      %p489 = scmp.eq.s32.totalorder %s36, 1
      %p490 = por %p488, %p489
      %p491 = scmp.ne.s32.totalorder %s482, %s483
      %p492 = scmp.eq.s32.totalorder %s36, 0
      %p493 = por %p491, %p492
      %p494 = scmp.ne.s32.totalorder %s482, %s483
      %p495 = scmp.eq.s32.totalorder %s37, 1
      %p496 = por %p494, %p495
      %p498 = scmp.ne.s32.totalorder %s483, %s497
      %p499 = scmp.eq.s32.totalorder %s37, 0
      %p500 = por %p498, %p499
      %s501 = ssub.s32 %s31, %s38
      %p502 = scmp.eq.s32.totalorder %s501, 0
      %s504 = sadd.s32 %s503, 1
      %s505 = scalar_select %p502, %s503, %s504
      %p508 = pneg %p502
      %p509 = scmp.eq.s32.totalorder %s31, 1
      %p510 = por %p508, %p509
      %p511 = scmp.ne.s32.totalorder %s503, %s506
      %p512 = scmp.eq.s32.totalorder %s31, 0
      %p513 = por %p511, %p512
      %p514 = scmp.ne.s32.totalorder %s503, %s506
      %p515 = scmp.eq.s32.totalorder %s36, 1
      %p516 = por %p514, %p515
      %p517 = scmp.ne.s32.totalorder %s506, %s507
      %p518 = scmp.eq.s32.totalorder %s36, 0
      %p519 = por %p517, %p518
      %p520 = scmp.ne.s32.totalorder %s506, %s507
      %p521 = scmp.eq.s32.totalorder %s37, 1
      %p522 = por %p520, %p521
      %p524 = scmp.ne.s32.totalorder %s507, %s523
      %p525 = scmp.eq.s32.totalorder %s37, 0
      %p526 = por %p524, %p525
      %p527 = scmp.le.s32.totalorder 1, %s31
      %p528 = scmp.lt.s32.totalorder %s31, 3
      %p529 = pnand %p527, %p528
      %p530 = pneg %p529
      // Predicated region
      $region9: #{tpu_custom_call.1} parent=5 // pred_check
        _
      $region10: #{tpu_custom_call.1} parent=5 // pred_check_branch
        %532 = sbr.rel (%p529) target = $region12
      $region11: #{tpu_custom_call.1} parent=5 // pred_region
        %s533 = ssub.s32 %s31, 1
        // Predicated region
        $region13: #{tpu_custom_call.1} parent=11 // pred_check
          %p534 = pneg %p52
        $region14: #{tpu_custom_call.1} parent=11 // pred_check_branch
          %536 = sbr.rel (%p534) target = $region16
        $region15: #{tpu_custom_call.1} parent=11 // pred_region
          _
        $region16: #{tpu_custom_call.1} parent=11 // pred_fallthru
          _
        // Predicated region
        $region17: #{tpu_custom_call.1} parent=11 // pred_check
          %p537 = pneg %p73
        $region18: #{tpu_custom_call.1} parent=11 // pred_check_branch
          %539 = sbr.rel (%p537) target = $region20
        $region19: #{tpu_custom_call.1} parent=11 // pred_region
          _
        $region20: #{tpu_custom_call.1} parent=11 // pred_fallthru
          _
        // Predicated region
        $region21: #{tpu_custom_call.1} parent=11 // pred_check
          %p540 = pneg %p94
        $region22: #{tpu_custom_call.1} parent=11 // pred_check_branch
          %542 = sbr.rel (%p540) target = $region24
        $region23: #{tpu_custom_call.1} parent=11 // pred_region
          _
        $region24: #{tpu_custom_call.1} parent=11 // pred_fallthru
          _
        // Predicated region
        $region25: #{tpu_custom_call.1} parent=11 // pred_check
          %p543 = pneg %p115
        $region26: #{tpu_custom_call.1} parent=11 // pred_check_branch
          %545 = sbr.rel (%p543) target = $region28
        $region27: #{tpu_custom_call.1} parent=11 // pred_region
          _
        $region28: #{tpu_custom_call.1} parent=11 // pred_fallthru
          _
        // Predicated region
        $region29: #{tpu_custom_call.1} parent=11 // pred_check
          %p546 = pneg %p136
        $region30: #{tpu_custom_call.1} parent=11 // pred_check_branch
          %548 = sbr.rel (%p546) target = $region32
        $region31: #{tpu_custom_call.1} parent=11 // pred_region
          _
        $region32: #{tpu_custom_call.1} parent=11 // pred_fallthru
          _
        // Predicated region
        $region33: #{tpu_custom_call.1} parent=11 // pred_check
          %p549 = pneg %p157
        $region34: #{tpu_custom_call.1} parent=11 // pred_check_branch
          %551 = sbr.rel (%p549) target = $region36
        $region35: #{tpu_custom_call.1} parent=11 // pred_region
          _
        $region36: #{tpu_custom_call.1} parent=11 // pred_fallthru
          _
        // Predicated region
        $region37: #{tpu_custom_call.1} parent=11 // pred_check
          %p552 = pneg %p178
        $region38: #{tpu_custom_call.1} parent=11 // pred_check_branch
          %554 = sbr.rel (%p552) target = $region40
        $region39: #{tpu_custom_call.1} parent=11 // pred_region
          _
        $region40: #{tpu_custom_call.1} parent=11 // pred_fallthru
          _
        // Predicated region
        $region41: #{tpu_custom_call.1} parent=11 // pred_check
          %p555 = pneg %p199
        $region42: #{tpu_custom_call.1} parent=11 // pred_check_branch
          %557 = sbr.rel (%p555) target = $region44
        $region43: #{tpu_custom_call.1} parent=11 // pred_region
          _
        $region44: #{tpu_custom_call.1} parent=11 // pred_fallthru
          _
        // Predicated region
        $region45: #{tpu_custom_call.1} parent=11 // pred_check
          %p558 = pneg %p220
        $region46: #{tpu_custom_call.1} parent=11 // pred_check_branch
          %560 = sbr.rel (%p558) target = $region48
        $region47: #{tpu_custom_call.1} parent=11 // pred_region
          _
        $region48: #{tpu_custom_call.1} parent=11 // pred_fallthru
          _
        // Predicated region
        $region49: #{tpu_custom_call.1} parent=11 // pred_check
          %p561 = pneg %p241
        $region50: #{tpu_custom_call.1} parent=11 // pred_check_branch
          %563 = sbr.rel (%p561) target = $region52
        $region51: #{tpu_custom_call.1} parent=11 // pred_region
          _
        $region52: #{tpu_custom_call.1} parent=11 // pred_fallthru
          _
        // Predicated region
        $region53: #{tpu_custom_call.1} parent=11 // pred_check
          %p564 = pneg %p262
        $region54: #{tpu_custom_call.1} parent=11 // pred_check_branch
          %566 = sbr.rel (%p564) target = $region56
        $region55: #{tpu_custom_call.1} parent=11 // pred_region
          _
        $region56: #{tpu_custom_call.1} parent=11 // pred_fallthru
          _
        // Predicated region
        $region57: #{tpu_custom_call.1} parent=11 // pred_check
          %p567 = pneg %p283
        $region58: #{tpu_custom_call.1} parent=11 // pred_check_branch
          %569 = sbr.rel (%p567) target = $region60
        $region59: #{tpu_custom_call.1} parent=11 // pred_region
          _
        $region60: #{tpu_custom_call.1} parent=11 // pred_fallthru
          _
        // Predicated region
        $region61: #{tpu_custom_call.1} parent=11 // pred_check
          %p570 = pneg %p304
        $region62: #{tpu_custom_call.1} parent=11 // pred_check_branch
          %572 = sbr.rel (%p570) target = $region64
        $region63: #{tpu_custom_call.1} parent=11 // pred_region
          _
        $region64: #{tpu_custom_call.1} parent=11 // pred_fallthru
          _
        // Predicated region
        $region65: #{tpu_custom_call.1} parent=11 // pred_check
          %p573 = pneg %p325
        $region66: #{tpu_custom_call.1} parent=11 // pred_check_branch
          %575 = sbr.rel (%p573) target = $region68
        $region67: #{tpu_custom_call.1} parent=11 // pred_region
          _
        $region68: #{tpu_custom_call.1} parent=11 // pred_fallthru
          _
        // Predicated region
        $region69: #{tpu_custom_call.1} parent=11 // pred_check
          %p576 = pneg %p346
        $region70: #{tpu_custom_call.1} parent=11 // pred_check_branch
          %578 = sbr.rel (%p576) target = $region72
        $region71: #{tpu_custom_call.1} parent=11 // pred_region
          _
        $region72: #{tpu_custom_call.1} parent=11 // pred_fallthru
          _
        // Predicated region
        $region73: #{tpu_custom_call.1} parent=11 // pred_check
          %p579 = pneg %p367
        $region74: #{tpu_custom_call.1} parent=11 // pred_check_branch
          %581 = sbr.rel (%p579) target = $region76
        $region75: #{tpu_custom_call.1} parent=11 // pred_region
          _
        $region76: #{tpu_custom_call.1} parent=11 // pred_fallthru
          _
        // Predicated region
        $region77: #{tpu_custom_call.1} parent=11 // pred_check
          %p582 = pneg %p388
        $region78: #{tpu_custom_call.1} parent=11 // pred_check_branch
          %584 = sbr.rel (%p582) target = $region80
        $region79: #{tpu_custom_call.1} parent=11 // pred_region
          _
        $region80: #{tpu_custom_call.1} parent=11 // pred_fallthru
          _
        // Predicated region
        $region81: #{tpu_custom_call.1} parent=11 // pred_check
          %p585 = pneg %p409
        $region82: #{tpu_custom_call.1} parent=11 // pred_check_branch
          %587 = sbr.rel (%p585) target = $region84
        $region83: #{tpu_custom_call.1} parent=11 // pred_region
          _
        $region84: #{tpu_custom_call.1} parent=11 // pred_fallthru
          _
        // Predicated region
        $region85: #{tpu_custom_call.1} parent=11 // pred_check
          %p588 = pneg %p430
        $region86: #{tpu_custom_call.1} parent=11 // pred_check_branch
          %590 = sbr.rel (%p588) target = $region88
        $region87: #{tpu_custom_call.1} parent=11 // pred_region
          _
        $region88: #{tpu_custom_call.1} parent=11 // pred_fallthru
          _
        // Predicated region
        $region89: #{tpu_custom_call.1} parent=11 // pred_check
          %p591 = pneg %p451
        $region90: #{tpu_custom_call.1} parent=11 // pred_check_branch
          %593 = sbr.rel (%p591) target = $region92
        $region91: #{tpu_custom_call.1} parent=11 // pred_region
          _
        $region92: #{tpu_custom_call.1} parent=11 // pred_fallthru
          _
        // Predicated region
        $region93: #{tpu_custom_call.1} parent=11 // pred_check
          %p594 = pneg %p472
        $region94: #{tpu_custom_call.1} parent=11 // pred_check_branch
          %596 = sbr.rel (%p594) target = $region96
        $region95: #{tpu_custom_call.1} parent=11 // pred_region
          _
        $region96: #{tpu_custom_call.1} parent=11 // pred_fallthru
          _
        // Predicated region
        $region97: #{tpu_custom_call.1} parent=11 // pred_check
          %p597 = pneg %p493
        $region98: #{tpu_custom_call.1} parent=11 // pred_check_branch
          %599 = sbr.rel (%p597) target = $region100
        $region99: #{tpu_custom_call.1} parent=11 // pred_region
          _
        $region100: #{tpu_custom_call.1} parent=11 // pred_fallthru
          _
      $region12: #{tpu_custom_call.1} parent=5 // pred_fallthru
        _
      %p600 = scmp.lt.s32.totalorder %s31, 2
      // Predicated region
      $region101: #{tpu_custom_call.1} parent=5 // pred_check
        %p601 = pneg %p600
      $region102: #{tpu_custom_call.1} parent=5 // pred_check_branch
        %603 = sbr.rel (%p601) target = $region104
      $region103: #{tpu_custom_call.1} parent=5 // pred_region
        _
      $region104: #{tpu_custom_call.1} parent=5 // pred_fallthru
        _
      %p604 = scmp.le.s32.totalorder 1, %s31
      %p605 = scmp.lt.s32.totalorder %s31, 3
      %p606 = pnand %p604, %p605
      %p607 = pneg %p606
      // Predicated region
      $region105: #{tpu_custom_call.1} parent=5 // pred_check
        _
      $region106: #{tpu_custom_call.1} parent=5 // pred_check_branch
        %609 = sbr.rel (%p606) target = $region108
      $region107: #{tpu_custom_call.1} parent=5 // pred_region
        %s610 = ssub.s32 %s31, 1
        %p611 = pneg %p52
        %p612 = pneg %p49
        %p613 = pneg %p73
        %p614 = pneg %p70
        %p615 = pneg %p94
        %p616 = pneg %p91
        %p617 = pneg %p115
        %p618 = pneg %p112
        %p619 = pneg %p136
        %p620 = pneg %p133
        %p621 = pneg %p157
        %p622 = pneg %p154
        %p623 = pneg %p178
        %p624 = pneg %p175
        %p625 = pneg %p199
        %p626 = pneg %p196
        %p627 = pneg %p220
        %p628 = pneg %p217
        %p629 = pneg %p241
        %p630 = pneg %p238
        %p631 = pneg %p262
        %p632 = pneg %p259
        %p633 = pneg %p283
        %p634 = pneg %p280
        %p635 = pneg %p304
        %p636 = pneg %p301
        %p637 = pneg %p325
        %p638 = pneg %p322
        %p639 = pneg %p346
        %p640 = pneg %p343
        %p641 = pneg %p367
        %p642 = pneg %p364
        %p643 = pneg %p388
        %p644 = pneg %p385
        %p645 = pneg %p409
        %p646 = pneg %p406
        %p647 = pneg %p430
        %p648 = pneg %p427
        %p649 = pneg %p451
        %p650 = pneg %p448
        %p651 = pneg %p472
        %p652 = pneg %p469
        %p653 = pneg %p493
        %p654 = pneg %p490
        %p655 = pneg %p519
        %p656 = pneg %p516
        %s657 = sand.u32 %s506, 1
        %s658 = scalar_lea.sflag [#allocation3], %s657
        %s659 = sand.u32 %s506, 1
        %s660 = smul.addr %s659, 16
        %s661 = scalar_lea.vmem [#allocation2], %s660
        %v662 = vlaneseq
        %v663 = vshrl.u32 %v662, 7
        %v664 = vstv %s36
        %vm665 = vcmp.eq.s32.totalorder %v663, %v664
        %v666 = vsel %vm665, 1, 0
        %v667 = vcvt.s32.f32 %v666
        %v668 = vld [vmem:[%s0] sm:$0xff]
        %v669 = vld [vmem:[%s0 + $0x8] sm:$0xff]
        %vm670 = vcmask 15360
        %v672 = vsel %vm670, %v668, 0
        %v675 = vsel %vm670, %v669, 0
        %vm677 = vcmask 1041408
        %v679 = vsel %vm677, %v667, 0
        %681 = vmatprep.subr.mxu0 0.0
        %682 = vmatpush1.msra.mxu0 %v679
        %683 = vmatprep.subr.mxu0 0.0
        %684 = vmatpush1.msra.mxu0 0.0
        %685 = vmatprep.subr.mxu0 0.0
        %686 = vmatpush1.msra.mxu0 0.0
        %687 = vmatprep.subr.mxu0 0.0
        %688 = vmatpush1.msra.mxu0 0.0
        %689 = vmatprep.subr.mxu0 0.0
        %690 = vmatpush1.msra.mxu0 0.0
        %691 = vmatprep.subr.mxu0 0.0
        %692 = vmatpush1.msra.mxu0 0.0
        %693 = vmatprep.subr.mxu0 0.0
        %694 = vmatpush1.msra.mxu0 0.0
        %695 = vmatprep.subr.mxu0 0.0
        %696 = vmatpush1.msra.mxu0 0.0
        %697 = vmatprep.subr.mxu0 0.0
        %698 = vmatpush1.msra.mxu0 0.0
        %699 = vmatprep.subr.mxu0 0.0
        %700 = vmatpush1.msra.mxu0 0.0
        %701 = vmatprep.subr.mxu0 0.0
        %702 = vmatpush1.msra.mxu0 0.0
        %703 = vmatprep.subr.mxu0 0.0
        %704 = vmatpush1.msra.mxu0 0.0
        %705 = vmatprep.subr.mxu0 0.0
        %706 = vmatpush1.msra.mxu0 0.0
        %707 = vmatprep.subr.mxu0 0.0
        %708 = vmatpush1.msra.mxu0 0.0
        %709 = vmatprep.subr.mxu0 0.0
        %710 = vmatpush1.msra.mxu0 0.0
        %711 = vmatprep.subr.mxu0 0.0
        %712 = vmatpush1.msra.mxu0 0.0
        %713 = vmatprep.subr.mxu0 0.0
        %714 = vmatpush1.msra.mxu0 0.0
        %715 = vmatprep.subr.mxu0 0.0
        %716 = vmatpush1.msra.mxu0 0.0
        %717 = vmatprep.subr.mxu0 0.0
        %718 = vmatpush1.msra.mxu0 0.0
        %719 = vmatprep.subr.mxu0 0.0
        %720 = vmatpush1.msra.mxu0 0.0
        %721 = vmatprep.subr.mxu0 0.0
        %722 = vmatpush1.msra.mxu0 0.0
        %723 = vmatprep.subr.mxu0 0.0
        %724 = vmatpush1.msra.mxu0 0.0
        %725 = vmatprep.subr.mxu0 0.0
        %726 = vmatpush1.msra.mxu0 0.0
        %727 = vmatprep.subr.mxu0 0.0
        %728 = vmatpush1.msra.mxu0 0.0
        %729 = vmatprep.subr.mxu0 0.0
        %730 = vmatpush1.msra.mxu0 0.0
        %731 = vmatprep.subr.mxu0 0.0
        %732 = vmatpush1.msra.mxu0 0.0
        %733 = vmatprep.subr.mxu0 0.0
        %734 = vmatpush1.msra.mxu0 0.0
        %735 = vmatprep.subr.mxu0 0.0
        %736 = vmatpush1.msra.mxu0 0.0
        %737 = vmatprep.subr.mxu0 0.0
        %738 = vmatpush1.msra.mxu0 0.0
        %739 = vmatprep.subr.mxu0 0.0
        %740 = vmatpush1.msra.mxu0 0.0
        %741 = vmatprep.subr.mxu0 0.0
        %742 = vmatpush1.msra.mxu0 0.0
        %743 = vmatprep.subr.mxu0 0.0
        %744 = vmatpush1.msra.mxu0 0.0
        %745 = vmatprep.mubr.f32.mxu0 0.0
        %746 = vmatmul.mubr.f32.gmra.mrb[0].mxu0 %v672
        %v747 = vpop.f32.mrb[0].mxu0
        %v748 = vadd.f32 0.0, %v747
        %v749 = vpop.f32.mrb[0].mxu0
        %750 = vmatprep.mubr.f32.mxu0 0.0
        %751 = vmatmul.mubr.f32.gmra.mrb[0].mxu0 %v675
        %v752 = vpop.f32.mrb[0].mxu0
        %v753 = vadd.f32 0.0, %v752
        %v754 = vpop.f32.mrb[0].mxu0
        %755 = vdwg.mxu0
        %v756 = vld [vmem:[%s1] sm:$0xff]
        %v757 = vld [vmem:[%s1 + $0x8] sm:$0xff]
        %v758 = vld [vmem:[%s1 + $0x10] sm:$0xff]
        %v759 = vld [vmem:[%s1 + $0x18] sm:$0xff]
        %v760 = vld [vmem:[%s1 + $0x20] sm:$0xff]
        %v761 = vld [vmem:[%s1 + $0x28] sm:$0xff]
        %v762 = vld [vmem:[%s1 + $0x30] sm:$0xff]
        %v763 = vld [vmem:[%s1 + $0x38] sm:$0xff]
        %v764 = vld [vmem:[%s2] sm:$0xff]
        %v765 = vld [vmem:[%s2 + $0x8] sm:$0xff]
        %v766 = vld [vmem:[%s2 + $0x10] sm:$0xff]
        %v767 = vld [vmem:[%s2 + $0x18] sm:$0xff]
        %v768 = vld [vmem:[%s2 + $0x20] sm:$0xff]
        %v769 = vld [vmem:[%s2 + $0x28] sm:$0xff]
        %v770 = vld [vmem:[%s2 + $0x30] sm:$0xff]
        %v771 = vld [vmem:[%s2 + $0x38] sm:$0xff]
        %vm772 = vcmask 130048
        %v774 = vsel %vm772, %v756, 0
        %v777 = vsel %vm772, %v757, 0
        %v780 = vsel %vm772, %v758, 0
        %v783 = vsel %vm772, %v759, 0
        %v786 = vsel %vm772, %v760, 0
        %v789 = vsel %vm772, %v761, 0
        %v792 = vsel %vm772, %v762, 0
        %v795 = vsel %vm772, %v763, 0
        %797 = vmatprep.subr.mxu0 0.0
        %798 = vmatpush1.msra.mxu0 %v748
        %799 = vmatprep.subr.mxu0 0.0
        %800 = vmatpush1.msra.mxu0 %v753
        %801 = vmatprep.subr.mxu0 0.0
        %802 = vmatpush1.msra.mxu0 0.0
        %803 = vmatprep.subr.mxu0 0.0
        %804 = vmatpush1.msra.mxu0 0.0
        %805 = vmatprep.subr.mxu0 0.0
        %806 = vmatpush1.msra.mxu0 0.0
        %807 = vmatprep.subr.mxu0 0.0
        %808 = vmatpush1.msra.mxu0 0.0
        %809 = vmatprep.subr.mxu0 0.0
        %810 = vmatpush1.msra.mxu0 0.0
        %811 = vmatprep.subr.mxu0 0.0
        %812 = vmatpush1.msra.mxu0 0.0
        %813 = vmatprep.subr.mxu0 0.0
        %814 = vmatpush1.msra.mxu0 0.0
        %815 = vmatprep.subr.mxu0 0.0
        %816 = vmatpush1.msra.mxu0 0.0
        %817 = vmatprep.subr.mxu0 0.0
        %818 = vmatpush1.msra.mxu0 0.0
        %819 = vmatprep.subr.mxu0 0.0
        %820 = vmatpush1.msra.mxu0 0.0
        %821 = vmatprep.subr.mxu0 0.0
        %822 = vmatpush1.msra.mxu0 0.0
        %823 = vmatprep.subr.mxu0 0.0
        %824 = vmatpush1.msra.mxu0 0.0
        %825 = vmatprep.subr.mxu0 0.0
        %826 = vmatpush1.msra.mxu0 0.0
        %827 = vmatprep.subr.mxu0 0.0
        %828 = vmatpush1.msra.mxu0 0.0
        %829 = vmatprep.subr.mxu0 0.0
        %830 = vmatpush1.msra.mxu0 0.0
        %831 = vmatprep.subr.mxu0 0.0
        %832 = vmatpush1.msra.mxu0 0.0
        %833 = vmatprep.subr.mxu0 0.0
        %834 = vmatpush1.msra.mxu0 0.0
        %835 = vmatprep.subr.mxu0 0.0
        %836 = vmatpush1.msra.mxu0 0.0
        %837 = vmatprep.subr.mxu0 0.0
        %838 = vmatpush1.msra.mxu0 0.0
        %839 = vmatprep.subr.mxu0 0.0
        %840 = vmatpush1.msra.mxu0 0.0
        %841 = vmatprep.subr.mxu0 0.0
        %842 = vmatpush1.msra.mxu0 0.0
        %843 = vmatprep.subr.mxu0 0.0
        %844 = vmatpush1.msra.mxu0 0.0
        %845 = vmatprep.subr.mxu0 0.0
        %846 = vmatpush1.msra.mxu0 0.0
        %847 = vmatprep.subr.mxu0 0.0
        %848 = vmatpush1.msra.mxu0 0.0
        %849 = vmatprep.subr.mxu0 0.0
        %850 = vmatpush1.msra.mxu0 0.0
        %851 = vmatprep.subr.mxu0 0.0
        %852 = vmatpush1.msra.mxu0 0.0
        %853 = vmatprep.subr.mxu0 0.0
        %854 = vmatpush1.msra.mxu0 0.0
        %855 = vmatprep.subr.mxu0 0.0
        %856 = vmatpush1.msra.mxu0 0.0
        %857 = vmatprep.subr.mxu0 0.0
        %858 = vmatpush1.msra.mxu0 0.0
        %859 = vmatprep.subr.mxu0 0.0
        %860 = vmatpush1.msra.mxu0 0.0
        %861 = vmatprep.mubr.f32.mxu0 0.0
        %862 = vmatmul.mubr.f32.gmra.mrb[0].mxu0 %v774
        %v863 = vpop.f32.mrb[0].mxu0
        %v864 = vadd.f32 %v764, %v863
        %v865 = vpop.f32.mrb[0].mxu0
        %866 = vmatprep.mubr.f32.mxu0 0.0
        %867 = vmatmul.mubr.f32.gmra.mrb[0].mxu0 %v777
        %v868 = vpop.f32.mrb[0].mxu0
        %v869 = vadd.f32 %v765, %v868
        %v870 = vpop.f32.mrb[0].mxu0
        %871 = vmatprep.mubr.f32.mxu0 0.0
        %872 = vmatmul.mubr.f32.gmra.mrb[0].mxu0 %v780
        %v873 = vpop.f32.mrb[0].mxu0
        %v874 = vadd.f32 %v766, %v873
        %v875 = vpop.f32.mrb[0].mxu0
        %876 = vmatprep.mubr.f32.mxu0 0.0
        %877 = vmatmul.mubr.f32.gmra.mrb[0].mxu0 %v783
        %v878 = vpop.f32.mrb[0].mxu0
        %v879 = vadd.f32 %v767, %v878
        %v880 = vpop.f32.mrb[0].mxu0
        %881 = vmatprep.mubr.f32.mxu0 0.0
        %882 = vmatmul.mubr.f32.gmra.mrb[0].mxu0 %v786
        %v883 = vpop.f32.mrb[0].mxu0
        %v884 = vadd.f32 %v768, %v883
        %v885 = vpop.f32.mrb[0].mxu0
        %886 = vmatprep.mubr.f32.mxu0 0.0
        %887 = vmatmul.mubr.f32.gmra.mrb[0].mxu0 %v789
        %v888 = vpop.f32.mrb[0].mxu0
        %v889 = vadd.f32 %v769, %v888
        %v890 = vpop.f32.mrb[0].mxu0
        %891 = vmatprep.mubr.f32.mxu0 0.0
        %892 = vmatmul.mubr.f32.gmra.mrb[0].mxu0 %v792
        %v893 = vpop.f32.mrb[0].mxu0
        %v894 = vadd.f32 %v770, %v893
        %v895 = vpop.f32.mrb[0].mxu0
        %896 = vmatprep.mubr.f32.mxu0 0.0
        %897 = vmatmul.mubr.f32.gmra.mrb[0].mxu0 %v795
        %v898 = vpop.f32.mrb[0].mxu0
        %v899 = vadd.f32 %v771, %v898
        %v900 = vpop.f32.mrb[0].mxu0
        %901 = vdwg.mxu0
        %v902 = vld [vmem:[%s3] sm:$0xff]
        %v903 = vld [vmem:[%s3 + $0x8] sm:$0xff]
        %v904 = vld [vmem:[%s3 + $0x10] sm:$0xff]
        %v905 = vld [vmem:[%s3 + $0x18] sm:$0xff]
        %v906 = vld [vmem:[%s3 + $0x20] sm:$0xff]
        %v907 = vld [vmem:[%s3 + $0x28] sm:$0xff]
        %v908 = vld [vmem:[%s3 + $0x30] sm:$0xff]
        %v909 = vld [vmem:[%s3 + $0x38] sm:$0xff]
        %v910 = vld [vmem:[%s3 + $0x40] sm:$0xff]
        %v911 = vld [vmem:[%s3 + $0x48] sm:$0xff]
        %v912 = vld [vmem:[%s3 + $0x50] sm:$0xff]
        %v913 = vld [vmem:[%s3 + $0x58] sm:$0xff]
        %v914 = vld [vmem:[%s3 + $0x60] sm:$0xff]
        %v915 = vld [vmem:[%s3 + $0x68] sm:$0xff]
        %v916 = vld [vmem:[%s3 + $0x70] sm:$0xff]
        %v917 = vld [vmem:[%s3 + $0x78] sm:$0xff]
        %v918 = vld [vmem:[%s3 + $0x80] sm:$0xff]
        %v919 = vld [vmem:[%s3 + $0x88] sm:$0xff]
        %v920 = vld [vmem:[%s3 + $0x90] sm:$0xff]
        %v921 = vld [vmem:[%s3 + $0x98] sm:$0xff]
        %v922 = vld [vmem:[%s3 + $0xa0] sm:$0xff]
        %v923 = vld [vmem:[%s3 + $0xa8] sm:$0xff]
        %v924 = vld [vmem:[%s3 + $0xb0] sm:$0xff]
        %v925 = vld [vmem:[%s3 + $0xb8] sm:$0xff]
        %v926 = vld [vmem:[%s3 + $0xc0] sm:$0xff]
        %v927 = vld [vmem:[%s3 + $0xc8] sm:$0xff]
        %v928 = vld [vmem:[%s3 + $0xd0] sm:$0xff]
        %v929 = vld [vmem:[%s3 + $0xd8] sm:$0xff]
        %v930 = vld [vmem:[%s3 + $0xe0] sm:$0xff]
        %v931 = vld [vmem:[%s3 + $0xe8] sm:$0xff]
        %v932 = vld [vmem:[%s3 + $0xf0] sm:$0xff]
        %v933 = vld [vmem:[%s3 + $0xf8] sm:$0xff]
        %v934 = vld [vmem:[%s3 + $0x100] sm:$0xff]
        %v935 = vld [vmem:[%s3 + $0x108] sm:$0xff]
        %v936 = vld [vmem:[%s3 + $0x110] sm:$0xff]
        %v937 = vld [vmem:[%s3 + $0x118] sm:$0xff]
        %vm938 = vcmask 523264
        %v940 = vsel %vm938, %v902, 0
        %v943 = vsel %vm938, %v903, 0
        %v946 = vsel %vm938, %v904, 0
        %v949 = vsel %vm938, %v905, 0
        %v952 = vsel %vm938, %v906, 0
        %v955 = vsel %vm938, %v907, 0
        %v958 = vsel %vm938, %v908, 0
        %v961 = vsel %vm938, %v909, 0
        %v964 = vsel %vm938, %v910, 0
        %v967 = vsel %vm938, %v911, 0
        %v970 = vsel %vm938, %v912, 0
        %v973 = vsel %vm938, %v913, 0
        %v976 = vsel %vm938, %v914, 0
        %v979 = vsel %vm938, %v915, 0
        %v982 = vsel %vm938, %v916, 0
        %v985 = vsel %vm938, %v917, 0
        %v988 = vsel %vm938, %v918, 0
        %v991 = vsel %vm938, %v919, 0
        %v994 = vsel %vm938, %v920, 0
        %v997 = vsel %vm938, %v921, 0
        %v1000 = vsel %vm938, %v922, 0
        %v1003 = vsel %vm938, %v923, 0
        %v1006 = vsel %vm938, %v924, 0
        %v1009 = vsel %vm938, %v925, 0
        %v1012 = vsel %vm938, %v926, 0
        %v1015 = vsel %vm938, %v927, 0
        %v1018 = vsel %vm938, %v928, 0
        %v1021 = vsel %vm938, %v929, 0
        %v1024 = vsel %vm938, %v930, 0
        %v1027 = vsel %vm938, %v931, 0
        %v1030 = vsel %vm938, %v932, 0
        %v1033 = vsel %vm938, %v933, 0
        %v1036 = vsel %vm938, %v934, 0
        %v1039 = vsel %vm938, %v935, 0
        %v1042 = vsel %vm938, %v936, 0
        %v1045 = vsel %vm938, %v937, 0
        %1047 = vmatprep.subr.mxu0 0.0
        %1048 = vmatpush1.msra.mxu0 %v864
        %1049 = vmatprep.subr.mxu0 0.0
        %1050 = vmatpush1.msra.mxu0 %v869
        %1051 = vmatprep.subr.mxu0 0.0
        %1052 = vmatpush1.msra.mxu0 %v874
        %1053 = vmatprep.subr.mxu0 0.0
        %1054 = vmatpush1.msra.mxu0 %v879
        %1055 = vmatprep.subr.mxu0 0.0
        %1056 = vmatpush1.msra.mxu0 %v884
        %1057 = vmatprep.subr.mxu0 0.0
        %1058 = vmatpush1.msra.mxu0 %v889
        %1059 = vmatprep.subr.mxu0 0.0
        %1060 = vmatpush1.msra.mxu0 %v894
        %1061 = vmatprep.subr.mxu0 0.0
        %1062 = vmatpush1.msra.mxu0 %v899
        %1063 = vmatprep.subr.mxu0 0.0
        %1064 = vmatpush1.msra.mxu0 0.0
        %1065 = vmatprep.subr.mxu0 0.0
        %1066 = vmatpush1.msra.mxu0 0.0
        %1067 = vmatprep.subr.mxu0 0.0
        %1068 = vmatpush1.msra.mxu0 0.0
        %1069 = vmatprep.subr.mxu0 0.0
        %1070 = vmatpush1.msra.mxu0 0.0
        %1071 = vmatprep.subr.mxu0 0.0
        %1072 = vmatpush1.msra.mxu0 0.0
        %1073 = vmatprep.subr.mxu0 0.0
        %1074 = vmatpush1.msra.mxu0 0.0
        %1075 = vmatprep.subr.mxu0 0.0
        %1076 = vmatpush1.msra.mxu0 0.0
        %1077 = vmatprep.subr.mxu0 0.0
        %1078 = vmatpush1.msra.mxu0 0.0
        %1079 = vmatprep.subr.mxu0 0.0
        %1080 = vmatpush1.msra.mxu0 0.0
        %1081 = vmatprep.subr.mxu0 0.0
        %1082 = vmatpush1.msra.mxu0 0.0
        %1083 = vmatprep.subr.mxu0 0.0
        %1084 = vmatpush1.msra.mxu0 0.0
        %1085 = vmatprep.subr.mxu0 0.0
        %1086 = vmatpush1.msra.mxu0 0.0
        %1087 = vmatprep.subr.mxu0 0.0
        %1088 = vmatpush1.msra.mxu0 0.0
        %1089 = vmatprep.subr.mxu0 0.0
        %1090 = vmatpush1.msra.mxu0 0.0
        %1091 = vmatprep.subr.mxu0 0.0
        %1092 = vmatpush1.msra.mxu0 0.0
        %1093 = vmatprep.subr.mxu0 0.0
        %1094 = vmatpush1.msra.mxu0 0.0
        %1095 = vmatprep.subr.mxu0 0.0
        %1096 = vmatpush1.msra.mxu0 0.0
        %1097 = vmatprep.subr.mxu0 0.0
        %1098 = vmatpush1.msra.mxu0 0.0
        %1099 = vmatprep.subr.mxu0 0.0
        %1100 = vmatpush1.msra.mxu0 0.0
        %1101 = vmatprep.subr.mxu0 0.0
        %1102 = vmatpush1.msra.mxu0 0.0
        %1103 = vmatprep.subr.mxu0 0.0
        %1104 = vmatpush1.msra.mxu0 0.0
        %1105 = vmatprep.subr.mxu0 0.0
        %1106 = vmatpush1.msra.mxu0 0.0
        %1107 = vmatprep.subr.mxu0 0.0
        %1108 = vmatpush1.msra.mxu0 0.0
        %1109 = vmatprep.subr.mxu0 0.0
        %1110 = vmatpush1.msra.mxu0 0.0
        %1111 = vmatprep.mubr.f32.mxu0 0.0
        %1112 = vmatmul.mubr.f32.gmra.mrb[0].mxu0 %v940
        %v1113 = vpop.f32.mrb[0].mxu0
        %v1114 = vadd.f32 0.0, %v1113
        %v1115 = vpop.f32.mrb[0].mxu0
        %1116 = vmatprep.mubr.f32.mxu0 0.0
        %1117 = vmatmul.mubr.f32.gmra.mrb[0].mxu0 %v943
        %v1118 = vpop.f32.mrb[0].mxu0
        %v1119 = vadd.f32 0.0, %v1118
        %v1120 = vpop.f32.mrb[0].mxu0
        %1121 = vmatprep.mubr.f32.mxu0 0.0
        %1122 = vmatmul.mubr.f32.gmra.mrb[0].mxu0 %v946
        %v1123 = vpop.f32.mrb[0].mxu0
        %v1124 = vadd.f32 0.0, %v1123
        %v1125 = vpop.f32.mrb[0].mxu0
        %1126 = vmatprep.mubr.f32.mxu0 0.0
        %1127 = vmatmul.mubr.f32.gmra.mrb[0].mxu0 %v949
        %v1128 = vpop.f32.mrb[0].mxu0
        %v1129 = vadd.f32 0.0, %v1128
        %v1130 = vpop.f32.mrb[0].mxu0
        %1131 = vmatprep.mubr.f32.mxu0 0.0
        %1132 = vmatmul.mubr.f32.gmra.mrb[0].mxu0 %v952
        %v1133 = vpop.f32.mrb[0].mxu0
        %v1134 = vadd.f32 0.0, %v1133
        %v1135 = vpop.f32.mrb[0].mxu0
        %1136 = vmatprep.mubr.f32.mxu0 0.0
        %1137 = vmatmul.mubr.f32.gmra.mrb[0].mxu0 %v955
        %v1138 = vpop.f32.mrb[0].mxu0
        %v1139 = vadd.f32 0.0, %v1138
        %v1140 = vpop.f32.mrb[0].mxu0
        %1141 = vmatprep.mubr.f32.mxu0 0.0
        %1142 = vmatmul.mubr.f32.gmra.mrb[0].mxu0 %v958
        %v1143 = vpop.f32.mrb[0].mxu0
        %v1144 = vadd.f32 0.0, %v1143
        %v1145 = vpop.f32.mrb[0].mxu0
        %1146 = vmatprep.mubr.f32.mxu0 0.0
        %1147 = vmatmul.mubr.f32.gmra.mrb[0].mxu0 %v961
        %v1148 = vpop.f32.mrb[0].mxu0
        %v1149 = vadd.f32 0.0, %v1148
        %v1150 = vpop.f32.mrb[0].mxu0
        %1151 = vmatprep.mubr.f32.mxu0 0.0
        %1152 = vmatmul.mubr.f32.gmra.mrb[0].mxu0 %v964
        %v1153 = vpop.f32.mrb[0].mxu0
        %v1154 = vadd.f32 0.0, %v1153
        %v1155 = vpop.f32.mrb[0].mxu0
        %1156 = vmatprep.mubr.f32.mxu0 0.0
        %1157 = vmatmul.mubr.f32.gmra.mrb[0].mxu0 %v967
        %v1158 = vpop.f32.mrb[0].mxu0
        %v1159 = vadd.f32 0.0, %v1158
        %v1160 = vpop.f32.mrb[0].mxu0
        %1161 = vmatprep.mubr.f32.mxu0 0.0
        %1162 = vmatmul.mubr.f32.gmra.mrb[0].mxu0 %v970
        %v1163 = vpop.f32.mrb[0].mxu0
        %v1164 = vadd.f32 0.0, %v1163
        %v1165 = vpop.f32.mrb[0].mxu0
        %1166 = vmatprep.mubr.f32.mxu0 0.0
        %1167 = vmatmul.mubr.f32.gmra.mrb[0].mxu0 %v973
        %v1168 = vpop.f32.mrb[0].mxu0
        %v1169 = vadd.f32 0.0, %v1168
        %v1170 = vpop.f32.mrb[0].mxu0
        %1171 = vmatprep.mubr.f32.mxu0 0.0
        %1172 = vmatmul.mubr.f32.gmra.mrb[0].mxu0 %v976
        %v1173 = vpop.f32.mrb[0].mxu0
        %v1174 = vadd.f32 0.0, %v1173
        %v1175 = vpop.f32.mrb[0].mxu0
        %1176 = vmatprep.mubr.f32.mxu0 0.0
        %1177 = vmatmul.mubr.f32.gmra.mrb[0].mxu0 %v979
        %v1178 = vpop.f32.mrb[0].mxu0
        %v1179 = vadd.f32 0.0, %v1178
        %v1180 = vpop.f32.mrb[0].mxu0
        %1181 = vmatprep.mubr.f32.mxu0 0.0
        %1182 = vmatmul.mubr.f32.gmra.mrb[0].mxu0 %v982
        %v1183 = vpop.f32.mrb[0].mxu0
        %v1184 = vadd.f32 0.0, %v1183
        %v1185 = vpop.f32.mrb[0].mxu0
        %1186 = vmatprep.mubr.f32.mxu0 0.0
        %1187 = vmatmul.mubr.f32.gmra.mrb[0].mxu0 %v985
        %v1188 = vpop.f32.mrb[0].mxu0
        %v1189 = vadd.f32 0.0, %v1188
        %v1190 = vpop.f32.mrb[0].mxu0
        %1191 = vmatprep.mubr.f32.mxu0 0.0
        %1192 = vmatmul.mubr.f32.gmra.mrb[0].mxu0 %v988
        %v1193 = vpop.f32.mrb[0].mxu0
        %v1194 = vadd.f32 0.0, %v1193
        %v1195 = vpop.f32.mrb[0].mxu0
        %1196 = vmatprep.mubr.f32.mxu0 0.0
        %1197 = vmatmul.mubr.f32.gmra.mrb[0].mxu0 %v991
        %v1198 = vpop.f32.mrb[0].mxu0
        %v1199 = vadd.f32 0.0, %v1198
        %v1200 = vpop.f32.mrb[0].mxu0
        %1201 = vmatprep.mubr.f32.mxu0 0.0
        %1202 = vmatmul.mubr.f32.gmra.mrb[0].mxu0 %v994
        %v1203 = vpop.f32.mrb[0].mxu0
        %v1204 = vadd.f32 0.0, %v1203
        %v1205 = vpop.f32.mrb[0].mxu0
        %1206 = vmatprep.mubr.f32.mxu0 0.0
        %1207 = vmatmul.mubr.f32.gmra.mrb[0].mxu0 %v997
        %v1208 = vpop.f32.mrb[0].mxu0
        %v1209 = vadd.f32 0.0, %v1208
        %v1210 = vpop.f32.mrb[0].mxu0
        %1211 = vmatprep.mubr.f32.mxu0 0.0
        %1212 = vmatmul.mubr.f32.gmra.mrb[0].mxu0 %v1000
        %v1213 = vpop.f32.mrb[0].mxu0
        %v1214 = vadd.f32 0.0, %v1213
        %v1215 = vpop.f32.mrb[0].mxu0
        %1216 = vmatprep.mubr.f32.mxu0 0.0
        %1217 = vmatmul.mubr.f32.gmra.mrb[0].mxu0 %v1003
        %v1218 = vpop.f32.mrb[0].mxu0
        %v1219 = vadd.f32 0.0, %v1218
        %v1220 = vpop.f32.mrb[0].mxu0
        %1221 = vmatprep.mubr.f32.mxu0 0.0
        %1222 = vmatmul.mubr.f32.gmra.mrb[0].mxu0 %v1006
        %v1223 = vpop.f32.mrb[0].mxu0
        %v1224 = vadd.f32 0.0, %v1223
        %v1225 = vpop.f32.mrb[0].mxu0
        %1226 = vmatprep.mubr.f32.mxu0 0.0
        %1227 = vmatmul.mubr.f32.gmra.mrb[0].mxu0 %v1009
        %v1228 = vpop.f32.mrb[0].mxu0
        %v1229 = vadd.f32 0.0, %v1228
        %v1230 = vpop.f32.mrb[0].mxu0
        %1231 = vmatprep.mubr.f32.mxu0 0.0
        %1232 = vmatmul.mubr.f32.gmra.mrb[0].mxu0 %v1012
        %v1233 = vpop.f32.mrb[0].mxu0
        %v1234 = vadd.f32 0.0, %v1233
        %v1235 = vpop.f32.mrb[0].mxu0
        %1236 = vmatprep.mubr.f32.mxu0 0.0
        %1237 = vmatmul.mubr.f32.gmra.mrb[0].mxu0 %v1015
        %v1238 = vpop.f32.mrb[0].mxu0
        %v1239 = vadd.f32 0.0, %v1238
        %v1240 = vpop.f32.mrb[0].mxu0
        %1241 = vmatprep.mubr.f32.mxu0 0.0
        %1242 = vmatmul.mubr.f32.gmra.mrb[0].mxu0 %v1018
        %v1243 = vpop.f32.mrb[0].mxu0
        %v1244 = vadd.f32 0.0, %v1243
        %v1245 = vpop.f32.mrb[0].mxu0
        %1246 = vmatprep.mubr.f32.mxu0 0.0
        %1247 = vmatmul.mubr.f32.gmra.mrb[0].mxu0 %v1021
        %v1248 = vpop.f32.mrb[0].mxu0
        %v1249 = vadd.f32 0.0, %v1248
        %v1250 = vpop.f32.mrb[0].mxu0
        %1251 = vmatprep.mubr.f32.mxu0 0.0
        %1252 = vmatmul.mubr.f32.gmra.mrb[0].mxu0 %v1024
        %v1253 = vpop.f32.mrb[0].mxu0
        %v1254 = vadd.f32 0.0, %v1253
        %v1255 = vpop.f32.mrb[0].mxu0
        %1256 = vmatprep.mubr.f32.mxu0 0.0
        %1257 = vmatmul.mubr.f32.gmra.mrb[0].mxu0 %v1027
        %v1258 = vpop.f32.mrb[0].mxu0
        %v1259 = vadd.f32 0.0, %v1258
        %v1260 = vpop.f32.mrb[0].mxu0
        %1261 = vmatprep.mubr.f32.mxu0 0.0
        %1262 = vmatmul.mubr.f32.gmra.mrb[0].mxu0 %v1030
        %v1263 = vpop.f32.mrb[0].mxu0
        %v1264 = vadd.f32 0.0, %v1263
        %v1265 = vpop.f32.mrb[0].mxu0
        %1266 = vmatprep.mubr.f32.mxu0 0.0
        %1267 = vmatmul.mubr.f32.gmra.mrb[0].mxu0 %v1033
        %v1268 = vpop.f32.mrb[0].mxu0
        %v1269 = vadd.f32 0.0, %v1268
        %v1270 = vpop.f32.mrb[0].mxu0
        %1271 = vmatprep.mubr.f32.mxu0 0.0
        %1272 = vmatmul.mubr.f32.gmra.mrb[0].mxu0 %v1036
        %v1273 = vpop.f32.mrb[0].mxu0
        %v1274 = vadd.f32 0.0, %v1273
        %v1275 = vpop.f32.mrb[0].mxu0
        %1276 = vmatprep.mubr.f32.mxu0 0.0
        %1277 = vmatmul.mubr.f32.gmra.mrb[0].mxu0 %v1039
        %v1278 = vpop.f32.mrb[0].mxu0
        %v1279 = vadd.f32 0.0, %v1278
        %v1280 = vpop.f32.mrb[0].mxu0
        %1281 = vmatprep.mubr.f32.mxu0 0.0
        %1282 = vmatmul.mubr.f32.gmra.mrb[0].mxu0 %v1042
        %v1283 = vpop.f32.mrb[0].mxu0
        %v1284 = vadd.f32 0.0, %v1283
        %v1285 = vpop.f32.mrb[0].mxu0
        %1286 = vmatprep.mubr.f32.mxu0 0.0
        %1287 = vmatmul.mubr.f32.gmra.mrb[0].mxu0 %v1045
        %v1288 = vpop.f32.mrb[0].mxu0
        %v1289 = vadd.f32 0.0, %v1288
        %v1290 = vpop.f32.mrb[0].mxu0
        %1291 = vdwg.mxu0
        %v1292 = vld [vmem:[%s4] sm:$0x1]
        %1294 = vset.pattern.permute.xlu0 0
        %1295 = vperm.xlu0 %1294, %v1114
        %v1296 = vpop.permute.xlu0 %1295
        %1299 = vset.pattern.permute.xlu0 0
        %1300 = vperm.xlu0 %1299, %v1119
        %v1301 = vpop.permute.xlu0 %1300
        %1304 = vset.pattern.permute.xlu0 0
        %1305 = vperm.xlu0 %1304, %v1124
        %v1306 = vpop.permute.xlu0 %1305
        %1309 = vset.pattern.permute.xlu0 0
        %1310 = vperm.xlu0 %1309, %v1129
        %v1311 = vpop.permute.xlu0 %1310
        %v1314 = vlaneseq
        %v1315 = vshrl.u32 %v1314, 7
        %v1316 = vsub.s32 0, %v1315
        %v1317 = vrot.slane %v1292, %v1316
        %v1319 = vmul.f32 %v1296, %v1317
        %v1320 = vmul.f32 %v1301, %v1317
        %v1321 = vmul.f32 %v1306, %v1317
        %v1322 = vmul.f32 %v1311, %v1317
        %s1323 = scalar_lea.vmem %s4, 1
        %v1324 = vld [vmem:[%s1323] sm:$0x1]
        %1326 = vset.pattern.permute.xlu0 0
        %1327 = vperm.xlu0 %1326, %v1134
        %v1328 = vpop.permute.xlu0 %1327
        %1331 = vset.pattern.permute.xlu0 0
        %1332 = vperm.xlu0 %1331, %v1139
        %v1333 = vpop.permute.xlu0 %1332
        %1336 = vset.pattern.permute.xlu0 0
        %1337 = vperm.xlu0 %1336, %v1144
        %v1338 = vpop.permute.xlu0 %1337
        %1341 = vset.pattern.permute.xlu0 0
        %1342 = vperm.xlu0 %1341, %v1149
        %v1343 = vpop.permute.xlu0 %1342
        %v1346 = vlaneseq
        %v1347 = vshrl.u32 %v1346, 7
        %v1348 = vsub.s32 0, %v1347
        %v1349 = vrot.slane %v1324, %v1348
        %v1351 = vmul.f32 %v1328, %v1349
        %v1352 = vmul.f32 %v1333, %v1349
        %v1353 = vmul.f32 %v1338, %v1349
        %v1354 = vmul.f32 %v1343, %v1349
        %v1355 = vadd.f32 %v1319, %v1351
        %v1356 = vadd.f32 %v1320, %v1352
        %v1357 = vadd.f32 %v1321, %v1353
        %v1358 = vadd.f32 %v1322, %v1354
        %s1359 = scalar_lea.vmem %s4, 2
        %v1360 = vld [vmem:[%s1359] sm:$0x1]
        %1362 = vset.pattern.permute.xlu0 0
        %1363 = vperm.xlu0 %1362, %v1154
        %v1364 = vpop.permute.xlu0 %1363
        %1367 = vset.pattern.permute.xlu0 0
        %1368 = vperm.xlu0 %1367, %v1159
        %v1369 = vpop.permute.xlu0 %1368
        %1372 = vset.pattern.permute.xlu0 0
        %1373 = vperm.xlu0 %1372, %v1164
        %v1374 = vpop.permute.xlu0 %1373
        %1377 = vset.pattern.permute.xlu0 0
        %1378 = vperm.xlu0 %1377, %v1169
        %v1379 = vpop.permute.xlu0 %1378
        %v1382 = vlaneseq
        %v1383 = vshrl.u32 %v1382, 7
        %v1384 = vsub.s32 0, %v1383
        %v1385 = vrot.slane %v1360, %v1384
        %v1387 = vmul.f32 %v1364, %v1385
        %v1388 = vmul.f32 %v1369, %v1385
        %v1389 = vmul.f32 %v1374, %v1385
        %v1390 = vmul.f32 %v1379, %v1385
        %v1391 = vadd.f32 %v1355, %v1387
        %v1392 = vadd.f32 %v1356, %v1388
        %v1393 = vadd.f32 %v1357, %v1389
        %v1394 = vadd.f32 %v1358, %v1390
        %s1395 = scalar_lea.vmem %s4, 3
        %v1396 = vld [vmem:[%s1395] sm:$0x1]
        %1398 = vset.pattern.permute.xlu0 0
        %1399 = vperm.xlu0 %1398, %v1174
        %v1400 = vpop.permute.xlu0 %1399
        %1403 = vset.pattern.permute.xlu0 0
        %1404 = vperm.xlu0 %1403, %v1179
        %v1405 = vpop.permute.xlu0 %1404
        %1408 = vset.pattern.permute.xlu0 0
        %1409 = vperm.xlu0 %1408, %v1184
        %v1410 = vpop.permute.xlu0 %1409
        %1413 = vset.pattern.permute.xlu0 0
        %1414 = vperm.xlu0 %1413, %v1189
        %v1415 = vpop.permute.xlu0 %1414
        %v1418 = vlaneseq
        %v1419 = vshrl.u32 %v1418, 7
        %v1420 = vsub.s32 0, %v1419
        %v1421 = vrot.slane %v1396, %v1420
        %v1423 = vmul.f32 %v1400, %v1421
        %v1424 = vmul.f32 %v1405, %v1421
        %v1425 = vmul.f32 %v1410, %v1421
        %v1426 = vmul.f32 %v1415, %v1421
        %v1427 = vadd.f32 %v1391, %v1423
        %v1428 = vadd.f32 %v1392, %v1424
        %v1429 = vadd.f32 %v1393, %v1425
        %v1430 = vadd.f32 %v1394, %v1426
        %s1431 = scalar_lea.vmem %s4, 4
        %v1432 = vld [vmem:[%s1431] sm:$0x1]
        %1434 = vset.pattern.permute.xlu0 0
        %1435 = vperm.xlu0 %1434, %v1194
        %v1436 = vpop.permute.xlu0 %1435
        %1439 = vset.pattern.permute.xlu0 0
        %1440 = vperm.xlu0 %1439, %v1199
        %v1441 = vpop.permute.xlu0 %1440
        %1444 = vset.pattern.permute.xlu0 0
        %1445 = vperm.xlu0 %1444, %v1204
        %v1446 = vpop.permute.xlu0 %1445
        %1449 = vset.pattern.permute.xlu0 0
        %1450 = vperm.xlu0 %1449, %v1209
        %v1451 = vpop.permute.xlu0 %1450
        %v1454 = vlaneseq
        %v1455 = vshrl.u32 %v1454, 7
        %v1456 = vsub.s32 0, %v1455
        %v1457 = vrot.slane %v1432, %v1456
        %v1459 = vmul.f32 %v1436, %v1457
        %v1460 = vmul.f32 %v1441, %v1457
        %v1461 = vmul.f32 %v1446, %v1457
        %v1462 = vmul.f32 %v1451, %v1457
        %v1463 = vadd.f32 %v1427, %v1459
        %v1464 = vadd.f32 %v1428, %v1460
        %v1465 = vadd.f32 %v1429, %v1461
        %v1466 = vadd.f32 %v1430, %v1462
        %s1467 = scalar_lea.vmem %s4, 5
        %v1468 = vld [vmem:[%s1467] sm:$0x1]
        %1470 = vset.pattern.permute.xlu0 0
        %1471 = vperm.xlu0 %1470, %v1214
        %v1472 = vpop.permute.xlu0 %1471
        %1475 = vset.pattern.permute.xlu0 0
        %1476 = vperm.xlu0 %1475, %v1219
        %v1477 = vpop.permute.xlu0 %1476
        %1480 = vset.pattern.permute.xlu0 0
        %1481 = vperm.xlu0 %1480, %v1224
        %v1482 = vpop.permute.xlu0 %1481
        %1485 = vset.pattern.permute.xlu0 0
        %1486 = vperm.xlu0 %1485, %v1229
        %v1487 = vpop.permute.xlu0 %1486
        %v1490 = vlaneseq
        %v1491 = vshrl.u32 %v1490, 7
        %v1492 = vsub.s32 0, %v1491
        %v1493 = vrot.slane %v1468, %v1492
        %v1495 = vmul.f32 %v1472, %v1493
        %v1496 = vmul.f32 %v1477, %v1493
        %v1497 = vmul.f32 %v1482, %v1493
        %v1498 = vmul.f32 %v1487, %v1493
        %v1499 = vadd.f32 %v1463, %v1495
        %v1500 = vadd.f32 %v1464, %v1496
        %v1501 = vadd.f32 %v1465, %v1497
        %v1502 = vadd.f32 %v1466, %v1498
        %s1503 = scalar_lea.vmem %s4, 6
        %v1504 = vld [vmem:[%s1503] sm:$0x1]
        %1506 = vset.pattern.permute.xlu0 0
        %1507 = vperm.xlu0 %1506, %v1234
        %v1508 = vpop.permute.xlu0 %1507
        %1511 = vset.pattern.permute.xlu0 0
        %1512 = vperm.xlu0 %1511, %v1239
        %v1513 = vpop.permute.xlu0 %1512
        %1516 = vset.pattern.permute.xlu0 0
        %1517 = vperm.xlu0 %1516, %v1244
        %v1518 = vpop.permute.xlu0 %1517
        %1521 = vset.pattern.permute.xlu0 0
        %1522 = vperm.xlu0 %1521, %v1249
        %v1523 = vpop.permute.xlu0 %1522
        %v1526 = vlaneseq
        %v1527 = vshrl.u32 %v1526, 7
        %v1528 = vsub.s32 0, %v1527
        %v1529 = vrot.slane %v1504, %v1528
        %v1531 = vmul.f32 %v1508, %v1529
        %v1532 = vmul.f32 %v1513, %v1529
        %v1533 = vmul.f32 %v1518, %v1529
        %v1534 = vmul.f32 %v1523, %v1529
        %v1535 = vadd.f32 %v1499, %v1531
        %v1536 = vadd.f32 %v1500, %v1532
        %v1537 = vadd.f32 %v1501, %v1533
        %v1538 = vadd.f32 %v1502, %v1534
        %s1539 = scalar_lea.vmem %s4, 7
        %v1540 = vld [vmem:[%s1539] sm:$0x1]
        %1542 = vset.pattern.permute.xlu0 0
        %1543 = vperm.xlu0 %1542, %v1254
        %v1544 = vpop.permute.xlu0 %1543
        %1547 = vset.pattern.permute.xlu0 0
        %1548 = vperm.xlu0 %1547, %v1259
        %v1549 = vpop.permute.xlu0 %1548
        %1552 = vset.pattern.permute.xlu0 0
        %1553 = vperm.xlu0 %1552, %v1264
        %v1554 = vpop.permute.xlu0 %1553
        %1557 = vset.pattern.permute.xlu0 0
        %1558 = vperm.xlu0 %1557, %v1269
        %v1559 = vpop.permute.xlu0 %1558
        %v1562 = vlaneseq
        %v1563 = vshrl.u32 %v1562, 7
        %v1564 = vsub.s32 0, %v1563
        %v1565 = vrot.slane %v1540, %v1564
        %v1567 = vmul.f32 %v1544, %v1565
        %v1568 = vmul.f32 %v1549, %v1565
        %v1569 = vmul.f32 %v1554, %v1565
        %v1570 = vmul.f32 %v1559, %v1565
        %v1571 = vadd.f32 %v1535, %v1567
        %v1572 = vadd.f32 %v1536, %v1568
        %v1573 = vadd.f32 %v1537, %v1569
        %v1574 = vadd.f32 %v1538, %v1570
        %s1575 = scalar_lea.vmem %s4, 8
        %v1576 = vld [vmem:[%s1575] sm:$0x1]
        %1578 = vset.pattern.permute.xlu0 0
        %1579 = vperm.xlu0 %1578, %v1274
        %v1580 = vpop.permute.xlu0 %1579
        %1583 = vset.pattern.permute.xlu0 0
        %1584 = vperm.xlu0 %1583, %v1279
        %v1585 = vpop.permute.xlu0 %1584
        %1588 = vset.pattern.permute.xlu0 0
        %1589 = vperm.xlu0 %1588, %v1284
        %v1590 = vpop.permute.xlu0 %1589
        %1593 = vset.pattern.permute.xlu0 0
        %1594 = vperm.xlu0 %1593, %v1289
        %v1595 = vpop.permute.xlu0 %1594
        %v1598 = vlaneseq
        %v1599 = vshrl.u32 %v1598, 7
        %v1600 = vsub.s32 0, %v1599
        %v1601 = vrot.slane %v1576, %v1600
        %v1603 = vmul.f32 %v1580, %v1601
        %v1604 = vmul.f32 %v1585, %v1601
        %v1605 = vmul.f32 %v1590, %v1601
        %v1606 = vmul.f32 %v1595, %v1601
        %v1607 = vadd.f32 %v1571, %v1603
        %v1608 = vadd.f32 %v1572, %v1604
        %v1609 = vadd.f32 %v1573, %v1605
        %v1610 = vadd.f32 %v1574, %v1606
        %vm1611 = vcmp.gt.f32.partialorder %v1607, 0.0
        %vm1612 = vcmp.gt.f32.partialorder %v1608, 0.0
        %vm1613 = vcmp.gt.f32.partialorder %v1609, 0.0
        %vm1614 = vcmp.gt.f32.partialorder %v1610, 0.0
        %v1615 = vmul.f32 %v1607, 0.01
        %v1616 = vmul.f32 %v1608, 0.01
        %v1617 = vmul.f32 %v1609, 0.01
        %v1618 = vmul.f32 %v1610, 0.01
        %v1619 = vsel %vm1611, %v1607, %v1615
        %v1620 = vsel %vm1612, %v1608, %v1616
        %v1621 = vsel %vm1613, %v1609, %v1617
        %v1622 = vsel %vm1614, %v1610, %v1618
        %v1623 = vld [vmem:[%s5] sm:$0xff]
        %v1624 = vld [vmem:[%s5 + $0x8] sm:$0xff]
        %v1625 = vld [vmem:[%s5 + $0x10] sm:$0xff]
        %v1626 = vld [vmem:[%s5 + $0x18] sm:$0xff]
        %v1627 = vld [vmem:[%s5 + $0x20] sm:$0xff]
        %v1628 = vld [vmem:[%s5 + $0x28] sm:$0xff]
        %v1629 = vld [vmem:[%s5 + $0x30] sm:$0xff]
        %v1630 = vld [vmem:[%s5 + $0x38] sm:$0xff]
        %v1631 = vld [vmem:[%s5 + $0x40] sm:$0xff]
        %v1632 = vld [vmem:[%s5 + $0x48] sm:$0xff]
        %v1633 = vld [vmem:[%s5 + $0x50] sm:$0xff]
        %v1634 = vld [vmem:[%s5 + $0x58] sm:$0xff]
        %v1635 = vld [vmem:[%s5 + $0x60] sm:$0xff]
        %v1636 = vld [vmem:[%s5 + $0x68] sm:$0xff]
        %v1637 = vld [vmem:[%s5 + $0x70] sm:$0xff]
        %v1638 = vld [vmem:[%s5 + $0x78] sm:$0xff]
        %v1639 = vld [vmem:[%s5 + $0x80] sm:$0xff]
        %v1640 = vld [vmem:[%s5 + $0x88] sm:$0xff]
        %vm1641 = vcmask 261120
        %v1643 = vsel %vm1641, %v1623, 0
        %v1646 = vsel %vm1641, %v1624, 0
        %v1649 = vsel %vm1641, %v1625, 0
        %v1652 = vsel %vm1641, %v1626, 0
        %v1655 = vsel %vm1641, %v1627, 0
        %v1658 = vsel %vm1641, %v1628, 0
        %v1661 = vsel %vm1641, %v1629, 0
        %v1664 = vsel %vm1641, %v1630, 0
        %v1667 = vsel %vm1641, %v1631, 0
        %v1670 = vsel %vm1641, %v1632, 0
        %v1673 = vsel %vm1641, %v1633, 0
        %v1676 = vsel %vm1641, %v1634, 0
        %v1679 = vsel %vm1641, %v1635, 0
        %v1682 = vsel %vm1641, %v1636, 0
        %v1685 = vsel %vm1641, %v1637, 0
        %v1688 = vsel %vm1641, %v1638, 0
        %v1691 = vsel %vm1641, %v1639, 0
        %v1694 = vsel %vm1641, %v1640, 0
        %1696 = vmatprep.subr.mxu0 0.0
        %1697 = vmatpush1.msra.mxu0 %v1619
        %1698 = vmatprep.subr.mxu0 0.0
        %1699 = vmatpush1.msra.mxu0 %v1620
        %1700 = vmatprep.subr.mxu0 0.0
        %1701 = vmatpush1.msra.mxu0 %v1621
        %1702 = vmatprep.subr.mxu0 0.0
        %1703 = vmatpush1.msra.mxu0 %v1622
        %1704 = vmatprep.subr.mxu0 0.0
        %1705 = vmatpush1.msra.mxu0 0.0
        %1706 = vmatprep.subr.mxu0 0.0
        %1707 = vmatpush1.msra.mxu0 0.0
        %1708 = vmatprep.subr.mxu0 0.0
        %1709 = vmatpush1.msra.mxu0 0.0
        %1710 = vmatprep.subr.mxu0 0.0
        %1711 = vmatpush1.msra.mxu0 0.0
        %1712 = vmatprep.subr.mxu0 0.0
        %1713 = vmatpush1.msra.mxu0 0.0
        %1714 = vmatprep.subr.mxu0 0.0
        %1715 = vmatpush1.msra.mxu0 0.0
        %1716 = vmatprep.subr.mxu0 0.0
        %1717 = vmatpush1.msra.mxu0 0.0
        %1718 = vmatprep.subr.mxu0 0.0
        %1719 = vmatpush1.msra.mxu0 0.0
        %1720 = vmatprep.subr.mxu0 0.0
        %1721 = vmatpush1.msra.mxu0 0.0
        %1722 = vmatprep.subr.mxu0 0.0
        %1723 = vmatpush1.msra.mxu0 0.0
        %1724 = vmatprep.subr.mxu0 0.0
        %1725 = vmatpush1.msra.mxu0 0.0
        %1726 = vmatprep.subr.mxu0 0.0
        %1727 = vmatpush1.msra.mxu0 0.0
        %1728 = vmatprep.subr.mxu0 0.0
        %1729 = vmatpush1.msra.mxu0 0.0
        %1730 = vmatprep.subr.mxu0 0.0
        %1731 = vmatpush1.msra.mxu0 0.0
        %1732 = vmatprep.subr.mxu0 0.0
        %1733 = vmatpush1.msra.mxu0 0.0
        %1734 = vmatprep.subr.mxu0 0.0
        %1735 = vmatpush1.msra.mxu0 0.0
        %1736 = vmatprep.subr.mxu0 0.0
        %1737 = vmatpush1.msra.mxu0 0.0
        %1738 = vmatprep.subr.mxu0 0.0
        %1739 = vmatpush1.msra.mxu0 0.0
        %1740 = vmatprep.subr.mxu0 0.0
        %1741 = vmatpush1.msra.mxu0 0.0
        %1742 = vmatprep.subr.mxu0 0.0
        %1743 = vmatpush1.msra.mxu0 0.0
        %1744 = vmatprep.subr.mxu0 0.0
        %1745 = vmatpush1.msra.mxu0 0.0
        %1746 = vmatprep.subr.mxu0 0.0
        %1747 = vmatpush1.msra.mxu0 0.0
        %1748 = vmatprep.subr.mxu0 0.0
        %1749 = vmatpush1.msra.mxu0 0.0
        %1750 = vmatprep.subr.mxu0 0.0
        %1751 = vmatpush1.msra.mxu0 0.0
        %1752 = vmatprep.subr.mxu0 0.0
        %1753 = vmatpush1.msra.mxu0 0.0
        %1754 = vmatprep.subr.mxu0 0.0
        %1755 = vmatpush1.msra.mxu0 0.0
        %1756 = vmatprep.subr.mxu0 0.0
        %1757 = vmatpush1.msra.mxu0 0.0
        %1758 = vmatprep.subr.mxu0 0.0
        %1759 = vmatpush1.msra.mxu0 0.0
        %1760 = vmatprep.mubr.f32.mxu0 0.0
        %1761 = vmatmul.mubr.f32.gmra.mrb[0].mxu0 %v1643
        %v1762 = vpop.f32.mrb[0].mxu0
        %v1763 = vadd.f32 0.0, %v1762
        %v1764 = vpop.f32.mrb[0].mxu0
        %1765 = vmatprep.mubr.f32.mxu0 0.0
        %1766 = vmatmul.mubr.f32.gmra.mrb[0].mxu0 %v1646
        %v1767 = vpop.f32.mrb[0].mxu0
        %v1768 = vadd.f32 0.0, %v1767
        %v1769 = vpop.f32.mrb[0].mxu0
        %1770 = vmatprep.mubr.f32.mxu0 0.0
        %1771 = vmatmul.mubr.f32.gmra.mrb[0].mxu0 %v1649
        %v1772 = vpop.f32.mrb[0].mxu0
        %v1773 = vadd.f32 0.0, %v1772
        %v1774 = vpop.f32.mrb[0].mxu0
        %1775 = vmatprep.mubr.f32.mxu0 0.0
        %1776 = vmatmul.mubr.f32.gmra.mrb[0].mxu0 %v1652
        %v1777 = vpop.f32.mrb[0].mxu0
        %v1778 = vadd.f32 0.0, %v1777
        %v1779 = vpop.f32.mrb[0].mxu0
        %1780 = vmatprep.mubr.f32.mxu0 0.0
        %1781 = vmatmul.mubr.f32.gmra.mrb[0].mxu0 %v1655
        %v1782 = vpop.f32.mrb[0].mxu0
        %v1783 = vadd.f32 0.0, %v1782
        %v1784 = vpop.f32.mrb[0].mxu0
        %1785 = vmatprep.mubr.f32.mxu0 0.0
        %1786 = vmatmul.mubr.f32.gmra.mrb[0].mxu0 %v1658
        %v1787 = vpop.f32.mrb[0].mxu0
        %v1788 = vadd.f32 0.0, %v1787
        %v1789 = vpop.f32.mrb[0].mxu0
        %1790 = vmatprep.mubr.f32.mxu0 0.0
        %1791 = vmatmul.mubr.f32.gmra.mrb[0].mxu0 %v1661
        %v1792 = vpop.f32.mrb[0].mxu0
        %v1793 = vadd.f32 0.0, %v1792
        %v1794 = vpop.f32.mrb[0].mxu0
        %1795 = vmatprep.mubr.f32.mxu0 0.0
        %1796 = vmatmul.mubr.f32.gmra.mrb[0].mxu0 %v1664
        %v1797 = vpop.f32.mrb[0].mxu0
        %v1798 = vadd.f32 0.0, %v1797
        %v1799 = vpop.f32.mrb[0].mxu0
        %1800 = vmatprep.mubr.f32.mxu0 0.0
        %1801 = vmatmul.mubr.f32.gmra.mrb[0].mxu0 %v1667
        %v1802 = vpop.f32.mrb[0].mxu0
        %v1803 = vadd.f32 0.0, %v1802
        %v1804 = vpop.f32.mrb[0].mxu0
        %1805 = vmatprep.mubr.f32.mxu0 0.0
        %1806 = vmatmul.mubr.f32.gmra.mrb[0].mxu0 %v1670
        %v1807 = vpop.f32.mrb[0].mxu0
        %v1808 = vadd.f32 0.0, %v1807
        %v1809 = vpop.f32.mrb[0].mxu0
        %1810 = vmatprep.mubr.f32.mxu0 0.0
        %1811 = vmatmul.mubr.f32.gmra.mrb[0].mxu0 %v1673
        %v1812 = vpop.f32.mrb[0].mxu0
        %v1813 = vadd.f32 0.0, %v1812
        %v1814 = vpop.f32.mrb[0].mxu0
        %1815 = vmatprep.mubr.f32.mxu0 0.0
        %1816 = vmatmul.mubr.f32.gmra.mrb[0].mxu0 %v1676
        %v1817 = vpop.f32.mrb[0].mxu0
        %v1818 = vadd.f32 0.0, %v1817
        %v1819 = vpop.f32.mrb[0].mxu0
        %1820 = vmatprep.mubr.f32.mxu0 0.0
        %1821 = vmatmul.mubr.f32.gmra.mrb[0].mxu0 %v1679
        %v1822 = vpop.f32.mrb[0].mxu0
        %v1823 = vadd.f32 0.0, %v1822
        %v1824 = vpop.f32.mrb[0].mxu0
        %1825 = vmatprep.mubr.f32.mxu0 0.0
        %1826 = vmatmul.mubr.f32.gmra.mrb[0].mxu0 %v1682
        %v1827 = vpop.f32.mrb[0].mxu0
        %v1828 = vadd.f32 0.0, %v1827
        %v1829 = vpop.f32.mrb[0].mxu0
        %1830 = vmatprep.mubr.f32.mxu0 0.0
        %1831 = vmatmul.mubr.f32.gmra.mrb[0].mxu0 %v1685
        %v1832 = vpop.f32.mrb[0].mxu0
        %v1833 = vadd.f32 0.0, %v1832
        %v1834 = vpop.f32.mrb[0].mxu0
        %1835 = vmatprep.mubr.f32.mxu0 0.0
        %1836 = vmatmul.mubr.f32.gmra.mrb[0].mxu0 %v1688
        %v1837 = vpop.f32.mrb[0].mxu0
        %v1838 = vadd.f32 0.0, %v1837
        %v1839 = vpop.f32.mrb[0].mxu0
        %1840 = vmatprep.mubr.f32.mxu0 0.0
        %1841 = vmatmul.mubr.f32.gmra.mrb[0].mxu0 %v1691
        %v1842 = vpop.f32.mrb[0].mxu0
        %v1843 = vadd.f32 0.0, %v1842
        %v1844 = vpop.f32.mrb[0].mxu0
        %1845 = vmatprep.mubr.f32.mxu0 0.0
        %1846 = vmatmul.mubr.f32.gmra.mrb[0].mxu0 %v1694
        %v1847 = vpop.f32.mrb[0].mxu0
        %v1848 = vadd.f32 0.0, %v1847
        %v1849 = vpop.f32.mrb[0].mxu0
        %1850 = vdwg.mxu0
        %v1851 = vld [vmem:[%s6] sm:$0xf]
        %s1852 = scalar_lea.vmem %s6, 4
        %v1853 = vld [vmem:[%s1852] sm:$0xf]
        %vm1854 = vcmask 31744
        %v1856 = vsel %vm1854, %v1773, 0
        %v1859 = vsel %vm1854, %v1778, 0
        %vm1861 = vcmask 1043456
        %v1863 = vsel %vm1861, %v1853, 0
        %1865 = vmatprep.subr.mxu0 0.0
        %1866 = vmatpush1.msra.mxu0 %v1863
        %1867 = vmatprep.subr.mxu0 0.0
        %1868 = vmatpush1.msra.mxu0 0.0
        %1869 = vmatprep.subr.mxu0 0.0
        %1870 = vmatpush1.msra.mxu0 0.0
        %1871 = vmatprep.subr.mxu0 0.0
        %1872 = vmatpush1.msra.mxu0 0.0
        %1873 = vmatprep.subr.mxu0 0.0
        %1874 = vmatpush1.msra.mxu0 0.0
        %1875 = vmatprep.subr.mxu0 0.0
        %1876 = vmatpush1.msra.mxu0 0.0
        %1877 = vmatprep.subr.mxu0 0.0
        %1878 = vmatpush1.msra.mxu0 0.0
        %1879 = vmatprep.subr.mxu0 0.0
        %1880 = vmatpush1.msra.mxu0 0.0
        %1881 = vmatprep.subr.mxu0 0.0
        %1882 = vmatpush1.msra.mxu0 0.0
        %1883 = vmatprep.subr.mxu0 0.0
        %1884 = vmatpush1.msra.mxu0 0.0
        %1885 = vmatprep.subr.mxu0 0.0
        %1886 = vmatpush1.msra.mxu0 0.0
        %1887 = vmatprep.subr.mxu0 0.0
        %1888 = vmatpush1.msra.mxu0 0.0
        %1889 = vmatprep.subr.mxu0 0.0
        %1890 = vmatpush1.msra.mxu0 0.0
        %1891 = vmatprep.subr.mxu0 0.0
        %1892 = vmatpush1.msra.mxu0 0.0
        %1893 = vmatprep.subr.mxu0 0.0
        %1894 = vmatpush1.msra.mxu0 0.0
        %1895 = vmatprep.subr.mxu0 0.0
        %1896 = vmatpush1.msra.mxu0 0.0
        %1897 = vmatprep.subr.mxu0 0.0
        %1898 = vmatpush1.msra.mxu0 0.0
        %1899 = vmatprep.subr.mxu0 0.0
        %1900 = vmatpush1.msra.mxu0 0.0
        %1901 = vmatprep.subr.mxu0 0.0
        %1902 = vmatpush1.msra.mxu0 0.0
        %1903 = vmatprep.subr.mxu0 0.0
        %1904 = vmatpush1.msra.mxu0 0.0
        %1905 = vmatprep.subr.mxu0 0.0
        %1906 = vmatpush1.msra.mxu0 0.0
        %1907 = vmatprep.subr.mxu0 0.0
        %1908 = vmatpush1.msra.mxu0 0.0
        %1909 = vmatprep.subr.mxu0 0.0
        %1910 = vmatpush1.msra.mxu0 0.0
        %1911 = vmatprep.subr.mxu0 0.0
        %1912 = vmatpush1.msra.mxu0 0.0
        %1913 = vmatprep.subr.mxu0 0.0
        %1914 = vmatpush1.msra.mxu0 0.0
        %1915 = vmatprep.subr.mxu0 0.0
        %1916 = vmatpush1.msra.mxu0 0.0
        %1917 = vmatprep.subr.mxu0 0.0
        %1918 = vmatpush1.msra.mxu0 0.0
        %1919 = vmatprep.subr.mxu0 0.0
        %1920 = vmatpush1.msra.mxu0 0.0
        %1921 = vmatprep.subr.mxu0 0.0
        %1922 = vmatpush1.msra.mxu0 0.0
        %1923 = vmatprep.subr.mxu0 0.0
        %1924 = vmatpush1.msra.mxu0 0.0
        %1925 = vmatprep.subr.mxu0 0.0
        %1926 = vmatpush1.msra.mxu0 0.0
        %1927 = vmatprep.subr.mxu0 0.0
        %1928 = vmatpush1.msra.mxu0 0.0
        %1929 = vmatprep.mubr.f32.mxu0 0.0
        %1930 = vmatmul.mubr.f32.gmra.mrb[0].mxu0 %v1856
        %v1931 = vpop.f32.mrb[0].mxu0
        %v1932 = vadd.f32 0.0, %v1931
        %v1933 = vpop.f32.mrb[0].mxu0
        %1934 = vmatprep.mubr.f32.mxu0 0.0
        %1935 = vmatmul.mubr.f32.gmra.mrb[0].mxu0 %v1859
        %v1936 = vpop.f32.mrb[0].mxu0
        %v1937 = vadd.f32 0.0, %v1936
        %v1938 = vpop.f32.mrb[0].mxu0
        %1939 = vdwg.mxu0
        %v1941 = vsel %vm1854, %v1763, 0
        %v1944 = vsel %vm1854, %v1768, 0
        %v1947 = vsel %vm1861, %v1851, 0
        %1949 = vmatprep.subr.mxu0 0.0
        %1950 = vmatpush1.msra.mxu0 %v1947
        %1951 = vmatprep.subr.mxu0 0.0
        %1952 = vmatpush1.msra.mxu0 0.0
        %1953 = vmatprep.subr.mxu0 0.0
        %1954 = vmatpush1.msra.mxu0 0.0
        %1955 = vmatprep.subr.mxu0 0.0
        %1956 = vmatpush1.msra.mxu0 0.0
        %1957 = vmatprep.subr.mxu0 0.0
        %1958 = vmatpush1.msra.mxu0 0.0
        %1959 = vmatprep.subr.mxu0 0.0
        %1960 = vmatpush1.msra.mxu0 0.0
        %1961 = vmatprep.subr.mxu0 0.0
        %1962 = vmatpush1.msra.mxu0 0.0
        %1963 = vmatprep.subr.mxu0 0.0
        %1964 = vmatpush1.msra.mxu0 0.0
        %1965 = vmatprep.subr.mxu0 0.0
        %1966 = vmatpush1.msra.mxu0 0.0
        %1967 = vmatprep.subr.mxu0 0.0
        %1968 = vmatpush1.msra.mxu0 0.0
        %1969 = vmatprep.subr.mxu0 0.0
        %1970 = vmatpush1.msra.mxu0 0.0
        %1971 = vmatprep.subr.mxu0 0.0
        %1972 = vmatpush1.msra.mxu0 0.0
        %1973 = vmatprep.subr.mxu0 0.0
        %1974 = vmatpush1.msra.mxu0 0.0
        %1975 = vmatprep.subr.mxu0 0.0
        %1976 = vmatpush1.msra.mxu0 0.0
        %1977 = vmatprep.subr.mxu0 0.0
        %1978 = vmatpush1.msra.mxu0 0.0
        %1979 = vmatprep.subr.mxu0 0.0
        %1980 = vmatpush1.msra.mxu0 0.0
        %1981 = vmatprep.subr.mxu0 0.0
        %1982 = vmatpush1.msra.mxu0 0.0
        %1983 = vmatprep.subr.mxu0 0.0
        %1984 = vmatpush1.msra.mxu0 0.0
        %1985 = vmatprep.subr.mxu0 0.0
        %1986 = vmatpush1.msra.mxu0 0.0
        %1987 = vmatprep.subr.mxu0 0.0
        %1988 = vmatpush1.msra.mxu0 0.0
        %1989 = vmatprep.subr.mxu0 0.0
        %1990 = vmatpush1.msra.mxu0 0.0
        %1991 = vmatprep.subr.mxu0 0.0
        %1992 = vmatpush1.msra.mxu0 0.0
        %1993 = vmatprep.subr.mxu0 0.0
        %1994 = vmatpush1.msra.mxu0 0.0
        %1995 = vmatprep.subr.mxu0 0.0
        %1996 = vmatpush1.msra.mxu0 0.0
        %1997 = vmatprep.subr.mxu0 0.0
        %1998 = vmatpush1.msra.mxu0 0.0
        %1999 = vmatprep.subr.mxu0 0.0
        %2000 = vmatpush1.msra.mxu0 0.0
        %2001 = vmatprep.subr.mxu0 0.0
        %2002 = vmatpush1.msra.mxu0 0.0
        %2003 = vmatprep.subr.mxu0 0.0
        %2004 = vmatpush1.msra.mxu0 0.0
        %2005 = vmatprep.subr.mxu0 0.0
        %2006 = vmatpush1.msra.mxu0 0.0
        %2007 = vmatprep.subr.mxu0 0.0
        %2008 = vmatpush1.msra.mxu0 0.0
        %2009 = vmatprep.subr.mxu0 0.0
        %2010 = vmatpush1.msra.mxu0 0.0
        %2011 = vmatprep.subr.mxu0 0.0
        %2012 = vmatpush1.msra.mxu0 0.0
        %2013 = vmatprep.mubr.f32.mxu0 0.0
        %2014 = vmatmul.mubr.f32.gmra.mrb[0].mxu0 %v1941
        %v2015 = vpop.f32.mrb[0].mxu0
        %v2016 = vadd.f32 %v1932, %v2015
        %v2017 = vpop.f32.mrb[0].mxu0
        %2018 = vmatprep.mubr.f32.mxu0 0.0
        %2019 = vmatmul.mubr.f32.gmra.mrb[0].mxu0 %v1944
        %v2020 = vpop.f32.mrb[0].mxu0
        %v2021 = vadd.f32 %v1937, %v2020
        %v2022 = vpop.f32.mrb[0].mxu0
        %2023 = vdwg.mxu0
        %s2024 = scalar_lea.vmem %s6, 8
        %v2025 = vld [vmem:[%s2024] sm:$0xf]
        %v2027 = vsel %vm1854, %v1783, 0
        %v2030 = vsel %vm1854, %v1788, 0
        %v2033 = vsel %vm1861, %v2025, 0
        %2035 = vmatprep.subr.mxu0 0.0
        %2036 = vmatpush1.msra.mxu0 %v2033
        %2037 = vmatprep.subr.mxu0 0.0
        %2038 = vmatpush1.msra.mxu0 0.0
        %2039 = vmatprep.subr.mxu0 0.0
        %2040 = vmatpush1.msra.mxu0 0.0
        %2041 = vmatprep.subr.mxu0 0.0
        %2042 = vmatpush1.msra.mxu0 0.0
        %2043 = vmatprep.subr.mxu0 0.0
        %2044 = vmatpush1.msra.mxu0 0.0
        %2045 = vmatprep.subr.mxu0 0.0
        %2046 = vmatpush1.msra.mxu0 0.0
        %2047 = vmatprep.subr.mxu0 0.0
        %2048 = vmatpush1.msra.mxu0 0.0
        %2049 = vmatprep.subr.mxu0 0.0
        %2050 = vmatpush1.msra.mxu0 0.0
        %2051 = vmatprep.subr.mxu0 0.0
        %2052 = vmatpush1.msra.mxu0 0.0
        %2053 = vmatprep.subr.mxu0 0.0
        %2054 = vmatpush1.msra.mxu0 0.0
        %2055 = vmatprep.subr.mxu0 0.0
        %2056 = vmatpush1.msra.mxu0 0.0
        %2057 = vmatprep.subr.mxu0 0.0
        %2058 = vmatpush1.msra.mxu0 0.0
        %2059 = vmatprep.subr.mxu0 0.0
        %2060 = vmatpush1.msra.mxu0 0.0
        %2061 = vmatprep.subr.mxu0 0.0
        %2062 = vmatpush1.msra.mxu0 0.0
        %2063 = vmatprep.subr.mxu0 0.0
        %2064 = vmatpush1.msra.mxu0 0.0
        %2065 = vmatprep.subr.mxu0 0.0
        %2066 = vmatpush1.msra.mxu0 0.0
        %2067 = vmatprep.subr.mxu0 0.0
        %2068 = vmatpush1.msra.mxu0 0.0
        %2069 = vmatprep.subr.mxu0 0.0
        %2070 = vmatpush1.msra.mxu0 0.0
        %2071 = vmatprep.subr.mxu0 0.0
        %2072 = vmatpush1.msra.mxu0 0.0
        %2073 = vmatprep.subr.mxu0 0.0
        %2074 = vmatpush1.msra.mxu0 0.0
        %2075 = vmatprep.subr.mxu0 0.0
        %2076 = vmatpush1.msra.mxu0 0.0
        %2077 = vmatprep.subr.mxu0 0.0
        %2078 = vmatpush1.msra.mxu0 0.0
        %2079 = vmatprep.subr.mxu0 0.0
        %2080 = vmatpush1.msra.mxu0 0.0
        %2081 = vmatprep.subr.mxu0 0.0
        %2082 = vmatpush1.msra.mxu0 0.0
        %2083 = vmatprep.subr.mxu0 0.0
        %2084 = vmatpush1.msra.mxu0 0.0
        %2085 = vmatprep.subr.mxu0 0.0
        %2086 = vmatpush1.msra.mxu0 0.0
        %2087 = vmatprep.subr.mxu0 0.0
        %2088 = vmatpush1.msra.mxu0 0.0
        %2089 = vmatprep.subr.mxu0 0.0
        %2090 = vmatpush1.msra.mxu0 0.0
        %2091 = vmatprep.subr.mxu0 0.0
        %2092 = vmatpush1.msra.mxu0 0.0
        %2093 = vmatprep.subr.mxu0 0.0
        %2094 = vmatpush1.msra.mxu0 0.0
        %2095 = vmatprep.subr.mxu0 0.0
        %2096 = vmatpush1.msra.mxu0 0.0
        %2097 = vmatprep.subr.mxu0 0.0
        %2098 = vmatpush1.msra.mxu0 0.0
        %2099 = vmatprep.mubr.f32.mxu0 0.0
        %2100 = vmatmul.mubr.f32.gmra.mrb[0].mxu0 %v2027
        %v2101 = vpop.f32.mrb[0].mxu0
        %v2102 = vadd.f32 0.0, %v2101
        %v2103 = vpop.f32.mrb[0].mxu0
        %2104 = vmatprep.mubr.f32.mxu0 0.0
        %2105 = vmatmul.mubr.f32.gmra.mrb[0].mxu0 %v2030
        %v2106 = vpop.f32.mrb[0].mxu0
        %v2107 = vadd.f32 0.0, %v2106
        %v2108 = vpop.f32.mrb[0].mxu0
        %2109 = vdwg.mxu0
        %v2110 = vadd.f32 %v2016, %v2102
        %v2111 = vadd.f32 %v2021, %v2107
        %s2112 = scalar_lea.vmem %s6, 12
        %v2113 = vld [vmem:[%s2112] sm:$0xf]
        %v2115 = vsel %vm1854, %v1793, 0
        %v2118 = vsel %vm1854, %v1798, 0
        %v2121 = vsel %vm1861, %v2113, 0
        %2123 = vmatprep.subr.mxu0 0.0
        %2124 = vmatpush1.msra.mxu0 %v2121
        %2125 = vmatprep.subr.mxu0 0.0
        %2126 = vmatpush1.msra.mxu0 0.0
        %2127 = vmatprep.subr.mxu0 0.0
        %2128 = vmatpush1.msra.mxu0 0.0
        %2129 = vmatprep.subr.mxu0 0.0
        %2130 = vmatpush1.msra.mxu0 0.0
        %2131 = vmatprep.subr.mxu0 0.0
        %2132 = vmatpush1.msra.mxu0 0.0
        %2133 = vmatprep.subr.mxu0 0.0
        %2134 = vmatpush1.msra.mxu0 0.0
        %2135 = vmatprep.subr.mxu0 0.0
        %2136 = vmatpush1.msra.mxu0 0.0
        %2137 = vmatprep.subr.mxu0 0.0
        %2138 = vmatpush1.msra.mxu0 0.0
        %2139 = vmatprep.subr.mxu0 0.0
        %2140 = vmatpush1.msra.mxu0 0.0
        %2141 = vmatprep.subr.mxu0 0.0
        %2142 = vmatpush1.msra.mxu0 0.0
        %2143 = vmatprep.subr.mxu0 0.0
        %2144 = vmatpush1.msra.mxu0 0.0
        %2145 = vmatprep.subr.mxu0 0.0
        %2146 = vmatpush1.msra.mxu0 0.0
        %2147 = vmatprep.subr.mxu0 0.0
        %2148 = vmatpush1.msra.mxu0 0.0
        %2149 = vmatprep.subr.mxu0 0.0
        %2150 = vmatpush1.msra.mxu0 0.0
        %2151 = vmatprep.subr.mxu0 0.0
        %2152 = vmatpush1.msra.mxu0 0.0
        %2153 = vmatprep.subr.mxu0 0.0
        %2154 = vmatpush1.msra.mxu0 0.0
        %2155 = vmatprep.subr.mxu0 0.0
        %2156 = vmatpush1.msra.mxu0 0.0
        %2157 = vmatprep.subr.mxu0 0.0
        %2158 = vmatpush1.msra.mxu0 0.0
        %2159 = vmatprep.subr.mxu0 0.0
        %2160 = vmatpush1.msra.mxu0 0.0
        %2161 = vmatprep.subr.mxu0 0.0
        %2162 = vmatpush1.msra.mxu0 0.0
        %2163 = vmatprep.subr.mxu0 0.0
        %2164 = vmatpush1.msra.mxu0 0.0
        %2165 = vmatprep.subr.mxu0 0.0
        %2166 = vmatpush1.msra.mxu0 0.0
        %2167 = vmatprep.subr.mxu0 0.0
        %2168 = vmatpush1.msra.mxu0 0.0
        %2169 = vmatprep.subr.mxu0 0.0
        %2170 = vmatpush1.msra.mxu0 0.0
        %2171 = vmatprep.subr.mxu0 0.0
        %2172 = vmatpush1.msra.mxu0 0.0
        %2173 = vmatprep.subr.mxu0 0.0
        %2174 = vmatpush1.msra.mxu0 0.0
        %2175 = vmatprep.subr.mxu0 0.0
        %2176 = vmatpush1.msra.mxu0 0.0
        %2177 = vmatprep.subr.mxu0 0.0
        %2178 = vmatpush1.msra.mxu0 0.0
        %2179 = vmatprep.subr.mxu0 0.0
        %2180 = vmatpush1.msra.mxu0 0.0
        %2181 = vmatprep.subr.mxu0 0.0
        %2182 = vmatpush1.msra.mxu0 0.0
        %2183 = vmatprep.subr.mxu0 0.0
        %2184 = vmatpush1.msra.mxu0 0.0
        %2185 = vmatprep.subr.mxu0 0.0
        %2186 = vmatpush1.msra.mxu0 0.0
        %2187 = vmatprep.mubr.f32.mxu0 0.0
        %2188 = vmatmul.mubr.f32.gmra.mrb[0].mxu0 %v2115
        %v2189 = vpop.f32.mrb[0].mxu0
        %v2190 = vadd.f32 0.0, %v2189
        %v2191 = vpop.f32.mrb[0].mxu0
        %2192 = vmatprep.mubr.f32.mxu0 0.0
        %2193 = vmatmul.mubr.f32.gmra.mrb[0].mxu0 %v2118
        %v2194 = vpop.f32.mrb[0].mxu0
        %v2195 = vadd.f32 0.0, %v2194
        %v2196 = vpop.f32.mrb[0].mxu0
        %2197 = vdwg.mxu0
        %v2198 = vadd.f32 %v2110, %v2190
        %v2199 = vadd.f32 %v2111, %v2195
        %s2200 = scalar_lea.vmem %s6, 16
        %v2201 = vld [vmem:[%s2200] sm:$0xf]
        %v2203 = vsel %vm1854, %v1803, 0
        %v2206 = vsel %vm1854, %v1808, 0
        %v2209 = vsel %vm1861, %v2201, 0
        %2211 = vmatprep.subr.mxu0 0.0
        %2212 = vmatpush1.msra.mxu0 %v2209
        %2213 = vmatprep.subr.mxu0 0.0
        %2214 = vmatpush1.msra.mxu0 0.0
        %2215 = vmatprep.subr.mxu0 0.0
        %2216 = vmatpush1.msra.mxu0 0.0
        %2217 = vmatprep.subr.mxu0 0.0
        %2218 = vmatpush1.msra.mxu0 0.0
        %2219 = vmatprep.subr.mxu0 0.0
        %2220 = vmatpush1.msra.mxu0 0.0
        %2221 = vmatprep.subr.mxu0 0.0
        %2222 = vmatpush1.msra.mxu0 0.0
        %2223 = vmatprep.subr.mxu0 0.0
        %2224 = vmatpush1.msra.mxu0 0.0
        %2225 = vmatprep.subr.mxu0 0.0
        %2226 = vmatpush1.msra.mxu0 0.0
        %2227 = vmatprep.subr.mxu0 0.0
        %2228 = vmatpush1.msra.mxu0 0.0
        %2229 = vmatprep.subr.mxu0 0.0
        %2230 = vmatpush1.msra.mxu0 0.0
        %2231 = vmatprep.subr.mxu0 0.0
        %2232 = vmatpush1.msra.mxu0 0.0
        %2233 = vmatprep.subr.mxu0 0.0
        %2234 = vmatpush1.msra.mxu0 0.0
        %2235 = vmatprep.subr.mxu0 0.0
        %2236 = vmatpush1.msra.mxu0 0.0
        %2237 = vmatprep.subr.mxu0 0.0
        %2238 = vmatpush1.msra.mxu0 0.0
        %2239 = vmatprep.subr.mxu0 0.0
        %2240 = vmatpush1.msra.mxu0 0.0
        %2241 = vmatprep.subr.mxu0 0.0
        %2242 = vmatpush1.msra.mxu0 0.0
        %2243 = vmatprep.subr.mxu0 0.0
        %2244 = vmatpush1.msra.mxu0 0.0
        %2245 = vmatprep.subr.mxu0 0.0
        %2246 = vmatpush1.msra.mxu0 0.0
        %2247 = vmatprep.subr.mxu0 0.0
        %2248 = vmatpush1.msra.mxu0 0.0
        %2249 = vmatprep.subr.mxu0 0.0
        %2250 = vmatpush1.msra.mxu0 0.0
        %2251 = vmatprep.subr.mxu0 0.0
        %2252 = vmatpush1.msra.mxu0 0.0
        %2253 = vmatprep.subr.mxu0 0.0
        %2254 = vmatpush1.msra.mxu0 0.0
        %2255 = vmatprep.subr.mxu0 0.0
        %2256 = vmatpush1.msra.mxu0 0.0
        %2257 = vmatprep.subr.mxu0 0.0
        %2258 = vmatpush1.msra.mxu0 0.0
        %2259 = vmatprep.subr.mxu0 0.0
        %2260 = vmatpush1.msra.mxu0 0.0
        %2261 = vmatprep.subr.mxu0 0.0
        %2262 = vmatpush1.msra.mxu0 0.0
        %2263 = vmatprep.subr.mxu0 0.0
        %2264 = vmatpush1.msra.mxu0 0.0
        %2265 = vmatprep.subr.mxu0 0.0
        %2266 = vmatpush1.msra.mxu0 0.0
        %2267 = vmatprep.subr.mxu0 0.0
        %2268 = vmatpush1.msra.mxu0 0.0
        %2269 = vmatprep.subr.mxu0 0.0
        %2270 = vmatpush1.msra.mxu0 0.0
        %2271 = vmatprep.subr.mxu0 0.0
        %2272 = vmatpush1.msra.mxu0 0.0
        %2273 = vmatprep.subr.mxu0 0.0
        %2274 = vmatpush1.msra.mxu0 0.0
        %2275 = vmatprep.mubr.f32.mxu0 0.0
        %2276 = vmatmul.mubr.f32.gmra.mrb[0].mxu0 %v2203
        %v2277 = vpop.f32.mrb[0].mxu0
        %v2278 = vadd.f32 0.0, %v2277
        %v2279 = vpop.f32.mrb[0].mxu0
        %2280 = vmatprep.mubr.f32.mxu0 0.0
        %2281 = vmatmul.mubr.f32.gmra.mrb[0].mxu0 %v2206
        %v2282 = vpop.f32.mrb[0].mxu0
        %v2283 = vadd.f32 0.0, %v2282
        %v2284 = vpop.f32.mrb[0].mxu0
        %2285 = vdwg.mxu0
        %v2286 = vadd.f32 %v2198, %v2278
        %v2287 = vadd.f32 %v2199, %v2283
        %s2288 = scalar_lea.vmem %s6, 20
        %v2289 = vld [vmem:[%s2288] sm:$0xf]
        %v2291 = vsel %vm1854, %v1813, 0
        %v2294 = vsel %vm1854, %v1818, 0
        %v2297 = vsel %vm1861, %v2289, 0
        %2299 = vmatprep.subr.mxu0 0.0
        %2300 = vmatpush1.msra.mxu0 %v2297
        %2301 = vmatprep.subr.mxu0 0.0
        %2302 = vmatpush1.msra.mxu0 0.0
        %2303 = vmatprep.subr.mxu0 0.0
        %2304 = vmatpush1.msra.mxu0 0.0
        %2305 = vmatprep.subr.mxu0 0.0
        %2306 = vmatpush1.msra.mxu0 0.0
        %2307 = vmatprep.subr.mxu0 0.0
        %2308 = vmatpush1.msra.mxu0 0.0
        %2309 = vmatprep.subr.mxu0 0.0
        %2310 = vmatpush1.msra.mxu0 0.0
        %2311 = vmatprep.subr.mxu0 0.0
        %2312 = vmatpush1.msra.mxu0 0.0
        %2313 = vmatprep.subr.mxu0 0.0
        %2314 = vmatpush1.msra.mxu0 0.0
        %2315 = vmatprep.subr.mxu0 0.0
        %2316 = vmatpush1.msra.mxu0 0.0
        %2317 = vmatprep.subr.mxu0 0.0
        %2318 = vmatpush1.msra.mxu0 0.0
        %2319 = vmatprep.subr.mxu0 0.0
        %2320 = vmatpush1.msra.mxu0 0.0
        %2321 = vmatprep.subr.mxu0 0.0
        %2322 = vmatpush1.msra.mxu0 0.0
        %2323 = vmatprep.subr.mxu0 0.0
        %2324 = vmatpush1.msra.mxu0 0.0
        %2325 = vmatprep.subr.mxu0 0.0
        %2326 = vmatpush1.msra.mxu0 0.0
        %2327 = vmatprep.subr.mxu0 0.0
        %2328 = vmatpush1.msra.mxu0 0.0
        %2329 = vmatprep.subr.mxu0 0.0
        %2330 = vmatpush1.msra.mxu0 0.0
        %2331 = vmatprep.subr.mxu0 0.0
        %2332 = vmatpush1.msra.mxu0 0.0
        %2333 = vmatprep.subr.mxu0 0.0
        %2334 = vmatpush1.msra.mxu0 0.0
        %2335 = vmatprep.subr.mxu0 0.0
        %2336 = vmatpush1.msra.mxu0 0.0
        %2337 = vmatprep.subr.mxu0 0.0
        %2338 = vmatpush1.msra.mxu0 0.0
        %2339 = vmatprep.subr.mxu0 0.0
        %2340 = vmatpush1.msra.mxu0 0.0
        %2341 = vmatprep.subr.mxu0 0.0
        %2342 = vmatpush1.msra.mxu0 0.0
        %2343 = vmatprep.subr.mxu0 0.0
        %2344 = vmatpush1.msra.mxu0 0.0
        %2345 = vmatprep.subr.mxu0 0.0
        %2346 = vmatpush1.msra.mxu0 0.0
        %2347 = vmatprep.subr.mxu0 0.0
        %2348 = vmatpush1.msra.mxu0 0.0
        %2349 = vmatprep.subr.mxu0 0.0
        %2350 = vmatpush1.msra.mxu0 0.0
        %2351 = vmatprep.subr.mxu0 0.0
        %2352 = vmatpush1.msra.mxu0 0.0
        %2353 = vmatprep.subr.mxu0 0.0
        %2354 = vmatpush1.msra.mxu0 0.0
        %2355 = vmatprep.subr.mxu0 0.0
        %2356 = vmatpush1.msra.mxu0 0.0
        %2357 = vmatprep.subr.mxu0 0.0
        %2358 = vmatpush1.msra.mxu0 0.0
        %2359 = vmatprep.subr.mxu0 0.0
        %2360 = vmatpush1.msra.mxu0 0.0
        %2361 = vmatprep.subr.mxu0 0.0
        %2362 = vmatpush1.msra.mxu0 0.0
        %2363 = vmatprep.mubr.f32.mxu0 0.0
        %2364 = vmatmul.mubr.f32.gmra.mrb[0].mxu0 %v2291
        %v2365 = vpop.f32.mrb[0].mxu0
        %v2366 = vadd.f32 0.0, %v2365
        %v2367 = vpop.f32.mrb[0].mxu0
        %2368 = vmatprep.mubr.f32.mxu0 0.0
        %2369 = vmatmul.mubr.f32.gmra.mrb[0].mxu0 %v2294
        %v2370 = vpop.f32.mrb[0].mxu0
        %v2371 = vadd.f32 0.0, %v2370
        %v2372 = vpop.f32.mrb[0].mxu0
        %2373 = vdwg.mxu0
        %v2374 = vadd.f32 %v2286, %v2366
        %v2375 = vadd.f32 %v2287, %v2371
        %s2376 = scalar_lea.vmem %s6, 24
        %v2377 = vld [vmem:[%s2376] sm:$0xf]
        %v2379 = vsel %vm1854, %v1823, 0
        %v2382 = vsel %vm1854, %v1828, 0
        %v2385 = vsel %vm1861, %v2377, 0
        %2387 = vmatprep.subr.mxu0 0.0
        %2388 = vmatpush1.msra.mxu0 %v2385
        %2389 = vmatprep.subr.mxu0 0.0
        %2390 = vmatpush1.msra.mxu0 0.0
        %2391 = vmatprep.subr.mxu0 0.0
        %2392 = vmatpush1.msra.mxu0 0.0
        %2393 = vmatprep.subr.mxu0 0.0
        %2394 = vmatpush1.msra.mxu0 0.0
        %2395 = vmatprep.subr.mxu0 0.0
        %2396 = vmatpush1.msra.mxu0 0.0
        %2397 = vmatprep.subr.mxu0 0.0
        %2398 = vmatpush1.msra.mxu0 0.0
        %2399 = vmatprep.subr.mxu0 0.0
        %2400 = vmatpush1.msra.mxu0 0.0
        %2401 = vmatprep.subr.mxu0 0.0
        %2402 = vmatpush1.msra.mxu0 0.0
        %2403 = vmatprep.subr.mxu0 0.0
        %2404 = vmatpush1.msra.mxu0 0.0
        %2405 = vmatprep.subr.mxu0 0.0
        %2406 = vmatpush1.msra.mxu0 0.0
        %2407 = vmatprep.subr.mxu0 0.0
        %2408 = vmatpush1.msra.mxu0 0.0
        %2409 = vmatprep.subr.mxu0 0.0
        %2410 = vmatpush1.msra.mxu0 0.0
        %2411 = vmatprep.subr.mxu0 0.0
        %2412 = vmatpush1.msra.mxu0 0.0
        %2413 = vmatprep.subr.mxu0 0.0
        %2414 = vmatpush1.msra.mxu0 0.0
        %2415 = vmatprep.subr.mxu0 0.0
        %2416 = vmatpush1.msra.mxu0 0.0
        %2417 = vmatprep.subr.mxu0 0.0
        %2418 = vmatpush1.msra.mxu0 0.0
        %2419 = vmatprep.subr.mxu0 0.0
        %2420 = vmatpush1.msra.mxu0 0.0
        %2421 = vmatprep.subr.mxu0 0.0
        %2422 = vmatpush1.msra.mxu0 0.0
        %2423 = vmatprep.subr.mxu0 0.0
        %2424 = vmatpush1.msra.mxu0 0.0
        %2425 = vmatprep.subr.mxu0 0.0
        %2426 = vmatpush1.msra.mxu0 0.0
        %2427 = vmatprep.subr.mxu0 0.0
        %2428 = vmatpush1.msra.mxu0 0.0
        %2429 = vmatprep.subr.mxu0 0.0
        %2430 = vmatpush1.msra.mxu0 0.0
        %2431 = vmatprep.subr.mxu0 0.0
        %2432 = vmatpush1.msra.mxu0 0.0
        %2433 = vmatprep.subr.mxu0 0.0
        %2434 = vmatpush1.msra.mxu0 0.0
        %2435 = vmatprep.subr.mxu0 0.0
        %2436 = vmatpush1.msra.mxu0 0.0
        %2437 = vmatprep.subr.mxu0 0.0
        %2438 = vmatpush1.msra.mxu0 0.0
        %2439 = vmatprep.subr.mxu0 0.0
        %2440 = vmatpush1.msra.mxu0 0.0
        %2441 = vmatprep.subr.mxu0 0.0
        %2442 = vmatpush1.msra.mxu0 0.0
        %2443 = vmatprep.subr.mxu0 0.0
        %2444 = vmatpush1.msra.mxu0 0.0
        %2445 = vmatprep.subr.mxu0 0.0
        %2446 = vmatpush1.msra.mxu0 0.0
        %2447 = vmatprep.subr.mxu0 0.0
        %2448 = vmatpush1.msra.mxu0 0.0
        %2449 = vmatprep.subr.mxu0 0.0
        %2450 = vmatpush1.msra.mxu0 0.0
        %2451 = vmatprep.mubr.f32.mxu0 0.0
        %2452 = vmatmul.mubr.f32.gmra.mrb[0].mxu0 %v2379
        %v2453 = vpop.f32.mrb[0].mxu0
        %v2454 = vadd.f32 0.0, %v2453
        %v2455 = vpop.f32.mrb[0].mxu0
        %2456 = vmatprep.mubr.f32.mxu0 0.0
        %2457 = vmatmul.mubr.f32.gmra.mrb[0].mxu0 %v2382
        %v2458 = vpop.f32.mrb[0].mxu0
        %v2459 = vadd.f32 0.0, %v2458
        %v2460 = vpop.f32.mrb[0].mxu0
        %2461 = vdwg.mxu0
        %v2462 = vadd.f32 %v2374, %v2454
        %v2463 = vadd.f32 %v2375, %v2459
        %s2464 = scalar_lea.vmem %s6, 28
        %v2465 = vld [vmem:[%s2464] sm:$0xf]
        %v2467 = vsel %vm1854, %v1833, 0
        %v2470 = vsel %vm1854, %v1838, 0
        %v2473 = vsel %vm1861, %v2465, 0
        %2475 = vmatprep.subr.mxu0 0.0
        %2476 = vmatpush1.msra.mxu0 %v2473
        %2477 = vmatprep.subr.mxu0 0.0
        %2478 = vmatpush1.msra.mxu0 0.0
        %2479 = vmatprep.subr.mxu0 0.0
        %2480 = vmatpush1.msra.mxu0 0.0
        %2481 = vmatprep.subr.mxu0 0.0
        %2482 = vmatpush1.msra.mxu0 0.0
        %2483 = vmatprep.subr.mxu0 0.0
        %2484 = vmatpush1.msra.mxu0 0.0
        %2485 = vmatprep.subr.mxu0 0.0
        %2486 = vmatpush1.msra.mxu0 0.0
        %2487 = vmatprep.subr.mxu0 0.0
        %2488 = vmatpush1.msra.mxu0 0.0
        %2489 = vmatprep.subr.mxu0 0.0
        %2490 = vmatpush1.msra.mxu0 0.0
        %2491 = vmatprep.subr.mxu0 0.0
        %2492 = vmatpush1.msra.mxu0 0.0
        %2493 = vmatprep.subr.mxu0 0.0
        %2494 = vmatpush1.msra.mxu0 0.0
        %2495 = vmatprep.subr.mxu0 0.0
        %2496 = vmatpush1.msra.mxu0 0.0
        %2497 = vmatprep.subr.mxu0 0.0
        %2498 = vmatpush1.msra.mxu0 0.0
        %2499 = vmatprep.subr.mxu0 0.0
        %2500 = vmatpush1.msra.mxu0 0.0
        %2501 = vmatprep.subr.mxu0 0.0
        %2502 = vmatpush1.msra.mxu0 0.0
        %2503 = vmatprep.subr.mxu0 0.0
        %2504 = vmatpush1.msra.mxu0 0.0
        %2505 = vmatprep.subr.mxu0 0.0
        %2506 = vmatpush1.msra.mxu0 0.0
        %2507 = vmatprep.subr.mxu0 0.0
        %2508 = vmatpush1.msra.mxu0 0.0
        %2509 = vmatprep.subr.mxu0 0.0
        %2510 = vmatpush1.msra.mxu0 0.0
        %2511 = vmatprep.subr.mxu0 0.0
        %2512 = vmatpush1.msra.mxu0 0.0
        %2513 = vmatprep.subr.mxu0 0.0
        %2514 = vmatpush1.msra.mxu0 0.0
        %2515 = vmatprep.subr.mxu0 0.0
        %2516 = vmatpush1.msra.mxu0 0.0
        %2517 = vmatprep.subr.mxu0 0.0
        %2518 = vmatpush1.msra.mxu0 0.0
        %2519 = vmatprep.subr.mxu0 0.0
        %2520 = vmatpush1.msra.mxu0 0.0
        %2521 = vmatprep.subr.mxu0 0.0
        %2522 = vmatpush1.msra.mxu0 0.0
        %2523 = vmatprep.subr.mxu0 0.0
        %2524 = vmatpush1.msra.mxu0 0.0
        %2525 = vmatprep.subr.mxu0 0.0
        %2526 = vmatpush1.msra.mxu0 0.0
        %2527 = vmatprep.subr.mxu0 0.0
        %2528 = vmatpush1.msra.mxu0 0.0
        %2529 = vmatprep.subr.mxu0 0.0
        %2530 = vmatpush1.msra.mxu0 0.0
        %2531 = vmatprep.subr.mxu0 0.0
        %2532 = vmatpush1.msra.mxu0 0.0
        %2533 = vmatprep.subr.mxu0 0.0
        %2534 = vmatpush1.msra.mxu0 0.0
        %2535 = vmatprep.subr.mxu0 0.0
        %2536 = vmatpush1.msra.mxu0 0.0
        %2537 = vmatprep.subr.mxu0 0.0
        %2538 = vmatpush1.msra.mxu0 0.0
        %2539 = vmatprep.mubr.f32.mxu0 0.0
        %2540 = vmatmul.mubr.f32.gmra.mrb[0].mxu0 %v2467
        %v2541 = vpop.f32.mrb[0].mxu0
        %v2542 = vadd.f32 0.0, %v2541
        %v2543 = vpop.f32.mrb[0].mxu0
        %2544 = vmatprep.mubr.f32.mxu0 0.0
        %2545 = vmatmul.mubr.f32.gmra.mrb[0].mxu0 %v2470
        %v2546 = vpop.f32.mrb[0].mxu0
        %v2547 = vadd.f32 0.0, %v2546
        %v2548 = vpop.f32.mrb[0].mxu0
        %2549 = vdwg.mxu0
        %v2550 = vadd.f32 %v2462, %v2542
        %v2551 = vadd.f32 %v2463, %v2547
        %s2552 = scalar_lea.vmem %s6, 32
        %v2553 = vld [vmem:[%s2552] sm:$0xf]
        %v2555 = vsel %vm1854, %v1843, 0
        %v2558 = vsel %vm1854, %v1848, 0
        %v2561 = vsel %vm1861, %v2553, 0
        %2563 = vmatprep.subr.mxu0 0.0
        %2564 = vmatpush1.msra.mxu0 %v2561
        %2565 = vmatprep.subr.mxu0 0.0
        %2566 = vmatpush1.msra.mxu0 0.0
        %2567 = vmatprep.subr.mxu0 0.0
        %2568 = vmatpush1.msra.mxu0 0.0
        %2569 = vmatprep.subr.mxu0 0.0
        %2570 = vmatpush1.msra.mxu0 0.0
        %2571 = vmatprep.subr.mxu0 0.0
        %2572 = vmatpush1.msra.mxu0 0.0
        %2573 = vmatprep.subr.mxu0 0.0
        %2574 = vmatpush1.msra.mxu0 0.0
        %2575 = vmatprep.subr.mxu0 0.0
        %2576 = vmatpush1.msra.mxu0 0.0
        %2577 = vmatprep.subr.mxu0 0.0
        %2578 = vmatpush1.msra.mxu0 0.0
        %2579 = vmatprep.subr.mxu0 0.0
        %2580 = vmatpush1.msra.mxu0 0.0
        %2581 = vmatprep.subr.mxu0 0.0
        %2582 = vmatpush1.msra.mxu0 0.0
        %2583 = vmatprep.subr.mxu0 0.0
        %2584 = vmatpush1.msra.mxu0 0.0
        %2585 = vmatprep.subr.mxu0 0.0
        %2586 = vmatpush1.msra.mxu0 0.0
        %2587 = vmatprep.subr.mxu0 0.0
        %2588 = vmatpush1.msra.mxu0 0.0
        %2589 = vmatprep.subr.mxu0 0.0
        %2590 = vmatpush1.msra.mxu0 0.0
        %2591 = vmatprep.subr.mxu0 0.0
        %2592 = vmatpush1.msra.mxu0 0.0
        %2593 = vmatprep.subr.mxu0 0.0
        %2594 = vmatpush1.msra.mxu0 0.0
        %2595 = vmatprep.subr.mxu0 0.0
        %2596 = vmatpush1.msra.mxu0 0.0
        %2597 = vmatprep.subr.mxu0 0.0
        %2598 = vmatpush1.msra.mxu0 0.0
        %2599 = vmatprep.subr.mxu0 0.0
        %2600 = vmatpush1.msra.mxu0 0.0
        %2601 = vmatprep.subr.mxu0 0.0
        %2602 = vmatpush1.msra.mxu0 0.0
        %2603 = vmatprep.subr.mxu0 0.0
        %2604 = vmatpush1.msra.mxu0 0.0
        %2605 = vmatprep.subr.mxu0 0.0
        %2606 = vmatpush1.msra.mxu0 0.0
        %2607 = vmatprep.subr.mxu0 0.0
        %2608 = vmatpush1.msra.mxu0 0.0
        %2609 = vmatprep.subr.mxu0 0.0
        %2610 = vmatpush1.msra.mxu0 0.0
        %2611 = vmatprep.subr.mxu0 0.0
        %2612 = vmatpush1.msra.mxu0 0.0
        %2613 = vmatprep.subr.mxu0 0.0
        %2614 = vmatpush1.msra.mxu0 0.0
        %2615 = vmatprep.subr.mxu0 0.0
        %2616 = vmatpush1.msra.mxu0 0.0
        %2617 = vmatprep.subr.mxu0 0.0
        %2618 = vmatpush1.msra.mxu0 0.0
        %2619 = vmatprep.subr.mxu0 0.0
        %2620 = vmatpush1.msra.mxu0 0.0
        %2621 = vmatprep.subr.mxu0 0.0
        %2622 = vmatpush1.msra.mxu0 0.0
        %2623 = vmatprep.subr.mxu0 0.0
        %2624 = vmatpush1.msra.mxu0 0.0
        %2625 = vmatprep.subr.mxu0 0.0
        %2626 = vmatpush1.msra.mxu0 0.0
        %2627 = vmatprep.mubr.f32.mxu0 0.0
        %2628 = vmatmul.mubr.f32.gmra.mrb[0].mxu0 %v2555
        %v2629 = vpop.f32.mrb[0].mxu0
        %v2630 = vadd.f32 0.0, %v2629
        %v2631 = vpop.f32.mrb[0].mxu0
        %2632 = vmatprep.mubr.f32.mxu0 0.0
        %2633 = vmatmul.mubr.f32.gmra.mrb[0].mxu0 %v2558
        %v2634 = vpop.f32.mrb[0].mxu0
        %v2635 = vadd.f32 0.0, %v2634
        %v2636 = vpop.f32.mrb[0].mxu0
        %2637 = vdwg.mxu0
        %v2638 = vadd.f32 %v2550, %v2630
        %v2639 = vadd.f32 %v2551, %v2635
        %v2640 = vsel %vm772, %v2638, 0.0
        %2641 = vadd.xlane.f32.xlu0 %v2640
        %v2642 = vpop.xlane.xlu0 %2641
        %v2643 = vsel %vm772, %v2639, 0.0
        %2644 = vadd.xlane.f32.xlu0 %v2643
        %v2645 = vpop.xlane.xlu0 %2644
        %v2646 = vmul.f32 %v2642, 0.0625
        %v2647 = vmul.f32 %v2645, 0.0625
        %v2648 = vmul.f32 %v2638, %v2638
        %v2649 = vmul.f32 %v2639, %v2639
        %v2650 = vsel %vm772, %v2648, 0.0
        %2651 = vadd.xlane.f32.xlu0 %v2650
        %v2652 = vpop.xlane.xlu0 %2651
        %v2653 = vsel %vm772, %v2649, 0.0
        %2654 = vadd.xlane.f32.xlu0 %v2653
        %v2655 = vpop.xlane.xlu0 %2654
        %v2656 = vmul.f32 %v2652, 0.0625
        %v2657 = vmul.f32 %v2655, 0.0625
        %v2658 = vmul.f32 %v2646, %v2646
        %v2659 = vmul.f32 %v2647, %v2647
        %v2660 = vsub.f32 %v2656, %v2658
        %v2661 = vsub.f32 %v2657, %v2659
        %v2662 = vmax.f32 %v2660, 0.0
        %v2663 = vmax.f32 %v2661, 0.0
        %v2664 = vsub.f32 %v2638, %v2646
        %v2665 = vsub.f32 %v2639, %v2647
        %v2666 = vadd.f32 %v2662, 1e-05
        %v2667 = vadd.f32 %v2663, 1e-05
        %v2668 = vrsqrt.pop %v2666
        %v2669 = vrsqrt.pop %v2667
        %v2670 = vmul.f32 %v2664, %v2668
        %v2671 = vmul.f32 %v2665, %v2669
        %v2672 = vld [vmem:[%s7] sm:$0xff]
        %v2673 = vld [vmem:[%s7 + $0x8] sm:$0xff]
        %2675 = vset.pattern.permute.xlu0 0
        %2676 = vperm.xlu0 %2675, %v2672
        %v2677 = vpop.permute.xlu0 %2676
        %2680 = vset.pattern.permute.xlu0 0
        %2681 = vperm.xlu0 %2680, %v2673
        %v2682 = vpop.permute.xlu0 %2681
        %v2684 = vmul.f32 %v2670, %v2677
        %v2685 = vmul.f32 %v2671, %v2682
        %v2686 = vld [vmem:[%s8] sm:$0xff]
        %v2687 = vld [vmem:[%s8 + $0x8] sm:$0xff]
        %2689 = vset.pattern.permute.xlu0 0
        %2690 = vperm.xlu0 %2689, %v2686
        %v2691 = vpop.permute.xlu0 %2690
        %2694 = vset.pattern.permute.xlu0 0
        %2695 = vperm.xlu0 %2694, %v2687
        %v2696 = vpop.permute.xlu0 %2695
        %v2698 = vadd.f32 %v2684, %v2691
        %v2699 = vadd.f32 %v2685, %v2696
        %vm2700 = vcmp.gt.f32.partialorder %v2698, 0.0
        %vm2701 = vcmp.gt.f32.partialorder %v2699, 0.0
        %v2702 = vmul.f32 %v2698, 0.01
        %v2703 = vmul.f32 %v2699, 0.01
        %v2704 = vsel %vm2700, %v2698, %v2702
        %v2705 = vsel %vm2701, %v2699, %v2703
        %v2706 = vld [vmem:[%s9] sm:$0xff]
        %v2707 = vld [vmem:[%s9 + $0x8] sm:$0xff]
        %v2708 = vld [vmem:[%s9 + $0x10] sm:$0xff]
        %v2709 = vld [vmem:[%s9 + $0x18] sm:$0xff]
        %v2710 = vld [vmem:[%s9 + $0x20] sm:$0xff]
        %v2711 = vld [vmem:[%s9 + $0x28] sm:$0xff]
        %v2712 = vld [vmem:[%s9 + $0x30] sm:$0xff]
        %v2713 = vld [vmem:[%s9 + $0x38] sm:$0xff]
        %v2714 = vld [vmem:[%s9 + $0x40] sm:$0xff]
        %v2716 = vsel %vm772, %v2706, 0
        %v2719 = vsel %vm772, %v2707, 0
        %v2722 = vsel %vm772, %v2708, 0
        %v2725 = vsel %vm772, %v2709, 0
        %v2728 = vsel %vm772, %v2710, 0
        %v2731 = vsel %vm772, %v2711, 0
        %v2734 = vsel %vm772, %v2712, 0
        %v2737 = vsel %vm772, %v2713, 0
        %v2740 = vsel %vm772, %v2714, 0
        %2742 = vmatprep.subr.mxu0 0.0
        %2743 = vmatpush1.msra.mxu0 %v2704
        %2744 = vmatprep.subr.mxu0 0.0
        %2745 = vmatpush1.msra.mxu0 %v2705
        %2746 = vmatprep.subr.mxu0 0.0
        %2747 = vmatpush1.msra.mxu0 0.0
        %2748 = vmatprep.subr.mxu0 0.0
        %2749 = vmatpush1.msra.mxu0 0.0
        %2750 = vmatprep.subr.mxu0 0.0
        %2751 = vmatpush1.msra.mxu0 0.0
        %2752 = vmatprep.subr.mxu0 0.0
        %2753 = vmatpush1.msra.mxu0 0.0
        %2754 = vmatprep.subr.mxu0 0.0
        %2755 = vmatpush1.msra.mxu0 0.0
        %2756 = vmatprep.subr.mxu0 0.0
        %2757 = vmatpush1.msra.mxu0 0.0
        %2758 = vmatprep.subr.mxu0 0.0
        %2759 = vmatpush1.msra.mxu0 0.0
        %2760 = vmatprep.subr.mxu0 0.0
        %2761 = vmatpush1.msra.mxu0 0.0
        %2762 = vmatprep.subr.mxu0 0.0
        %2763 = vmatpush1.msra.mxu0 0.0
        %2764 = vmatprep.subr.mxu0 0.0
        %2765 = vmatpush1.msra.mxu0 0.0
        %2766 = vmatprep.subr.mxu0 0.0
        %2767 = vmatpush1.msra.mxu0 0.0
        %2768 = vmatprep.subr.mxu0 0.0
        %2769 = vmatpush1.msra.mxu0 0.0
        %2770 = vmatprep.subr.mxu0 0.0
        %2771 = vmatpush1.msra.mxu0 0.0
        %2772 = vmatprep.subr.mxu0 0.0
        %2773 = vmatpush1.msra.mxu0 0.0
        %2774 = vmatprep.subr.mxu0 0.0
        %2775 = vmatpush1.msra.mxu0 0.0
        %2776 = vmatprep.subr.mxu0 0.0
        %2777 = vmatpush1.msra.mxu0 0.0
        %2778 = vmatprep.subr.mxu0 0.0
        %2779 = vmatpush1.msra.mxu0 0.0
        %2780 = vmatprep.subr.mxu0 0.0
        %2781 = vmatpush1.msra.mxu0 0.0
        %2782 = vmatprep.subr.mxu0 0.0
        %2783 = vmatpush1.msra.mxu0 0.0
        %2784 = vmatprep.subr.mxu0 0.0
        %2785 = vmatpush1.msra.mxu0 0.0
        %2786 = vmatprep.subr.mxu0 0.0
        %2787 = vmatpush1.msra.mxu0 0.0
        %2788 = vmatprep.subr.mxu0 0.0
        %2789 = vmatpush1.msra.mxu0 0.0
        %2790 = vmatprep.subr.mxu0 0.0
        %2791 = vmatpush1.msra.mxu0 0.0
        %2792 = vmatprep.subr.mxu0 0.0
        %2793 = vmatpush1.msra.mxu0 0.0
        %2794 = vmatprep.subr.mxu0 0.0
        %2795 = vmatpush1.msra.mxu0 0.0
        %2796 = vmatprep.subr.mxu0 0.0
        %2797 = vmatpush1.msra.mxu0 0.0
        %2798 = vmatprep.subr.mxu0 0.0
        %2799 = vmatpush1.msra.mxu0 0.0
        %2800 = vmatprep.subr.mxu0 0.0
        %2801 = vmatpush1.msra.mxu0 0.0
        %2802 = vmatprep.subr.mxu0 0.0
        %2803 = vmatpush1.msra.mxu0 0.0
        %2804 = vmatprep.subr.mxu0 0.0
        %2805 = vmatpush1.msra.mxu0 0.0
        %2806 = vmatprep.mubr.f32.mxu0 0.0
        %2807 = vmatmul.mubr.f32.gmra.mrb[0].mxu0 %v2716
        %v2808 = vpop.f32.mrb[0].mxu0
        %v2809 = vadd.f32 0.0, %v2808
        %v2810 = vpop.f32.mrb[0].mxu0
        %2811 = vmatprep.mubr.f32.mxu0 0.0
        %2812 = vmatmul.mubr.f32.gmra.mrb[0].mxu0 %v2719
        %v2813 = vpop.f32.mrb[0].mxu0
        %v2814 = vadd.f32 0.0, %v2813
        %v2815 = vpop.f32.mrb[0].mxu0
        %2816 = vmatprep.mubr.f32.mxu0 0.0
        %2817 = vmatmul.mubr.f32.gmra.mrb[0].mxu0 %v2722
        %v2818 = vpop.f32.mrb[0].mxu0
        %v2819 = vadd.f32 0.0, %v2818
        %v2820 = vpop.f32.mrb[0].mxu0
        %2821 = vmatprep.mubr.f32.mxu0 0.0
        %2822 = vmatmul.mubr.f32.gmra.mrb[0].mxu0 %v2725
        %v2823 = vpop.f32.mrb[0].mxu0
        %v2824 = vadd.f32 0.0, %v2823
        %v2825 = vpop.f32.mrb[0].mxu0
        %2826 = vmatprep.mubr.f32.mxu0 0.0
        %2827 = vmatmul.mubr.f32.gmra.mrb[0].mxu0 %v2728
        %v2828 = vpop.f32.mrb[0].mxu0
        %v2829 = vadd.f32 0.0, %v2828
        %v2830 = vpop.f32.mrb[0].mxu0
        %2831 = vmatprep.mubr.f32.mxu0 0.0
        %2832 = vmatmul.mubr.f32.gmra.mrb[0].mxu0 %v2731
        %v2833 = vpop.f32.mrb[0].mxu0
        %v2834 = vadd.f32 0.0, %v2833
        %v2835 = vpop.f32.mrb[0].mxu0
        %2836 = vmatprep.mubr.f32.mxu0 0.0
        %2837 = vmatmul.mubr.f32.gmra.mrb[0].mxu0 %v2734
        %v2838 = vpop.f32.mrb[0].mxu0
        %v2839 = vadd.f32 0.0, %v2838
        %v2840 = vpop.f32.mrb[0].mxu0
        %2841 = vmatprep.mubr.f32.mxu0 0.0
        %2842 = vmatmul.mubr.f32.gmra.mrb[0].mxu0 %v2737
        %v2843 = vpop.f32.mrb[0].mxu0
        %v2844 = vadd.f32 0.0, %v2843
        %v2845 = vpop.f32.mrb[0].mxu0
        %2846 = vmatprep.mubr.f32.mxu0 0.0
        %2847 = vmatmul.mubr.f32.gmra.mrb[0].mxu0 %v2740
        %v2848 = vpop.f32.mrb[0].mxu0
        %v2849 = vadd.f32 0.0, %v2848
        %v2850 = vpop.f32.mrb[0].mxu0
        %2851 = vdwg.mxu0
        %v2852 = vld [vmem:[%s10] sm:$0xff]
        %v2853 = vld [vmem:[%s10 + $0x8] sm:$0xff]
        %s2854 = scalar_lea.vmem %s10, 16
        %v2855 = vld [vmem:[%s2854] sm:$0xff]
        %v2856 = vld [vmem:[%s2854 + $0x8] sm:$0xff]
        %v2858 = vsel %vm772, %v2814, 0
        %2860 = vmatprep.subr.mxu0 0.0
        %2861 = vmatpush1.msra.mxu0 %v2855
        %2862 = vmatprep.subr.mxu0 0.0
        %2863 = vmatpush1.msra.mxu0 %v2856
        %2864 = vmatprep.subr.mxu0 0.0
        %2865 = vmatpush1.msra.mxu0 0.0
        %2866 = vmatprep.subr.mxu0 0.0
        %2867 = vmatpush1.msra.mxu0 0.0
        %2868 = vmatprep.subr.mxu0 0.0
        %2869 = vmatpush1.msra.mxu0 0.0
        %2870 = vmatprep.subr.mxu0 0.0
        %2871 = vmatpush1.msra.mxu0 0.0
        %2872 = vmatprep.subr.mxu0 0.0
        %2873 = vmatpush1.msra.mxu0 0.0
        %2874 = vmatprep.subr.mxu0 0.0
        %2875 = vmatpush1.msra.mxu0 0.0
        %2876 = vmatprep.subr.mxu0 0.0
        %2877 = vmatpush1.msra.mxu0 0.0
        %2878 = vmatprep.subr.mxu0 0.0
        %2879 = vmatpush1.msra.mxu0 0.0
        %2880 = vmatprep.subr.mxu0 0.0
        %2881 = vmatpush1.msra.mxu0 0.0
        %2882 = vmatprep.subr.mxu0 0.0
        %2883 = vmatpush1.msra.mxu0 0.0
        %2884 = vmatprep.subr.mxu0 0.0
        %2885 = vmatpush1.msra.mxu0 0.0
        %2886 = vmatprep.subr.mxu0 0.0
        %2887 = vmatpush1.msra.mxu0 0.0
        %2888 = vmatprep.subr.mxu0 0.0
        %2889 = vmatpush1.msra.mxu0 0.0
        %2890 = vmatprep.subr.mxu0 0.0
        %2891 = vmatpush1.msra.mxu0 0.0
        %2892 = vmatprep.subr.mxu0 0.0
        %2893 = vmatpush1.msra.mxu0 0.0
        %2894 = vmatprep.subr.mxu0 0.0
        %2895 = vmatpush1.msra.mxu0 0.0
        %2896 = vmatprep.subr.mxu0 0.0
        %2897 = vmatpush1.msra.mxu0 0.0
        %2898 = vmatprep.subr.mxu0 0.0
        %2899 = vmatpush1.msra.mxu0 0.0
        %2900 = vmatprep.subr.mxu0 0.0
        %2901 = vmatpush1.msra.mxu0 0.0
        %2902 = vmatprep.subr.mxu0 0.0
        %2903 = vmatpush1.msra.mxu0 0.0
        %2904 = vmatprep.subr.mxu0 0.0
        %2905 = vmatpush1.msra.mxu0 0.0
        %2906 = vmatprep.subr.mxu0 0.0
        %2907 = vmatpush1.msra.mxu0 0.0
        %2908 = vmatprep.subr.mxu0 0.0
        %2909 = vmatpush1.msra.mxu0 0.0
        %2910 = vmatprep.subr.mxu0 0.0
        %2911 = vmatpush1.msra.mxu0 0.0
        %2912 = vmatprep.subr.mxu0 0.0
        %2913 = vmatpush1.msra.mxu0 0.0
        %2914 = vmatprep.subr.mxu0 0.0
        %2915 = vmatpush1.msra.mxu0 0.0
        %2916 = vmatprep.subr.mxu0 0.0
        %2917 = vmatpush1.msra.mxu0 0.0
        %2918 = vmatprep.subr.mxu0 0.0
        %2919 = vmatpush1.msra.mxu0 0.0
        %2920 = vmatprep.subr.mxu0 0.0
        %2921 = vmatpush1.msra.mxu0 0.0
        %2922 = vmatprep.subr.mxu0 0.0
        %2923 = vmatpush1.msra.mxu0 0.0
        %2924 = vmatprep.mubr.f32.mxu0 0.0
        %2925 = vmatmul.mubr.f32.gmra.mrb[0].mxu0 %v2858
        %v2926 = vpop.f32.mrb[0].mxu0
        %v2927 = vadd.f32 0.0, %v2926
        %v2928 = vpop.f32.mrb[0].mxu0
        %2929 = vdwg.mxu0
        %v2931 = vsel %vm772, %v2809, 0
        %2933 = vmatprep.subr.mxu0 0.0
        %2934 = vmatpush1.msra.mxu0 %v2852
        %2935 = vmatprep.subr.mxu0 0.0
        %2936 = vmatpush1.msra.mxu0 %v2853
        %2937 = vmatprep.subr.mxu0 0.0
        %2938 = vmatpush1.msra.mxu0 0.0
        %2939 = vmatprep.subr.mxu0 0.0
        %2940 = vmatpush1.msra.mxu0 0.0
        %2941 = vmatprep.subr.mxu0 0.0
        %2942 = vmatpush1.msra.mxu0 0.0
        %2943 = vmatprep.subr.mxu0 0.0
        %2944 = vmatpush1.msra.mxu0 0.0
        %2945 = vmatprep.subr.mxu0 0.0
        %2946 = vmatpush1.msra.mxu0 0.0
        %2947 = vmatprep.subr.mxu0 0.0
        %2948 = vmatpush1.msra.mxu0 0.0
        %2949 = vmatprep.subr.mxu0 0.0
        %2950 = vmatpush1.msra.mxu0 0.0
        %2951 = vmatprep.subr.mxu0 0.0
        %2952 = vmatpush1.msra.mxu0 0.0
        %2953 = vmatprep.subr.mxu0 0.0
        %2954 = vmatpush1.msra.mxu0 0.0
        %2955 = vmatprep.subr.mxu0 0.0
        %2956 = vmatpush1.msra.mxu0 0.0
        %2957 = vmatprep.subr.mxu0 0.0
        %2958 = vmatpush1.msra.mxu0 0.0
        %2959 = vmatprep.subr.mxu0 0.0
        %2960 = vmatpush1.msra.mxu0 0.0
        %2961 = vmatprep.subr.mxu0 0.0
        %2962 = vmatpush1.msra.mxu0 0.0
        %2963 = vmatprep.subr.mxu0 0.0
        %2964 = vmatpush1.msra.mxu0 0.0
        %2965 = vmatprep.subr.mxu0 0.0
        %2966 = vmatpush1.msra.mxu0 0.0
        %2967 = vmatprep.subr.mxu0 0.0
        %2968 = vmatpush1.msra.mxu0 0.0
        %2969 = vmatprep.subr.mxu0 0.0
        %2970 = vmatpush1.msra.mxu0 0.0
        %2971 = vmatprep.subr.mxu0 0.0
        %2972 = vmatpush1.msra.mxu0 0.0
        %2973 = vmatprep.subr.mxu0 0.0
        %2974 = vmatpush1.msra.mxu0 0.0
        %2975 = vmatprep.subr.mxu0 0.0
        %2976 = vmatpush1.msra.mxu0 0.0
        %2977 = vmatprep.subr.mxu0 0.0
        %2978 = vmatpush1.msra.mxu0 0.0
        %2979 = vmatprep.subr.mxu0 0.0
        %2980 = vmatpush1.msra.mxu0 0.0
        %2981 = vmatprep.subr.mxu0 0.0
        %2982 = vmatpush1.msra.mxu0 0.0
        %2983 = vmatprep.subr.mxu0 0.0
        %2984 = vmatpush1.msra.mxu0 0.0
        %2985 = vmatprep.subr.mxu0 0.0
        %2986 = vmatpush1.msra.mxu0 0.0
        %2987 = vmatprep.subr.mxu0 0.0
        %2988 = vmatpush1.msra.mxu0 0.0
        %2989 = vmatprep.subr.mxu0 0.0
        %2990 = vmatpush1.msra.mxu0 0.0
        %2991 = vmatprep.subr.mxu0 0.0
        %2992 = vmatpush1.msra.mxu0 0.0
        %2993 = vmatprep.subr.mxu0 0.0
        %2994 = vmatpush1.msra.mxu0 0.0
        %2995 = vmatprep.subr.mxu0 0.0
        %2996 = vmatpush1.msra.mxu0 0.0
        %2997 = vmatprep.mubr.f32.mxu0 0.0
        %2998 = vmatmul.mubr.f32.gmra.mrb[0].mxu0 %v2931
        %v2999 = vpop.f32.mrb[0].mxu0
        %v3000 = vadd.f32 %v2927, %v2999
        %v3001 = vpop.f32.mrb[0].mxu0
        %3002 = vdwg.mxu0
        %s3003 = scalar_lea.vmem %s10, 32
        %v3004 = vld [vmem:[%s3003] sm:$0xff]
        %v3005 = vld [vmem:[%s3003 + $0x8] sm:$0xff]
        %v3007 = vsel %vm772, %v2819, 0
        %3009 = vmatprep.subr.mxu0 0.0
        %3010 = vmatpush1.msra.mxu0 %v3004
        %3011 = vmatprep.subr.mxu0 0.0
        %3012 = vmatpush1.msra.mxu0 %v3005
        %3013 = vmatprep.subr.mxu0 0.0
        %3014 = vmatpush1.msra.mxu0 0.0
        %3015 = vmatprep.subr.mxu0 0.0
        %3016 = vmatpush1.msra.mxu0 0.0
        %3017 = vmatprep.subr.mxu0 0.0
        %3018 = vmatpush1.msra.mxu0 0.0
        %3019 = vmatprep.subr.mxu0 0.0
        %3020 = vmatpush1.msra.mxu0 0.0
        %3021 = vmatprep.subr.mxu0 0.0
        %3022 = vmatpush1.msra.mxu0 0.0
        %3023 = vmatprep.subr.mxu0 0.0
        %3024 = vmatpush1.msra.mxu0 0.0
        %3025 = vmatprep.subr.mxu0 0.0
        %3026 = vmatpush1.msra.mxu0 0.0
        %3027 = vmatprep.subr.mxu0 0.0
        %3028 = vmatpush1.msra.mxu0 0.0
        %3029 = vmatprep.subr.mxu0 0.0
        %3030 = vmatpush1.msra.mxu0 0.0
        %3031 = vmatprep.subr.mxu0 0.0
        %3032 = vmatpush1.msra.mxu0 0.0
        %3033 = vmatprep.subr.mxu0 0.0
        %3034 = vmatpush1.msra.mxu0 0.0
        %3035 = vmatprep.subr.mxu0 0.0
        %3036 = vmatpush1.msra.mxu0 0.0
        %3037 = vmatprep.subr.mxu0 0.0
        %3038 = vmatpush1.msra.mxu0 0.0
        %3039 = vmatprep.subr.mxu0 0.0
        %3040 = vmatpush1.msra.mxu0 0.0
        %3041 = vmatprep.subr.mxu0 0.0
        %3042 = vmatpush1.msra.mxu0 0.0
        %3043 = vmatprep.subr.mxu0 0.0
        %3044 = vmatpush1.msra.mxu0 0.0
        %3045 = vmatprep.subr.mxu0 0.0
        %3046 = vmatpush1.msra.mxu0 0.0
        %3047 = vmatprep.subr.mxu0 0.0
        %3048 = vmatpush1.msra.mxu0 0.0
        %3049 = vmatprep.subr.mxu0 0.0
        %3050 = vmatpush1.msra.mxu0 0.0
        %3051 = vmatprep.subr.mxu0 0.0
        %3052 = vmatpush1.msra.mxu0 0.0
        %3053 = vmatprep.subr.mxu0 0.0
        %3054 = vmatpush1.msra.mxu0 0.0
        %3055 = vmatprep.subr.mxu0 0.0
        %3056 = vmatpush1.msra.mxu0 0.0
        %3057 = vmatprep.subr.mxu0 0.0
        %3058 = vmatpush1.msra.mxu0 0.0
        %3059 = vmatprep.subr.mxu0 0.0
        %3060 = vmatpush1.msra.mxu0 0.0
        %3061 = vmatprep.subr.mxu0 0.0
        %3062 = vmatpush1.msra.mxu0 0.0
        %3063 = vmatprep.subr.mxu0 0.0
        %3064 = vmatpush1.msra.mxu0 0.0
        %3065 = vmatprep.subr.mxu0 0.0
        %3066 = vmatpush1.msra.mxu0 0.0
        %3067 = vmatprep.subr.mxu0 0.0
        %3068 = vmatpush1.msra.mxu0 0.0
        %3069 = vmatprep.subr.mxu0 0.0
        %3070 = vmatpush1.msra.mxu0 0.0
        %3071 = vmatprep.subr.mxu0 0.0
        %3072 = vmatpush1.msra.mxu0 0.0
        %3073 = vmatprep.mubr.f32.mxu0 0.0
        %3074 = vmatmul.mubr.f32.gmra.mrb[0].mxu0 %v3007
        %v3075 = vpop.f32.mrb[0].mxu0
        %v3076 = vadd.f32 0.0, %v3075
        %v3077 = vpop.f32.mrb[0].mxu0
        %3078 = vdwg.mxu0
        %v3079 = vadd.f32 %v3000, %v3076
        %s3080 = scalar_lea.vmem %s10, 48
        %v3081 = vld [vmem:[%s3080] sm:$0xff]
        %v3082 = vld [vmem:[%s3080 + $0x8] sm:$0xff]
        %v3084 = vsel %vm772, %v2824, 0
        %3086 = vmatprep.subr.mxu0 0.0
        %3087 = vmatpush1.msra.mxu0 %v3081
        %3088 = vmatprep.subr.mxu0 0.0
        %3089 = vmatpush1.msra.mxu0 %v3082
        %3090 = vmatprep.subr.mxu0 0.0
        %3091 = vmatpush1.msra.mxu0 0.0
        %3092 = vmatprep.subr.mxu0 0.0
        %3093 = vmatpush1.msra.mxu0 0.0
        %3094 = vmatprep.subr.mxu0 0.0
        %3095 = vmatpush1.msra.mxu0 0.0
        %3096 = vmatprep.subr.mxu0 0.0
        %3097 = vmatpush1.msra.mxu0 0.0
        %3098 = vmatprep.subr.mxu0 0.0
        %3099 = vmatpush1.msra.mxu0 0.0
        %3100 = vmatprep.subr.mxu0 0.0
        %3101 = vmatpush1.msra.mxu0 0.0
        %3102 = vmatprep.subr.mxu0 0.0
        %3103 = vmatpush1.msra.mxu0 0.0
        %3104 = vmatprep.subr.mxu0 0.0
        %3105 = vmatpush1.msra.mxu0 0.0
        %3106 = vmatprep.subr.mxu0 0.0
        %3107 = vmatpush1.msra.mxu0 0.0
        %3108 = vmatprep.subr.mxu0 0.0
        %3109 = vmatpush1.msra.mxu0 0.0
        %3110 = vmatprep.subr.mxu0 0.0
        %3111 = vmatpush1.msra.mxu0 0.0
        %3112 = vmatprep.subr.mxu0 0.0
        %3113 = vmatpush1.msra.mxu0 0.0
        %3114 = vmatprep.subr.mxu0 0.0
        %3115 = vmatpush1.msra.mxu0 0.0
        %3116 = vmatprep.subr.mxu0 0.0
        %3117 = vmatpush1.msra.mxu0 0.0
        %3118 = vmatprep.subr.mxu0 0.0
        %3119 = vmatpush1.msra.mxu0 0.0
        %3120 = vmatprep.subr.mxu0 0.0
        %3121 = vmatpush1.msra.mxu0 0.0
        %3122 = vmatprep.subr.mxu0 0.0
        %3123 = vmatpush1.msra.mxu0 0.0
        %3124 = vmatprep.subr.mxu0 0.0
        %3125 = vmatpush1.msra.mxu0 0.0
        %3126 = vmatprep.subr.mxu0 0.0
        %3127 = vmatpush1.msra.mxu0 0.0
        %3128 = vmatprep.subr.mxu0 0.0
        %3129 = vmatpush1.msra.mxu0 0.0
        %3130 = vmatprep.subr.mxu0 0.0
        %3131 = vmatpush1.msra.mxu0 0.0
        %3132 = vmatprep.subr.mxu0 0.0
        %3133 = vmatpush1.msra.mxu0 0.0
        %3134 = vmatprep.subr.mxu0 0.0
        %3135 = vmatpush1.msra.mxu0 0.0
        %3136 = vmatprep.subr.mxu0 0.0
        %3137 = vmatpush1.msra.mxu0 0.0
        %3138 = vmatprep.subr.mxu0 0.0
        %3139 = vmatpush1.msra.mxu0 0.0
        %3140 = vmatprep.subr.mxu0 0.0
        %3141 = vmatpush1.msra.mxu0 0.0
        %3142 = vmatprep.subr.mxu0 0.0
        %3143 = vmatpush1.msra.mxu0 0.0
        %3144 = vmatprep.subr.mxu0 0.0
        %3145 = vmatpush1.msra.mxu0 0.0
        %3146 = vmatprep.subr.mxu0 0.0
        %3147 = vmatpush1.msra.mxu0 0.0
        %3148 = vmatprep.subr.mxu0 0.0
        %3149 = vmatpush1.msra.mxu0 0.0
        %3150 = vmatprep.mubr.f32.mxu0 0.0
        %3151 = vmatmul.mubr.f32.gmra.mrb[0].mxu0 %v3084
        %v3152 = vpop.f32.mrb[0].mxu0
        %v3153 = vadd.f32 0.0, %v3152
        %v3154 = vpop.f32.mrb[0].mxu0
        %3155 = vdwg.mxu0
        %v3156 = vadd.f32 %v3079, %v3153
        %s3157 = scalar_lea.vmem %s10, 64
        %v3158 = vld [vmem:[%s3157] sm:$0xff]
        %v3159 = vld [vmem:[%s3157 + $0x8] sm:$0xff]
        %v3161 = vsel %vm772, %v2829, 0
        %3163 = vmatprep.subr.mxu0 0.0
        %3164 = vmatpush1.msra.mxu0 %v3158
        %3165 = vmatprep.subr.mxu0 0.0
        %3166 = vmatpush1.msra.mxu0 %v3159
        %3167 = vmatprep.subr.mxu0 0.0
        %3168 = vmatpush1.msra.mxu0 0.0
        %3169 = vmatprep.subr.mxu0 0.0
        %3170 = vmatpush1.msra.mxu0 0.0
        %3171 = vmatprep.subr.mxu0 0.0
        %3172 = vmatpush1.msra.mxu0 0.0
        %3173 = vmatprep.subr.mxu0 0.0
        %3174 = vmatpush1.msra.mxu0 0.0
        %3175 = vmatprep.subr.mxu0 0.0
        %3176 = vmatpush1.msra.mxu0 0.0
        %3177 = vmatprep.subr.mxu0 0.0
        %3178 = vmatpush1.msra.mxu0 0.0
        %3179 = vmatprep.subr.mxu0 0.0
        %3180 = vmatpush1.msra.mxu0 0.0
        %3181 = vmatprep.subr.mxu0 0.0
        %3182 = vmatpush1.msra.mxu0 0.0
        %3183 = vmatprep.subr.mxu0 0.0
        %3184 = vmatpush1.msra.mxu0 0.0
        %3185 = vmatprep.subr.mxu0 0.0
        %3186 = vmatpush1.msra.mxu0 0.0
        %3187 = vmatprep.subr.mxu0 0.0
        %3188 = vmatpush1.msra.mxu0 0.0
        %3189 = vmatprep.subr.mxu0 0.0
        %3190 = vmatpush1.msra.mxu0 0.0
        %3191 = vmatprep.subr.mxu0 0.0
        %3192 = vmatpush1.msra.mxu0 0.0
        %3193 = vmatprep.subr.mxu0 0.0
        %3194 = vmatpush1.msra.mxu0 0.0
        %3195 = vmatprep.subr.mxu0 0.0
        %3196 = vmatpush1.msra.mxu0 0.0
        %3197 = vmatprep.subr.mxu0 0.0
        %3198 = vmatpush1.msra.mxu0 0.0
        %3199 = vmatprep.subr.mxu0 0.0
        %3200 = vmatpush1.msra.mxu0 0.0
        %3201 = vmatprep.subr.mxu0 0.0
        %3202 = vmatpush1.msra.mxu0 0.0
        %3203 = vmatprep.subr.mxu0 0.0
        %3204 = vmatpush1.msra.mxu0 0.0
        %3205 = vmatprep.subr.mxu0 0.0
        %3206 = vmatpush1.msra.mxu0 0.0
        %3207 = vmatprep.subr.mxu0 0.0
        %3208 = vmatpush1.msra.mxu0 0.0
        %3209 = vmatprep.subr.mxu0 0.0
        %3210 = vmatpush1.msra.mxu0 0.0
        %3211 = vmatprep.subr.mxu0 0.0
        %3212 = vmatpush1.msra.mxu0 0.0
        %3213 = vmatprep.subr.mxu0 0.0
        %3214 = vmatpush1.msra.mxu0 0.0
        %3215 = vmatprep.subr.mxu0 0.0
        %3216 = vmatpush1.msra.mxu0 0.0
        %3217 = vmatprep.subr.mxu0 0.0
        %3218 = vmatpush1.msra.mxu0 0.0
        %3219 = vmatprep.subr.mxu0 0.0
        %3220 = vmatpush1.msra.mxu0 0.0
        %3221 = vmatprep.subr.mxu0 0.0
        %3222 = vmatpush1.msra.mxu0 0.0
        %3223 = vmatprep.subr.mxu0 0.0
        %3224 = vmatpush1.msra.mxu0 0.0
        %3225 = vmatprep.subr.mxu0 0.0
        %3226 = vmatpush1.msra.mxu0 0.0
        %3227 = vmatprep.mubr.f32.mxu0 0.0
        %3228 = vmatmul.mubr.f32.gmra.mrb[0].mxu0 %v3161
        %v3229 = vpop.f32.mrb[0].mxu0
        %v3230 = vadd.f32 0.0, %v3229
        %v3231 = vpop.f32.mrb[0].mxu0
        %3232 = vdwg.mxu0
        %v3233 = vadd.f32 %v3156, %v3230
        %s3234 = scalar_lea.vmem %s10, 80
        %v3235 = vld [vmem:[%s3234] sm:$0xff]
        %v3236 = vld [vmem:[%s3234 + $0x8] sm:$0xff]
        %v3238 = vsel %vm772, %v2834, 0
        %3240 = vmatprep.subr.mxu0 0.0
        %3241 = vmatpush1.msra.mxu0 %v3235
        %3242 = vmatprep.subr.mxu0 0.0
        %3243 = vmatpush1.msra.mxu0 %v3236
        %3244 = vmatprep.subr.mxu0 0.0
        %3245 = vmatpush1.msra.mxu0 0.0
        %3246 = vmatprep.subr.mxu0 0.0
        %3247 = vmatpush1.msra.mxu0 0.0
        %3248 = vmatprep.subr.mxu0 0.0
        %3249 = vmatpush1.msra.mxu0 0.0
        %3250 = vmatprep.subr.mxu0 0.0
        %3251 = vmatpush1.msra.mxu0 0.0
        %3252 = vmatprep.subr.mxu0 0.0
        %3253 = vmatpush1.msra.mxu0 0.0
        %3254 = vmatprep.subr.mxu0 0.0
        %3255 = vmatpush1.msra.mxu0 0.0
        %3256 = vmatprep.subr.mxu0 0.0
        %3257 = vmatpush1.msra.mxu0 0.0
        %3258 = vmatprep.subr.mxu0 0.0
        %3259 = vmatpush1.msra.mxu0 0.0
        %3260 = vmatprep.subr.mxu0 0.0
        %3261 = vmatpush1.msra.mxu0 0.0
        %3262 = vmatprep.subr.mxu0 0.0
        %3263 = vmatpush1.msra.mxu0 0.0
        %3264 = vmatprep.subr.mxu0 0.0
        %3265 = vmatpush1.msra.mxu0 0.0
        %3266 = vmatprep.subr.mxu0 0.0
        %3267 = vmatpush1.msra.mxu0 0.0
        %3268 = vmatprep.subr.mxu0 0.0
        %3269 = vmatpush1.msra.mxu0 0.0
        %3270 = vmatprep.subr.mxu0 0.0
        %3271 = vmatpush1.msra.mxu0 0.0
        %3272 = vmatprep.subr.mxu0 0.0
        %3273 = vmatpush1.msra.mxu0 0.0
        %3274 = vmatprep.subr.mxu0 0.0
        %3275 = vmatpush1.msra.mxu0 0.0
        %3276 = vmatprep.subr.mxu0 0.0
        %3277 = vmatpush1.msra.mxu0 0.0
        %3278 = vmatprep.subr.mxu0 0.0
        %3279 = vmatpush1.msra.mxu0 0.0
        %3280 = vmatprep.subr.mxu0 0.0
        %3281 = vmatpush1.msra.mxu0 0.0
        %3282 = vmatprep.subr.mxu0 0.0
        %3283 = vmatpush1.msra.mxu0 0.0
        %3284 = vmatprep.subr.mxu0 0.0
        %3285 = vmatpush1.msra.mxu0 0.0
        %3286 = vmatprep.subr.mxu0 0.0
        %3287 = vmatpush1.msra.mxu0 0.0
        %3288 = vmatprep.subr.mxu0 0.0
        %3289 = vmatpush1.msra.mxu0 0.0
        %3290 = vmatprep.subr.mxu0 0.0
        %3291 = vmatpush1.msra.mxu0 0.0
        %3292 = vmatprep.subr.mxu0 0.0
        %3293 = vmatpush1.msra.mxu0 0.0
        %3294 = vmatprep.subr.mxu0 0.0
        %3295 = vmatpush1.msra.mxu0 0.0
        %3296 = vmatprep.subr.mxu0 0.0
        %3297 = vmatpush1.msra.mxu0 0.0
        %3298 = vmatprep.subr.mxu0 0.0
        %3299 = vmatpush1.msra.mxu0 0.0
        %3300 = vmatprep.subr.mxu0 0.0
        %3301 = vmatpush1.msra.mxu0 0.0
        %3302 = vmatprep.subr.mxu0 0.0
        %3303 = vmatpush1.msra.mxu0 0.0
        %3304 = vmatprep.mubr.f32.mxu0 0.0
        %3305 = vmatmul.mubr.f32.gmra.mrb[0].mxu0 %v3238
        %v3306 = vpop.f32.mrb[0].mxu0
        %v3307 = vadd.f32 0.0, %v3306
        %v3308 = vpop.f32.mrb[0].mxu0
        %3309 = vdwg.mxu0
        %v3310 = vadd.f32 %v3233, %v3307
        %s3311 = scalar_lea.vmem %s10, 96
        %v3312 = vld [vmem:[%s3311] sm:$0xff]
        %v3313 = vld [vmem:[%s3311 + $0x8] sm:$0xff]
        %v3315 = vsel %vm772, %v2839, 0
        %3317 = vmatprep.subr.mxu0 0.0
        %3318 = vmatpush1.msra.mxu0 %v3312
        %3319 = vmatprep.subr.mxu0 0.0
        %3320 = vmatpush1.msra.mxu0 %v3313
        %3321 = vmatprep.subr.mxu0 0.0
        %3322 = vmatpush1.msra.mxu0 0.0
        %3323 = vmatprep.subr.mxu0 0.0
        %3324 = vmatpush1.msra.mxu0 0.0
        %3325 = vmatprep.subr.mxu0 0.0
        %3326 = vmatpush1.msra.mxu0 0.0
        %3327 = vmatprep.subr.mxu0 0.0
        %3328 = vmatpush1.msra.mxu0 0.0
        %3329 = vmatprep.subr.mxu0 0.0
        %3330 = vmatpush1.msra.mxu0 0.0
        %3331 = vmatprep.subr.mxu0 0.0
        %3332 = vmatpush1.msra.mxu0 0.0
        %3333 = vmatprep.subr.mxu0 0.0
        %3334 = vmatpush1.msra.mxu0 0.0
        %3335 = vmatprep.subr.mxu0 0.0
        %3336 = vmatpush1.msra.mxu0 0.0
        %3337 = vmatprep.subr.mxu0 0.0
        %3338 = vmatpush1.msra.mxu0 0.0
        %3339 = vmatprep.subr.mxu0 0.0
        %3340 = vmatpush1.msra.mxu0 0.0
        %3341 = vmatprep.subr.mxu0 0.0
        %3342 = vmatpush1.msra.mxu0 0.0
        %3343 = vmatprep.subr.mxu0 0.0
        %3344 = vmatpush1.msra.mxu0 0.0
        %3345 = vmatprep.subr.mxu0 0.0
        %3346 = vmatpush1.msra.mxu0 0.0
        %3347 = vmatprep.subr.mxu0 0.0
        %3348 = vmatpush1.msra.mxu0 0.0
        %3349 = vmatprep.subr.mxu0 0.0
        %3350 = vmatpush1.msra.mxu0 0.0
        %3351 = vmatprep.subr.mxu0 0.0
        %3352 = vmatpush1.msra.mxu0 0.0
        %3353 = vmatprep.subr.mxu0 0.0
        %3354 = vmatpush1.msra.mxu0 0.0
        %3355 = vmatprep.subr.mxu0 0.0
        %3356 = vmatpush1.msra.mxu0 0.0
        %3357 = vmatprep.subr.mxu0 0.0
        %3358 = vmatpush1.msra.mxu0 0.0
        %3359 = vmatprep.subr.mxu0 0.0
        %3360 = vmatpush1.msra.mxu0 0.0
        %3361 = vmatprep.subr.mxu0 0.0
        %3362 = vmatpush1.msra.mxu0 0.0
        %3363 = vmatprep.subr.mxu0 0.0
        %3364 = vmatpush1.msra.mxu0 0.0
        %3365 = vmatprep.subr.mxu0 0.0
        %3366 = vmatpush1.msra.mxu0 0.0
        %3367 = vmatprep.subr.mxu0 0.0
        %3368 = vmatpush1.msra.mxu0 0.0
        %3369 = vmatprep.subr.mxu0 0.0
        %3370 = vmatpush1.msra.mxu0 0.0
        %3371 = vmatprep.subr.mxu0 0.0
        %3372 = vmatpush1.msra.mxu0 0.0
        %3373 = vmatprep.subr.mxu0 0.0
        %3374 = vmatpush1.msra.mxu0 0.0
        %3375 = vmatprep.subr.mxu0 0.0
        %3376 = vmatpush1.msra.mxu0 0.0
        %3377 = vmatprep.subr.mxu0 0.0
        %3378 = vmatpush1.msra.mxu0 0.0
        %3379 = vmatprep.subr.mxu0 0.0
        %3380 = vmatpush1.msra.mxu0 0.0
        %3381 = vmatprep.mubr.f32.mxu0 0.0
        %3382 = vmatmul.mubr.f32.gmra.mrb[0].mxu0 %v3315
        %v3383 = vpop.f32.mrb[0].mxu0
        %v3384 = vadd.f32 0.0, %v3383
        %v3385 = vpop.f32.mrb[0].mxu0
        %3386 = vdwg.mxu0
        %v3387 = vadd.f32 %v3310, %v3384
        %s3388 = scalar_lea.vmem %s10, 112
        %v3389 = vld [vmem:[%s3388] sm:$0xff]
        %v3390 = vld [vmem:[%s3388 + $0x8] sm:$0xff]
        %v3392 = vsel %vm772, %v2844, 0
        %3394 = vmatprep.subr.mxu0 0.0
        %3395 = vmatpush1.msra.mxu0 %v3389
        %3396 = vmatprep.subr.mxu0 0.0
        %3397 = vmatpush1.msra.mxu0 %v3390
        %3398 = vmatprep.subr.mxu0 0.0
        %3399 = vmatpush1.msra.mxu0 0.0
        %3400 = vmatprep.subr.mxu0 0.0
        %3401 = vmatpush1.msra.mxu0 0.0
        %3402 = vmatprep.subr.mxu0 0.0
        %3403 = vmatpush1.msra.mxu0 0.0
        %3404 = vmatprep.subr.mxu0 0.0
        %3405 = vmatpush1.msra.mxu0 0.0
        %3406 = vmatprep.subr.mxu0 0.0
        %3407 = vmatpush1.msra.mxu0 0.0
        %3408 = vmatprep.subr.mxu0 0.0
        %3409 = vmatpush1.msra.mxu0 0.0
        %3410 = vmatprep.subr.mxu0 0.0
        %3411 = vmatpush1.msra.mxu0 0.0
        %3412 = vmatprep.subr.mxu0 0.0
        %3413 = vmatpush1.msra.mxu0 0.0
        %3414 = vmatprep.subr.mxu0 0.0
        %3415 = vmatpush1.msra.mxu0 0.0
        %3416 = vmatprep.subr.mxu0 0.0
        %3417 = vmatpush1.msra.mxu0 0.0
        %3418 = vmatprep.subr.mxu0 0.0
        %3419 = vmatpush1.msra.mxu0 0.0
        %3420 = vmatprep.subr.mxu0 0.0
        %3421 = vmatpush1.msra.mxu0 0.0
        %3422 = vmatprep.subr.mxu0 0.0
        %3423 = vmatpush1.msra.mxu0 0.0
        %3424 = vmatprep.subr.mxu0 0.0
        %3425 = vmatpush1.msra.mxu0 0.0
        %3426 = vmatprep.subr.mxu0 0.0
        %3427 = vmatpush1.msra.mxu0 0.0
        %3428 = vmatprep.subr.mxu0 0.0
        %3429 = vmatpush1.msra.mxu0 0.0
        %3430 = vmatprep.subr.mxu0 0.0
        %3431 = vmatpush1.msra.mxu0 0.0
        %3432 = vmatprep.subr.mxu0 0.0
        %3433 = vmatpush1.msra.mxu0 0.0
        %3434 = vmatprep.subr.mxu0 0.0
        %3435 = vmatpush1.msra.mxu0 0.0
        %3436 = vmatprep.subr.mxu0 0.0
        %3437 = vmatpush1.msra.mxu0 0.0
        %3438 = vmatprep.subr.mxu0 0.0
        %3439 = vmatpush1.msra.mxu0 0.0
        %3440 = vmatprep.subr.mxu0 0.0
        %3441 = vmatpush1.msra.mxu0 0.0
        %3442 = vmatprep.subr.mxu0 0.0
        %3443 = vmatpush1.msra.mxu0 0.0
        %3444 = vmatprep.subr.mxu0 0.0
        %3445 = vmatpush1.msra.mxu0 0.0
        %3446 = vmatprep.subr.mxu0 0.0
        %3447 = vmatpush1.msra.mxu0 0.0
        %3448 = vmatprep.subr.mxu0 0.0
        %3449 = vmatpush1.msra.mxu0 0.0
        %3450 = vmatprep.subr.mxu0 0.0
        %3451 = vmatpush1.msra.mxu0 0.0
        %3452 = vmatprep.subr.mxu0 0.0
        %3453 = vmatpush1.msra.mxu0 0.0
        %3454 = vmatprep.subr.mxu0 0.0
        %3455 = vmatpush1.msra.mxu0 0.0
        %3456 = vmatprep.subr.mxu0 0.0
        %3457 = vmatpush1.msra.mxu0 0.0
        %3458 = vmatprep.mubr.f32.mxu0 0.0
        %3459 = vmatmul.mubr.f32.gmra.mrb[0].mxu0 %v3392
        %v3460 = vpop.f32.mrb[0].mxu0
        %v3461 = vadd.f32 0.0, %v3460
        %v3462 = vpop.f32.mrb[0].mxu0
        %3463 = vdwg.mxu0
        %v3464 = vadd.f32 %v3387, %v3461
        %s3465 = scalar_lea.vmem %s10, 128
        %v3466 = vld [vmem:[%s3465] sm:$0xff]
        %v3467 = vld [vmem:[%s3465 + $0x8] sm:$0xff]
        %v3469 = vsel %vm772, %v2849, 0
        %3471 = vmatprep.subr.mxu0 0.0
        %3472 = vmatpush1.msra.mxu0 %v3466
        %3473 = vmatprep.subr.mxu0 0.0
        %3474 = vmatpush1.msra.mxu0 %v3467
        %3475 = vmatprep.subr.mxu0 0.0
        %3476 = vmatpush1.msra.mxu0 0.0
        %3477 = vmatprep.subr.mxu0 0.0
        %3478 = vmatpush1.msra.mxu0 0.0
        %3479 = vmatprep.subr.mxu0 0.0
        %3480 = vmatpush1.msra.mxu0 0.0
        %3481 = vmatprep.subr.mxu0 0.0
        %3482 = vmatpush1.msra.mxu0 0.0
        %3483 = vmatprep.subr.mxu0 0.0
        %3484 = vmatpush1.msra.mxu0 0.0
        %3485 = vmatprep.subr.mxu0 0.0
        %3486 = vmatpush1.msra.mxu0 0.0
        %3487 = vmatprep.subr.mxu0 0.0
        %3488 = vmatpush1.msra.mxu0 0.0
        %3489 = vmatprep.subr.mxu0 0.0
        %3490 = vmatpush1.msra.mxu0 0.0
        %3491 = vmatprep.subr.mxu0 0.0
        %3492 = vmatpush1.msra.mxu0 0.0
        %3493 = vmatprep.subr.mxu0 0.0
        %3494 = vmatpush1.msra.mxu0 0.0
        %3495 = vmatprep.subr.mxu0 0.0
        %3496 = vmatpush1.msra.mxu0 0.0
        %3497 = vmatprep.subr.mxu0 0.0
        %3498 = vmatpush1.msra.mxu0 0.0
        %3499 = vmatprep.subr.mxu0 0.0
        %3500 = vmatpush1.msra.mxu0 0.0
        %3501 = vmatprep.subr.mxu0 0.0
        %3502 = vmatpush1.msra.mxu0 0.0
        %3503 = vmatprep.subr.mxu0 0.0
        %3504 = vmatpush1.msra.mxu0 0.0
        %3505 = vmatprep.subr.mxu0 0.0
        %3506 = vmatpush1.msra.mxu0 0.0
        %3507 = vmatprep.subr.mxu0 0.0
        %3508 = vmatpush1.msra.mxu0 0.0
        %3509 = vmatprep.subr.mxu0 0.0
        %3510 = vmatpush1.msra.mxu0 0.0
        %3511 = vmatprep.subr.mxu0 0.0
        %3512 = vmatpush1.msra.mxu0 0.0
        %3513 = vmatprep.subr.mxu0 0.0
        %3514 = vmatpush1.msra.mxu0 0.0
        %3515 = vmatprep.subr.mxu0 0.0
        %3516 = vmatpush1.msra.mxu0 0.0
        %3517 = vmatprep.subr.mxu0 0.0
        %3518 = vmatpush1.msra.mxu0 0.0
        %3519 = vmatprep.subr.mxu0 0.0
        %3520 = vmatpush1.msra.mxu0 0.0
        %3521 = vmatprep.subr.mxu0 0.0
        %3522 = vmatpush1.msra.mxu0 0.0
        %3523 = vmatprep.subr.mxu0 0.0
        %3524 = vmatpush1.msra.mxu0 0.0
        %3525 = vmatprep.subr.mxu0 0.0
        %3526 = vmatpush1.msra.mxu0 0.0
        %3527 = vmatprep.subr.mxu0 0.0
        %3528 = vmatpush1.msra.mxu0 0.0
        %3529 = vmatprep.subr.mxu0 0.0
        %3530 = vmatpush1.msra.mxu0 0.0
        %3531 = vmatprep.subr.mxu0 0.0
        %3532 = vmatpush1.msra.mxu0 0.0
        %3533 = vmatprep.subr.mxu0 0.0
        %3534 = vmatpush1.msra.mxu0 0.0
        %3535 = vmatprep.mubr.f32.mxu0 0.0
        %3536 = vmatmul.mubr.f32.gmra.mrb[0].mxu0 %v3469
        %v3537 = vpop.f32.mrb[0].mxu0
        %v3538 = vadd.f32 0.0, %v3537
        %v3539 = vpop.f32.mrb[0].mxu0
        %3540 = vdwg.mxu0
        %v3541 = vadd.f32 %v3464, %v3538
        %v3542 = vsel %vm938, %v3541, 0.0
        %3543 = vadd.xlane.f32.xlu0 %v3542
        %v3544 = vpop.xlane.xlu0 %3543
        %v3545 = vmul.f32 %v3544, 0.015625
        %v3546 = vmul.f32 %v3541, %v3541
        %v3547 = vsel %vm938, %v3546, 0.0
        %3548 = vadd.xlane.f32.xlu0 %v3547
        %v3549 = vpop.xlane.xlu0 %3548
        %v3550 = vmul.f32 %v3549, 0.015625
        %v3551 = vmul.f32 %v3545, %v3545
        %v3552 = vsub.f32 %v3550, %v3551
        %v3553 = vmax.f32 %v3552, 0.0
        %v3554 = vsub.f32 %v3541, %v3545
        %v3555 = vadd.f32 %v3553, 1e-05
        %v3556 = vrsqrt.pop %v3555
        %v3557 = vmul.f32 %v3554, %v3556
        %v3558 = vld [vmem:[%s11] sm:$0xff]
        %3560 = vset.pattern.permute.xlu0 0
        %3561 = vperm.xlu0 %3560, %v3558
        %v3562 = vpop.permute.xlu0 %3561
        %v3564 = vmul.f32 %v3557, %v3562
        %v3565 = vld [vmem:[%s12] sm:$0xff]
        %3567 = vset.pattern.permute.xlu0 0
        %3568 = vperm.xlu0 %3567, %v3565
        %v3569 = vpop.permute.xlu0 %3568
        %v3571 = vadd.f32 %v3564, %v3569
        %vm3572 = vcmp.gt.f32.partialorder %v3571, 0.0
        %v3573 = vmul.f32 %v3571, 0.01
        %v3574 = vsel %vm3572, %v3571, %v3573
        %v3575 = vld [vmem:[%s13] sm:$0xff]
        %v3576 = vld [vmem:[%s13 + $0x8] sm:$0xff]
        %v3577 = vld [vmem:[%s13 + $0x10] sm:$0xff]
        %v3578 = vld [vmem:[%s13 + $0x18] sm:$0xff]
        %v3579 = vld [vmem:[%s13 + $0x20] sm:$0xff]
        %v3580 = vld [vmem:[%s13 + $0x28] sm:$0xff]
        %v3581 = vld [vmem:[%s13 + $0x30] sm:$0xff]
        %v3582 = vld [vmem:[%s13 + $0x38] sm:$0xff]
        %v3583 = vld [vmem:[%s13 + $0x40] sm:$0xff]
        %v3584 = vld [vmem:[%s13 + $0x48] sm:$0xff]
        %v3585 = vld [vmem:[%s13 + $0x50] sm:$0xff]
        %v3586 = vld [vmem:[%s13 + $0x58] sm:$0xff]
        %v3587 = vld [vmem:[%s13 + $0x60] sm:$0xff]
        %v3588 = vld [vmem:[%s13 + $0x68] sm:$0xff]
        %v3589 = vld [vmem:[%s13 + $0x70] sm:$0xff]
        %v3590 = vld [vmem:[%s13 + $0x78] sm:$0xff]
        %v3592 = vsel %vm938, %v3574, 0
        %3594 = vmatprep.subr.mxu0 %v3576
        %3595 = vmatpush1.msra.mxu0 %v3575
        %3596 = vmatprep.subr.mxu0 %v3578
        %3597 = vmatpush1.msra.mxu0 %v3577
        %3598 = vmatprep.subr.mxu0 %v3580
        %3599 = vmatpush1.msra.mxu0 %v3579
        %3600 = vmatprep.subr.mxu0 %v3582
        %3601 = vmatpush1.msra.mxu0 %v3581
        %3602 = vmatprep.subr.mxu0 %v3584
        %3603 = vmatpush1.msra.mxu0 %v3583
        %3604 = vmatprep.subr.mxu0 %v3586
        %3605 = vmatpush1.msra.mxu0 %v3585
        %3606 = vmatprep.subr.mxu0 %v3588
        %3607 = vmatpush1.msra.mxu0 %v3587
        %3608 = vmatprep.subr.mxu0 %v3590
        %3609 = vmatpush1.msra.mxu0 %v3589
        %3610 = vmatprep.subr.mxu0 0.0
        %3611 = vmatpush1.msra.mxu0 0.0
        %3612 = vmatprep.subr.mxu0 0.0
        %3613 = vmatpush1.msra.mxu0 0.0
        %3614 = vmatprep.subr.mxu0 0.0
        %3615 = vmatpush1.msra.mxu0 0.0
        %3616 = vmatprep.subr.mxu0 0.0
        %3617 = vmatpush1.msra.mxu0 0.0
        %3618 = vmatprep.subr.mxu0 0.0
        %3619 = vmatpush1.msra.mxu0 0.0
        %3620 = vmatprep.subr.mxu0 0.0
        %3621 = vmatpush1.msra.mxu0 0.0
        %3622 = vmatprep.subr.mxu0 0.0
        %3623 = vmatpush1.msra.mxu0 0.0
        %3624 = vmatprep.subr.mxu0 0.0
        %3625 = vmatpush1.msra.mxu0 0.0
        %3626 = vmatprep.subr.mxu0 0.0
        %3627 = vmatpush1.msra.mxu0 0.0
        %3628 = vmatprep.subr.mxu0 0.0
        %3629 = vmatpush1.msra.mxu0 0.0
        %3630 = vmatprep.subr.mxu0 0.0
        %3631 = vmatpush1.msra.mxu0 0.0
        %3632 = vmatprep.subr.mxu0 0.0
        %3633 = vmatpush1.msra.mxu0 0.0
        %3634 = vmatprep.subr.mxu0 0.0
        %3635 = vmatpush1.msra.mxu0 0.0
        %3636 = vmatprep.subr.mxu0 0.0
        %3637 = vmatpush1.msra.mxu0 0.0
        %3638 = vmatprep.subr.mxu0 0.0
        %3639 = vmatpush1.msra.mxu0 0.0
        %3640 = vmatprep.subr.mxu0 0.0
        %3641 = vmatpush1.msra.mxu0 0.0
        %3642 = vmatprep.subr.mxu0 0.0
        %3643 = vmatpush1.msra.mxu0 0.0
        %3644 = vmatprep.subr.mxu0 0.0
        %3645 = vmatpush1.msra.mxu0 0.0
        %3646 = vmatprep.subr.mxu0 0.0
        %3647 = vmatpush1.msra.mxu0 0.0
        %3648 = vmatprep.subr.mxu0 0.0
        %3649 = vmatpush1.msra.mxu0 0.0
        %3650 = vmatprep.subr.mxu0 0.0
        %3651 = vmatpush1.msra.mxu0 0.0
        %3652 = vmatprep.subr.mxu0 0.0
        %3653 = vmatpush1.msra.mxu0 0.0
        %3654 = vmatprep.subr.mxu0 0.0
        %3655 = vmatpush1.msra.mxu0 0.0
        %3656 = vmatprep.subr.mxu0 0.0
        %3657 = vmatpush1.msra.mxu0 0.0
        %3658 = vmatprep.mubr.f32.mxu0 0.0
        %3659 = vmatmul.mubr.f32.gmra.mrb[0].mxu0 %v3592
        %v3660 = vpop.f32.mrb[0].mxu0
        %v3661 = vadd.f32 0.0, %v3660
        %v3662 = vpop.f32.mrb[0].mxu0
        %v3663 = vadd.f32 0.0, %v3662
        %3664 = vdwg.mxu0
        %3665 = vrot.lane.b32.xlu0 %v3661, 17
        %v3666 = vpop.permute.xlu0 %3665
        %3667 = vrot.lane.b32.xlu0 %v3663, 17
        %v3668 = vpop.permute.xlu0 %3667
        %v3669 = vlaneseq
        %v3670 = vand.u32 %v3669, 127
        %vm3671 = vcmp.lt.s32.totalorder %v3670, 17
        %v3672 = vsel %vm3671, %v3666, %v3668
        %v3673 = vsel %vm3671, %v3668, %v3666
        %3674 = vrot.lane.b32.xlu0 %v3661, 16
        %v3675 = vpop.permute.xlu0 %3674
        %3676 = vrot.lane.b32.xlu0 %v3663, 16
        %v3677 = vpop.permute.xlu0 %3676
        %vm3678 = vcmp.lt.s32.totalorder %v3670, 16
        %v3679 = vsel %vm3678, %v3675, %v3677
        %v3680 = vsel %vm3678, %v3677, %v3675
        %3681 = vrot.lane.b32.xlu0 %v3661, 15
        %v3682 = vpop.permute.xlu0 %3681
        %3683 = vrot.lane.b32.xlu0 %v3663, 15
        %v3684 = vpop.permute.xlu0 %3683
        %vm3685 = vcmp.lt.s32.totalorder %v3670, 15
        %v3686 = vsel %vm3685, %v3682, %v3684
        %v3687 = vsel %vm3685, %v3684, %v3682
        %3688 = vrot.lane.b32.xlu0 %v3661, 1
        %v3689 = vpop.permute.xlu0 %3688
        %3690 = vrot.lane.b32.xlu0 %v3663, 1
        %v3691 = vpop.permute.xlu0 %3690
        %vm3692 = vcmp.lt.s32.totalorder %v3670, 1
        %v3693 = vsel %vm3692, %v3689, %v3691
        %v3694 = vsel %vm3692, %v3691, %v3689
        %3695 = vrot.lane.b32.xlu0 %v3661, 127
        %v3696 = vpop.permute.xlu0 %3695
        %3697 = vrot.lane.b32.xlu0 %v3663, 127
        %v3698 = vpop.permute.xlu0 %3697
        %vm3699 = vcmp.lt.s32.totalorder %v3670, 127
        %v3700 = vsel %vm3699, %v3696, %v3698
        %v3701 = vsel %vm3699, %v3698, %v3696
        %3702 = vrot.lane.b32.xlu0 %v3661, 113
        %v3703 = vpop.permute.xlu0 %3702
        %3704 = vrot.lane.b32.xlu0 %v3663, 113
        %v3705 = vpop.permute.xlu0 %3704
        %vm3706 = vcmp.lt.s32.totalorder %v3670, 113
        %v3707 = vsel %vm3706, %v3703, %v3705
        %v3708 = vsel %vm3706, %v3705, %v3703
        %3709 = vrot.lane.b32.xlu0 %v3661, 112
        %v3710 = vpop.permute.xlu0 %3709
        %3711 = vrot.lane.b32.xlu0 %v3663, 112
        %v3712 = vpop.permute.xlu0 %3711
        %vm3713 = vcmp.lt.s32.totalorder %v3670, 112
        %v3714 = vsel %vm3713, %v3710, %v3712
        %v3715 = vsel %vm3713, %v3712, %v3710
        %3716 = vrot.lane.b32.xlu0 %v3661, 111
        %v3717 = vpop.permute.xlu0 %3716
        %3718 = vrot.lane.b32.xlu0 %v3663, 111
        %v3719 = vpop.permute.xlu0 %3718
        %vm3720 = vcmp.lt.s32.totalorder %v3670, 111
        %v3721 = vsel %vm3720, %v3717, %v3719
        %v3722 = vsel %vm3720, %v3719, %v3717
        %v3723 = vld [vmem:[%s15] sm:$0xff]
        %v3724 = vld [vmem:[%s15 + $0x8] sm:$0xff]
        %v3725 = vld [vmem:[%s15 + $0x10] sm:$0xff]
        %v3726 = vld [vmem:[%s15 + $0x18] sm:$0xff]
        %v3727 = vld [vmem:[%s15 + $0x20] sm:$0xff]
        %v3728 = vld [vmem:[%s15 + $0x28] sm:$0xff]
        %v3729 = vld [vmem:[%s15 + $0x30] sm:$0xff]
        %v3730 = vld [vmem:[%s15 + $0x38] sm:$0xff]
        %v3731 = vld [vmem:[%s15 + $0x40] sm:$0xff]
        %v3732 = vld [vmem:[%s15 + $0x48] sm:$0xff]
        %v3733 = vld [vmem:[%s15 + $0x50] sm:$0xff]
        %v3734 = vld [vmem:[%s15 + $0x58] sm:$0xff]
        %v3735 = vld [vmem:[%s15 + $0x60] sm:$0xff]
        %v3736 = vld [vmem:[%s15 + $0x68] sm:$0xff]
        %v3737 = vld [vmem:[%s15 + $0x70] sm:$0xff]
        %v3738 = vld [vmem:[%s15 + $0x78] sm:$0xff]
        %v3739 = vld [vmem:[%s15 + $0x80] sm:$0xff]
        %v3740 = vld [vmem:[%s15 + $0x88] sm:$0xff]
        %v3741 = vmul.f32 %v3673, %v3723
        %v3742 = vmul.f32 %v3672, %v3724
        %v3743 = vmul.f32 %v3680, %v3725
        %v3744 = vmul.f32 %v3679, %v3726
        %v3745 = vmul.f32 %v3687, %v3727
        %v3746 = vmul.f32 %v3686, %v3728
        %v3747 = vmul.f32 %v3694, %v3729
        %v3748 = vmul.f32 %v3693, %v3730
        %v3749 = vmul.f32 %v3661, %v3731
        %v3750 = vmul.f32 %v3663, %v3732
        %v3751 = vmul.f32 %v3700, %v3733
        %v3752 = vmul.f32 %v3701, %v3734
        %v3753 = vmul.f32 %v3707, %v3735
        %v3754 = vmul.f32 %v3708, %v3736
        %v3755 = vmul.f32 %v3714, %v3737
        %v3756 = vmul.f32 %v3715, %v3738
        %v3757 = vmul.f32 %v3721, %v3739
        %v3758 = vmul.f32 %v3722, %v3740
        %v3759 = vld [vmem:[%s14] sm:$0xff]
        %vm3760 = vcmask 588800
        %v3762 = vsel %vm3760, %v3759, 0
        %3764 = vmatprep.subr.mxu0 %v3742
        %3765 = vmatpush1.msra.mxu0 %v3741
        %3766 = vmatprep.subr.mxu0 %v3744
        %3767 = vmatpush1.msra.mxu0 %v3743
        %3768 = vmatprep.subr.mxu0 %v3746
        %3769 = vmatpush1.msra.mxu0 %v3745
        %3770 = vmatprep.subr.mxu0 %v3748
        %3771 = vmatpush1.msra.mxu0 %v3747
        %3772 = vmatprep.subr.mxu0 %v3750
        %3773 = vmatpush1.msra.mxu0 %v3749
        %3774 = vmatprep.subr.mxu0 %v3752
        %3775 = vmatpush1.msra.mxu0 %v3751
        %3776 = vmatprep.subr.mxu0 %v3754
        %3777 = vmatpush1.msra.mxu0 %v3753
        %3778 = vmatprep.subr.mxu0 %v3756
        %3779 = vmatpush1.msra.mxu0 %v3755
        %3780 = vmatprep.subr.mxu0 %v3758
        %3781 = vmatpush1.msra.mxu0 %v3757
        %3782 = vmatprep.subr.mxu0 0.0
        %3783 = vmatpush1.msra.mxu0 0.0
        %3784 = vmatprep.subr.mxu0 0.0
        %3785 = vmatpush1.msra.mxu0 0.0
        %3786 = vmatprep.subr.mxu0 0.0
        %3787 = vmatpush1.msra.mxu0 0.0
        %3788 = vmatprep.subr.mxu0 0.0
        %3789 = vmatpush1.msra.mxu0 0.0
        %3790 = vmatprep.subr.mxu0 0.0
        %3791 = vmatpush1.msra.mxu0 0.0
        %3792 = vmatprep.subr.mxu0 0.0
        %3793 = vmatpush1.msra.mxu0 0.0
        %3794 = vmatprep.subr.mxu0 0.0
        %3795 = vmatpush1.msra.mxu0 0.0
        %3796 = vmatprep.subr.mxu0 0.0
        %3797 = vmatpush1.msra.mxu0 0.0
        %3798 = vmatprep.subr.mxu0 0.0
        %3799 = vmatpush1.msra.mxu0 0.0
        %3800 = vmatprep.subr.mxu0 0.0
        %3801 = vmatpush1.msra.mxu0 0.0
        %3802 = vmatprep.subr.mxu0 0.0
        %3803 = vmatpush1.msra.mxu0 0.0
        %3804 = vmatprep.subr.mxu0 0.0
        %3805 = vmatpush1.msra.mxu0 0.0
        %3806 = vmatprep.subr.mxu0 0.0
        %3807 = vmatpush1.msra.mxu0 0.0
        %3808 = vmatprep.subr.mxu0 0.0
        %3809 = vmatpush1.msra.mxu0 0.0
        %3810 = vmatprep.subr.mxu0 0.0
        %3811 = vmatpush1.msra.mxu0 0.0
        %3812 = vmatprep.subr.mxu0 0.0
        %3813 = vmatpush1.msra.mxu0 0.0
        %3814 = vmatprep.subr.mxu0 0.0
        %3815 = vmatpush1.msra.mxu0 0.0
        %3816 = vmatprep.subr.mxu0 0.0
        %3817 = vmatpush1.msra.mxu0 0.0
        %3818 = vmatprep.subr.mxu0 0.0
        %3819 = vmatpush1.msra.mxu0 0.0
        %3820 = vmatprep.subr.mxu0 0.0
        %3821 = vmatpush1.msra.mxu0 0.0
        %3822 = vmatprep.subr.mxu0 0.0
        %3823 = vmatpush1.msra.mxu0 0.0
        %3824 = vmatprep.subr.mxu0 0.0
        %3825 = vmatpush1.msra.mxu0 0.0
        %3826 = vmatprep.subr.mxu0 0.0
        %3827 = vmatpush1.msra.mxu0 0.0
        %3828 = vmatprep.mubr.f32.mxu0 0.0
        %3829 = vmatmul.mubr.f32.gmra.mrb[0].mxu0 %v3762
        %v3830 = vpop.f32.mrb[0].mxu0
        %v3831 = vadd.f32 0.0, %v3830
        %v3832 = vpop.f32.mrb[0].mxu0
        %v3833 = vadd.f32 0.0, %v3832
        %3834 = vdwg.mxu0
        %v3835 = vadd.f32 %v3831, %v3833
        %3836 = vadd.xlane.f32.xlu0 %v3835
        %v3837 = vpop.xlane.xlu0 %3836
        %v3838 = vmul.f32 %v3837, 0.00390625
        %v3839 = vmul.f32 %v3831, %v3831
        %v3840 = vmul.f32 %v3833, %v3833
        %v3841 = vadd.f32 %v3839, %v3840
        %3842 = vadd.xlane.f32.xlu0 %v3841
        %v3843 = vpop.xlane.xlu0 %3842
        %v3844 = vmul.f32 %v3843, 0.00390625
        %v3845 = vmul.f32 %v3838, %v3838
        %v3846 = vsub.f32 %v3844, %v3845
        %v3847 = vmax.f32 %v3846, 0.0
        %v3848 = vsub.f32 %v3831, %v3838
        %v3849 = vsub.f32 %v3833, %v3838
        %v3850 = vadd.f32 %v3847, 1e-05
        %v3851 = vrsqrt.pop %v3850
        %v3852 = vmul.f32 %v3848, %v3851
        %v3853 = vmul.f32 %v3849, %v3851
        %v3854 = vld [vmem:[%s16] sm:$0xff]
        %3856 = vset.pattern.permute.xlu0 0
        %3857 = vperm.xlu0 %3856, %v3854
        %v3858 = vpop.permute.xlu0 %3857
        %v3860 = vmul.f32 %v3852, %v3858
        %v3861 = vmul.f32 %v3853, %v3858
        %v3862 = vld [vmem:[%s17] sm:$0xff]
        %3864 = vset.pattern.permute.xlu0 0
        %3865 = vperm.xlu0 %3864, %v3862
        %v3866 = vpop.permute.xlu0 %3865
        %v3868 = vadd.f32 %v3860, %v3866
        %v3869 = vadd.f32 %v3861, %v3866
        %vm3870 = vcmp.gt.f32.partialorder %v3868, 0.0
        %vm3871 = vcmp.gt.f32.partialorder %v3869, 0.0
        %v3872 = vmul.f32 %v3868, 0.01
        %v3873 = vmul.f32 %v3869, 0.01
        %v3874 = vsel %vm3870, %v3868, %v3872
        %v3875 = vsel %vm3871, %v3869, %v3873
        %3876 = vrot.lane.b32.xlu0 %v3874, 17
        %v3877 = vpop.permute.xlu0 %3876
        %3878 = vrot.lane.b32.xlu0 %v3875, 17
        %v3879 = vpop.permute.xlu0 %3878
        %v3880 = vsel %vm3671, %v3877, %v3879
        %v3881 = vsel %vm3671, %v3879, %v3877
        %3882 = vrot.lane.b32.xlu0 %v3874, 16
        %v3883 = vpop.permute.xlu0 %3882
        %3884 = vrot.lane.b32.xlu0 %v3875, 16
        %v3885 = vpop.permute.xlu0 %3884
        %v3886 = vsel %vm3678, %v3883, %v3885
        %v3887 = vsel %vm3678, %v3885, %v3883
        %3888 = vrot.lane.b32.xlu0 %v3874, 15
        %v3889 = vpop.permute.xlu0 %3888
        %3890 = vrot.lane.b32.xlu0 %v3875, 15
        %v3891 = vpop.permute.xlu0 %3890
        %v3892 = vsel %vm3685, %v3889, %v3891
        %v3893 = vsel %vm3685, %v3891, %v3889
        %3894 = vrot.lane.b32.xlu0 %v3874, 1
        %v3895 = vpop.permute.xlu0 %3894
        %3896 = vrot.lane.b32.xlu0 %v3875, 1
        %v3897 = vpop.permute.xlu0 %3896
        %v3898 = vsel %vm3692, %v3895, %v3897
        %v3899 = vsel %vm3692, %v3897, %v3895
        %3900 = vrot.lane.b32.xlu0 %v3874, 127
        %v3901 = vpop.permute.xlu0 %3900
        %3902 = vrot.lane.b32.xlu0 %v3875, 127
        %v3903 = vpop.permute.xlu0 %3902
        %v3904 = vsel %vm3699, %v3901, %v3903
        %v3905 = vsel %vm3699, %v3903, %v3901
        %3906 = vrot.lane.b32.xlu0 %v3874, 113
        %v3907 = vpop.permute.xlu0 %3906
        %3908 = vrot.lane.b32.xlu0 %v3875, 113
        %v3909 = vpop.permute.xlu0 %3908
        %v3910 = vsel %vm3706, %v3907, %v3909
        %v3911 = vsel %vm3706, %v3909, %v3907
        %3912 = vrot.lane.b32.xlu0 %v3874, 112
        %v3913 = vpop.permute.xlu0 %3912
        %3914 = vrot.lane.b32.xlu0 %v3875, 112
        %v3915 = vpop.permute.xlu0 %3914
        %v3916 = vsel %vm3713, %v3913, %v3915
        %v3917 = vsel %vm3713, %v3915, %v3913
        %3918 = vrot.lane.b32.xlu0 %v3874, 111
        %v3919 = vpop.permute.xlu0 %3918
        %3920 = vrot.lane.b32.xlu0 %v3875, 111
        %v3921 = vpop.permute.xlu0 %3920
        %v3922 = vsel %vm3720, %v3919, %v3921
        %v3923 = vsel %vm3720, %v3921, %v3919
        %v3924 = vld [vmem:[%s19] sm:$0xff]
        %v3925 = vld [vmem:[%s19 + $0x8] sm:$0xff]
        %v3926 = vld [vmem:[%s19 + $0x10] sm:$0xff]
        %v3927 = vld [vmem:[%s19 + $0x18] sm:$0xff]
        %v3928 = vld [vmem:[%s19 + $0x20] sm:$0xff]
        %v3929 = vld [vmem:[%s19 + $0x28] sm:$0xff]
        %v3930 = vld [vmem:[%s19 + $0x30] sm:$0xff]
        %v3931 = vld [vmem:[%s19 + $0x38] sm:$0xff]
        %v3932 = vld [vmem:[%s19 + $0x40] sm:$0xff]
        %v3933 = vld [vmem:[%s19 + $0x48] sm:$0xff]
        %v3934 = vld [vmem:[%s19 + $0x50] sm:$0xff]
        %v3935 = vld [vmem:[%s19 + $0x58] sm:$0xff]
        %v3936 = vld [vmem:[%s19 + $0x60] sm:$0xff]
        %v3937 = vld [vmem:[%s19 + $0x68] sm:$0xff]
        %v3938 = vld [vmem:[%s19 + $0x70] sm:$0xff]
        %v3939 = vld [vmem:[%s19 + $0x78] sm:$0xff]
        %v3940 = vld [vmem:[%s19 + $0x80] sm:$0xff]
        %v3941 = vld [vmem:[%s19 + $0x88] sm:$0xff]
        %v3942 = vmul.f32 %v3881, %v3924
        %v3943 = vmul.f32 %v3880, %v3925
        %v3944 = vmul.f32 %v3887, %v3926
        %v3945 = vmul.f32 %v3886, %v3927
        %v3946 = vmul.f32 %v3893, %v3928
        %v3947 = vmul.f32 %v3892, %v3929
        %v3948 = vmul.f32 %v3899, %v3930
        %v3949 = vmul.f32 %v3898, %v3931
        %v3950 = vmul.f32 %v3874, %v3932
        %v3951 = vmul.f32 %v3875, %v3933
        %v3952 = vmul.f32 %v3904, %v3934
        %v3953 = vmul.f32 %v3905, %v3935
        %v3954 = vmul.f32 %v3910, %v3936
        %v3955 = vmul.f32 %v3911, %v3937
        %v3956 = vmul.f32 %v3916, %v3938
        %v3957 = vmul.f32 %v3917, %v3939
        %v3958 = vmul.f32 %v3922, %v3940
        %v3959 = vmul.f32 %v3923, %v3941
        %v3960 = vld [vmem:[%s18] sm:$0xff]
        %v3962 = vsel %vm3760, %v3960, 0
        %3964 = vmatprep.subr.mxu0 %v3943
        %3965 = vmatpush1.msra.mxu0 %v3942
        %3966 = vmatprep.subr.mxu0 %v3945
        %3967 = vmatpush1.msra.mxu0 %v3944
        %3968 = vmatprep.subr.mxu0 %v3947
        %3969 = vmatpush1.msra.mxu0 %v3946
        %3970 = vmatprep.subr.mxu0 %v3949
        %3971 = vmatpush1.msra.mxu0 %v3948
        %3972 = vmatprep.subr.mxu0 %v3951
        %3973 = vmatpush1.msra.mxu0 %v3950
        %3974 = vmatprep.subr.mxu0 %v3953
        %3975 = vmatpush1.msra.mxu0 %v3952
        %3976 = vmatprep.subr.mxu0 %v3955
        %3977 = vmatpush1.msra.mxu0 %v3954
        %3978 = vmatprep.subr.mxu0 %v3957
        %3979 = vmatpush1.msra.mxu0 %v3956
        %3980 = vmatprep.subr.mxu0 %v3959
        %3981 = vmatpush1.msra.mxu0 %v3958
        %3982 = vmatprep.subr.mxu0 0.0
        %3983 = vmatpush1.msra.mxu0 0.0
        %3984 = vmatprep.subr.mxu0 0.0
        %3985 = vmatpush1.msra.mxu0 0.0
        %3986 = vmatprep.subr.mxu0 0.0
        %3987 = vmatpush1.msra.mxu0 0.0
        %3988 = vmatprep.subr.mxu0 0.0
        %3989 = vmatpush1.msra.mxu0 0.0
        %3990 = vmatprep.subr.mxu0 0.0
        %3991 = vmatpush1.msra.mxu0 0.0
        %3992 = vmatprep.subr.mxu0 0.0
        %3993 = vmatpush1.msra.mxu0 0.0
        %3994 = vmatprep.subr.mxu0 0.0
        %3995 = vmatpush1.msra.mxu0 0.0
        %3996 = vmatprep.subr.mxu0 0.0
        %3997 = vmatpush1.msra.mxu0 0.0
        %3998 = vmatprep.subr.mxu0 0.0
        %3999 = vmatpush1.msra.mxu0 0.0
        %4000 = vmatprep.subr.mxu0 0.0
        %4001 = vmatpush1.msra.mxu0 0.0
        %4002 = vmatprep.subr.mxu0 0.0
        %4003 = vmatpush1.msra.mxu0 0.0
        %4004 = vmatprep.subr.mxu0 0.0
        %4005 = vmatpush1.msra.mxu0 0.0
        %4006 = vmatprep.subr.mxu0 0.0
        %4007 = vmatpush1.msra.mxu0 0.0
        %4008 = vmatprep.subr.mxu0 0.0
        %4009 = vmatpush1.msra.mxu0 0.0
        %4010 = vmatprep.subr.mxu0 0.0
        %4011 = vmatpush1.msra.mxu0 0.0
        %4012 = vmatprep.subr.mxu0 0.0
        %4013 = vmatpush1.msra.mxu0 0.0
        %4014 = vmatprep.subr.mxu0 0.0
        %4015 = vmatpush1.msra.mxu0 0.0
        %4016 = vmatprep.subr.mxu0 0.0
        %4017 = vmatpush1.msra.mxu0 0.0
        %4018 = vmatprep.subr.mxu0 0.0
        %4019 = vmatpush1.msra.mxu0 0.0
        %4020 = vmatprep.subr.mxu0 0.0
        %4021 = vmatpush1.msra.mxu0 0.0
        %4022 = vmatprep.subr.mxu0 0.0
        %4023 = vmatpush1.msra.mxu0 0.0
        %4024 = vmatprep.subr.mxu0 0.0
        %4025 = vmatpush1.msra.mxu0 0.0
        %4026 = vmatprep.subr.mxu0 0.0
        %4027 = vmatpush1.msra.mxu0 0.0
        %4028 = vmatprep.mubr.f32.mxu0 0.0
        %4029 = vmatmul.mubr.f32.gmra.mrb[0].mxu0 %v3962
        %v4030 = vpop.f32.mrb[0].mxu0
        %v4031 = vadd.f32 0.0, %v4030
        %v4032 = vpop.f32.mrb[0].mxu0
        %v4033 = vadd.f32 0.0, %v4032
        %4034 = vdwg.mxu0
        %v4035 = vadd.f32 %v4031, %v4033
        %4036 = vadd.xlane.f32.xlu0 %v4035
        %v4037 = vpop.xlane.xlu0 %4036
        %v4038 = vmul.f32 %v4037, 0.00390625
        %v4039 = vmul.f32 %v4031, %v4031
        %v4040 = vmul.f32 %v4033, %v4033
        %v4041 = vadd.f32 %v4039, %v4040
        %4042 = vadd.xlane.f32.xlu0 %v4041
        %v4043 = vpop.xlane.xlu0 %4042
        %v4044 = vmul.f32 %v4043, 0.00390625
        %v4045 = vmul.f32 %v4038, %v4038
        %v4046 = vsub.f32 %v4044, %v4045
        %v4047 = vmax.f32 %v4046, 0.0
        %v4048 = vsub.f32 %v4031, %v4038
        %v4049 = vsub.f32 %v4033, %v4038
        %v4050 = vadd.f32 %v4047, 1e-05
        %v4051 = vrsqrt.pop %v4050
        %v4052 = vmul.f32 %v4048, %v4051
        %v4053 = vmul.f32 %v4049, %v4051
        %v4054 = vld [vmem:[%s20] sm:$0xff]
        %4056 = vset.pattern.permute.xlu0 0
        %4057 = vperm.xlu0 %4056, %v4054
        %v4058 = vpop.permute.xlu0 %4057
        %v4060 = vmul.f32 %v4052, %v4058
        %v4061 = vmul.f32 %v4053, %v4058
        %v4062 = vld [vmem:[%s21] sm:$0xff]
        %4064 = vset.pattern.permute.xlu0 0
        %4065 = vperm.xlu0 %4064, %v4062
        %v4066 = vpop.permute.xlu0 %4065
        %v4068 = vadd.f32 %v4060, %v4066
        %v4069 = vadd.f32 %v4061, %v4066
        %v4070 = vtanh.pop %v4068
        %v4071 = vtanh.pop %v4069
        %4072 = vst [vmem:[%s661] sm:$0xff] %v4070
        %4073 = vst [vmem:[%s661 + $0x8] sm:$0xff] %v4071
        %s4074 = sand.u32 %s506, 1
        %s4075 = scalar_lea.sflag [#allocation3], %s4074
        %s4076 = sand.u32 %s506, 1
        %s4077 = smul.addr %s4076, 16
        %s4078 = scalar_lea.vmem [#allocation2], %s4077
        // Predicated region
        $region109: #{tpu_custom_call.1} parent=107 // pred_check
          %p4079 = pneg %p516
        $region110: #{tpu_custom_call.1} parent=107 // pred_check_branch
          %4081 = sbr.rel (%p4079) target = $region112
        $region111: #{tpu_custom_call.1} parent=107 // pred_region
          %s4083 = ssub.s32 256, 256
          %4084 = vsyncadd %s4075, %s4083
          %s4085 = smul.addr %s36, 2
          %s4086 = smul.addr %s4085, 128
          %s4087 = scalar_lea.hbm %s22, %s4086
          %s4089 = sshll.u32 %s4078, 4
          %s4090 = int_to_ptr.vmem [resolvable:$true] %s4089
          %4092 = dma.vmem_to_hbm [thread:$0]  %s4090, 256, %s4087, %s4075
        $region112: #{tpu_custom_call.1} parent=107 // pred_fallthru
          _
      $region108: #{tpu_custom_call.1} parent=5 // pred_fallthru
        _
      %p4093 = scmp.le.s32.totalorder 2, %s31
      // Predicated region
      $region113: #{tpu_custom_call.1} parent=5 // pred_check
        %p4094 = pneg %p4093
      $region114: #{tpu_custom_call.1} parent=5 // pred_check_branch
        %4096 = sbr.rel (%p4094) target = $region116
      $region115: #{tpu_custom_call.1} parent=5 // pred_region
        %s4097 = ssub.s32 %s31, 2
        // Predicated region
        $region117: #{tpu_custom_call.1} parent=115 // pred_check
          %p4098 = pneg %p522
        $region118: #{tpu_custom_call.1} parent=115 // pred_check_branch
          %4100 = sbr.rel (%p4098) target = $region120
        $region119: #{tpu_custom_call.1} parent=115 // pred_region
          %s4101 = sand.u32 %s507, 1
          %s4102 = scalar_lea.sflag [#allocation3], %s4101
          %s4103 = sand.u32 %s507, 1
          %s4104 = smul.addr %s4103, 16
          %s4105 = scalar_lea.vmem [#allocation2], %s4104
          %4106 = dma.done %s4102, 256
        $region120: #{tpu_custom_call.1} parent=115 // pred_fallthru
          _
      $region116: #{tpu_custom_call.1} parent=5 // pred_fallthru
        _
    $region6: #{tpu_custom_call.1} parent=1 // loop_footer
      %s35 = sadd.s32 1, %s31
    $region7: #{tpu_custom_call.1} parent=1 // loop_footer_branch
      %30 = sbr.rel target = $region3
    $region8: #{tpu_custom_call.1} parent=1 // loop_exit
      _
    %4107 = vsyncpa [#allocation3], 1
    %s4108 = scalar_lea.sflag [#allocation3], 1
    %4109 = vsyncpa %s4108, 1

</llo_original>
